<compile_context>
chip_gen: v6e
topology: v6e:2x2x1
jax: 0.10.0
libtpu: 0.0.40
codegen_flags: <defaults>
</compile_context>

<pallas_src>
import functools
import math

import jax
import jax.numpy as jnp
from jax.experimental import pallas as pl
from jax.experimental.pallas import tpu as pltpu

INF = 32752.0  # the reference masked_fill uses +32752 (not -inf); reproduced exactly

_VMEM_BUDGET = 40 << 20  # working budget for picking Bb; safe under v7x's 64 MiB physical


def _mha_kernel(q_ref, k_ref, v_ref, mask_ref,
                wq_ref, bq_ref, wk_ref, bk_ref,
                wv_ref, bv_ref, wo_ref, bo_ref,
                o_ref, *, num_heads, d_head):
    Bb, Lq, D = q_ref.shape
    _, Lk, _ = k_ref.shape
    mxu_dtype = q_ref.dtype                       # wrapper casts MXU operands (bf16 default)
    scale = 1.0 / math.sqrt(d_head)

    # ---- Q/K/V projections: tall lane-dense (Bb*L, D) x (D, D) MXU matmuls ----------
    q2 = q_ref[...].reshape(Bb * Lq, D)
    k2 = k_ref[...].reshape(Bb * Lk, D)
    v2 = v_ref[...].reshape(Bb * Lk, D)

    # 1/sqrt(d_head) hoisted out of the per-head quadratic score tensor: applied once to
    # the projected-query slab (bias included -> mathematically identical to the module).
    qp = ((jnp.dot(q2, wq_ref[...], preferred_element_type=jnp.float32)
           + bq_ref[...]) * scale).astype(mxu_dtype).reshape(Bb, Lq, D)
    kp = (jnp.dot(k2, wk_ref[...], preferred_element_type=jnp.float32)
          + bk_ref[...]).astype(mxu_dtype).reshape(Bb, Lk, D)
    vp = (jnp.dot(v2, wv_ref[...], preferred_element_type=jnp.float32)
          + bv_ref[...]).astype(mxu_dtype).reshape(Bb, Lk, D)

    # Mask predicate computed ONCE per block with an integer compare
    # (no int8 -> f32 unpack/convert over the quadratic (Bb, Lq, Lk) tensor).
    masked = mask_ref[...] != 0                   # (Bb, Lq, Lk) bool

    def head_attention(h):
        sl = slice(h * d_head, (h + 1) * d_head)
        qh = qp[:, :, sl]                         # (Bb, Lq, dh)
        kh = kp[:, :, sl]                         # (Bb, Lk, dh)
        vh = vp[:, :, sl]                         # (Bb, Lk, dh)
        # batched over Bb, contracting the LAST dim of both operands (no K^T transpose).
        s = jnp.einsum('bqd,bkd->bqk', qh, kh,
                       preferred_element_type=jnp.float32)
        # masked_fill(mask, +INF) — identical (odd) semantics to the reference module.
        s = jnp.where(masked, INF, s)
        # softmax over the key axis (dim=3 in the reference); f32 stats, EUP reciprocal.
        m = jnp.max(s, axis=-1, keepdims=True)
        p = jnp.exp(s - m)
        l = jnp.sum(p, axis=-1, keepdims=True)
        attn = p * pl.reciprocal(l, approx=True)
        # TODO(synk): dropout on `attn` skipped (identity / eval-mode semantics).
        return jnp.einsum('bqk,bkd->bqd', attn.astype(mxu_dtype), vh,
                          preferred_element_type=jnp.float32)     # (Bb, Lq, dh) f32

    if d_head >= 128:
        # dh is lane-tile aligned: per-head slices and the lane concat are free-ish;
        # keep the single full-width output projection.
        ctx = jnp.concatenate([head_attention(h) for h in range(num_heads)],
                              axis=-1).astype(mxu_dtype)          # (Bb, Lq, D)
        out = (jnp.dot(ctx.reshape(Bb * Lq, D), wo_ref[...],
                       preferred_element_type=jnp.float32) + bo_ref[...])
    else:
        # dh < 128: avoid the lane-axis concat of narrow pieces. Accumulate the output
        # projection per head (sublane slices of Wo, no relayout, same FLOPs); each
        # head's ctx slab is consumed immediately, bounding its live range.
        out = None
        for h in range(num_heads):                # static unroll, H is small
            ctx_h = head_attention(h).astype(mxu_dtype).reshape(Bb * Lq, d_head)
            contrib = jnp.dot(ctx_h, wo_ref[h * d_head:(h + 1) * d_head, :],
                              preferred_element_type=jnp.float32)
            out = contrib if out is None else out + contrib
        out = out + bo_ref[...]

    o_ref[...] = out.reshape(Bb, Lq, D).astype(o_ref.dtype)


def _vmem_estimate(bb, lq, lk, d, in_b, out_b, w_b, buffer_weights):
    """Rough per-grid-step VMEM footprint in bytes (blocks + weights + intermediates)."""
    blocks = 2 * (bb * lq * d * in_b             # query block   (double-buffered)
                  + 2 * bb * lk * d * in_b       # key + value blocks
                  + bb * lq * lk                 # int8 mask block
                  + bb * lq * d * out_b)         # output block
    weights = 4 * d * d * w_b * (1 if buffer_weights else 2) + 8 * d * 4
    interm = (bb * (lq + 2 * lk) * d * (4 + in_b)   # f32 qp/kp/vp + mxu-dtype copies
              + 2 * bb * lq * lk * 4                # ~2 live f32 quadratic score tensors
              + bb * lq * d * 4)                    # f32 output accumulator
    return blocks + weights + interm


def _pick_batch_block(batch, lq, lk, d, in_b, out_b, w_b, buffer_weights,
                      requested=None, vmem_budget=_VMEM_BUDGET):
    """Largest divisor of `batch` whose footprint fits the VMEM budget; capped so the
    grid has >= 2 steps whenever batch >= 2 (shards work across v7x's two TensorCores)."""
    max_bb = batch if batch < 2 else batch // 2
    if requested is not None:
        max_bb = min(max_bb, max(1, int(requested)))
    bb = max(1, max_bb)
    while bb > 1 and (batch % bb
                      or _vmem_estimate(bb, lq, lk, d, in_b, out_b, w_b,
                                        buffer_weights) > vmem_budget):
        bb -= 1
    return bb


def multi_head_attention(query, key, value, mask_expanded, params, num_heads,
                         *, batch_block=None, mxu_dtype=jnp.bfloat16):
    """params = (wq, bq, wk, bk, wv, bv, wo, bo); w* are (d_model, d_model) stored in
    (in, out) orientation (= torch W.T), b* are (d_model,) or (1, d_model).
    mask_expanded: (B, Lq, Lk), nonzero == masked (any dtype; int8 preferred).
    mxu_dtype: dtype for MXU operands (bf16 default = native MXU path on v5e/v6e/v7x;
    pass jnp.float32 for tight numerical parity)."""
    B, Lq, D = query.shape
    _, Lk, _ = key.shape
    assert D % num_heads == 0, "d_model must be divisible by num_heads"
    d_head = D // num_heads
    out_dtype = query.dtype
    wq, bq, wk, bk, wv, bv, wo, bo = params

    # bf16 MXU path: f32 matmuls run multi-pass emulation (~3-4x slower) on the
    # bf16-native MXUs and double the weight VMEM footprint. Accumulation stays f32
    # in-kernel; biases stay f32 and are added to the f32 accumulators.
    q_in = query.astype(mxu_dtype)
    k_in = key.astype(mxu_dtype)
    v_in = value.astype(mxu_dtype)
    wq, wk, wv, wo = (w.astype(mxu_dtype) for w in (wq, wk, wv, wo))
    bq, bk, bv, bo = (jnp.asarray(b, jnp.float32).reshape(1, D) for b in (bq, bk, bv, bo))

    if mask_expanded is None:
        mask_expanded = jnp.zeros((B, Lq, Lk), jnp.int8)
    elif mask_expanded.dtype != jnp.int8:
        # int8 mask: 4x less quadratic (B, Lq, Lk) HBM->VMEM traffic than f32.
        mask_expanded = (mask_expanded != 0).astype(jnp.int8)

    in_b = jnp.dtype(mxu_dtype).itemsize
    out_b = jnp.dtype(out_dtype).itemsize
    w_b = in_b

    kernel = functools.partial(_mha_kernel, num_heads=num_heads, d_head=d_head)

    def build_and_call(buffer_weights):
        Bb = _pick_batch_block(B, Lq, Lk, D, in_b, out_b, w_b, buffer_weights,
                               requested=batch_block)
        est = _vmem_estimate(Bb, Lq, Lk, D, in_b, out_b, w_b, buffer_weights)
        # Explicit scoped-VMEM limit from the actual footprint (+50% margin), floored at
        # 32 MiB (v5e's default is only 16 MiB) and capped at v7x's 64 MiB physical.
        vmem_limit = int(min(max(est * 3 // 2, 32 << 20), 64 << 20))

        # Constant-index weight/bias blocks: single-buffer them (Buffered(1)) — their
        # block index never changes, so double-buffering only doubles resident VMEM.
        w_kwargs = dict(pipeline_mode=pl.Buffered(1)) if buffer_weights else {}
        w_spec = pl.BlockSpec((D, D), lambda b: (0, 0), **w_kwargs)
        b_spec = pl.BlockSpec((1, D), lambda b: (0, 0), **w_kwargs)

        return pl.pallas_call(
            kernel,
            out_shape=jax.ShapeDtypeStruct((B, Lq, D), out_dtype),
            grid=(B // Bb,),
            in_specs=[
                pl.BlockSpec((Bb, Lq, D), lambda b: (b, 0, 0)),    # query block
                pl.BlockSpec((Bb, Lk, D), lambda b: (b, 0, 0)),    # key block
                pl.BlockSpec((Bb, Lk, D), lambda b: (b, 0, 0)),    # value block
                pl.BlockSpec((Bb, Lq, Lk), lambda b: (b, 0, 0)),   # int8 mask block
                w_spec, b_spec,                                    # Wq, bq
                w_spec, b_spec,                                    # Wk, bk
                w_spec, b_spec,                                    # Wv, bv
                w_spec, b_spec,                                    # Wo, bo
            ],
            out_specs=pl.BlockSpec((Bb, Lq, D), lambda b: (b, 0, 0)),
            compiler_params=pltpu.CompilerParams(
                dimension_semantics=("parallel",),
                vmem_limit_bytes=vmem_limit),
        )(q_in, k_in, v_in, mask_expanded, wq, bq, wk, bk, wv, bv, wo, bo)

    try:
        return build_and_call(True)
    except Exception:
        # pipeline_mode=pl.Buffered(1) support varies across jax releases; fall back to
        # default double-buffered weight blocks so the kernel always runs.
        return build_and_call(False)


def _reference(query, key, value, mask_expanded, params, num_heads):
    """Pure-JAX f32 reference mirroring the PyTorch forward (eval-mode dropout)."""
    wq, bq, wk, bk, wv, bv, wo, bo = params
    B, Lq, D = query.shape
    dh = D // num_heads
    qp = query @ wq + bq
    kp = key @ wk + bk
    vp = value @ wv + bv

    def heads(x, L):
        return x.reshape(B, L, num_heads, dh).transpose(0, 2, 1, 3)

    qh, kh, vh = heads(qp, Lq), heads(kp, key.shape[1]), heads(vp, value.shape[1])
    scores = jnp.einsum('bhqd,bhkd->bhqk', qh, kh) / jnp.sqrt(jnp.float32(dh))
    scores = jnp.where(mask_expanded[:, None, :, :] > 0, INF, scores)
    attn = jax.nn.softmax(scores, axis=3)
    ctx = jnp.einsum('bhqk,bhkd->bhqd', attn, vh)
    ctx = ctx.transpose(0, 2, 1, 3).reshape(B, Lq, D)
    return ctx @ wo + bo


if __name__ == "__main__":
    # Small, module-consistent shapes.
    batch, query_len, key_len, d_model, num_heads = 2, 8, 8, 32, 4

    key0 = jax.random.PRNGKey(0)
    ks = jax.random.split(key0, 12)

    query = jax.random.normal(ks[0], (batch, query_len, d_model), jnp.float32)
    key_ = jax.random.normal(ks[1], (batch, key_len, d_model), jnp.float32)
    value = jax.random.normal(ks[2], (batch, key_len, d_model), jnp.float32)
    # mask_expanded: nonzero where masked (bool mask in the reference); int8 keeps its
    # HBM->VMEM traffic 4x smaller than float32.
    mask_expanded = (jax.random.uniform(ks[3], (batch, query_len, key_len)) < 0.2
                     ).astype(jnp.int8)

    # Deterministic parameter init (Linear weights stored as (in, out) = W.T).
    scale = 1.0 / jnp.sqrt(jnp.float32(d_model))
    params = (
        jax.random.normal(ks[4], (d_model, d_model), jnp.float32) * scale,   # Wq
        jax.random.normal(ks[5], (1, d_model), jnp.float32) * 0.1,           # bq
        jax.random.normal(ks[6], (d_model, d_model), jnp.float32) * scale,   # Wk
        jax.random.normal(ks[7], (1, d_model), jnp.float32) * 0.1,           # bk
        jax.random.normal(ks[8], (d_model, d_model), jnp.float32) * scale,   # Wv
        jax.random.normal(ks[9], (1, d_model), jnp.float32) * 0.1,           # bv
        jax.random.normal(ks[10], (d_model, d_model), jnp.float32) * scale,  # Wo
        jax.random.normal(ks[11], (1, d_model), jnp.float32) * 0.1,          # bo
    )

    # f32 MXU path: tight numerical parity with the PyTorch-equivalent reference.
    out_f32 = multi_head_attention(query, key_, value, mask_expanded, params,
                                   num_heads, mxu_dtype=jnp.float32)
    out_f32 = jax.block_until_ready(out_f32)

    # Default bf16 MXU path: the performance configuration on v5e/v6e/v7x.
    out_bf16 = multi_head_attention(query, key_, value, mask_expanded, params, num_heads)
    out_bf16 = jax.block_until_ready(out_bf16)

    ref = _reference(query, key_, value, mask_expanded, params, num_heads)
    assert out_f32.shape == (batch, query_len, d_model)
    assert out_bf16.shape == (batch, query_len, d_model)
    # f32 tolerance absorbs the EUP approximate reciprocal used in the kernel softmax.
    assert jnp.allclose(out_f32, ref, atol=5e-3, rtol=5e-3), "f32 path mismatch vs reference"
    # bf16 tolerance additionally absorbs bf16 rounding of the MXU operands.
    assert jnp.allclose(out_bf16, ref, atol=1e-1, rtol=1e-1), "bf16 path mismatch vs reference"

    print("KERNEL_OK")
</pallas_src>

<mosaic_0001>
module attributes {stable_mosaic.version = 11 : i64} {
  func.func @_mha_kernel(%arg0: i32, %arg1: memref<1x8x32xf32, #tpu.memory_space<vmem>>, %arg2: memref<1x8x32xf32, #tpu.memory_space<vmem>>, %arg3: memref<1x8x32xf32, #tpu.memory_space<vmem>>, %arg4: memref<1x8x8xi8, #tpu.memory_space<vmem>>, %arg5: memref<32x32xf32, #tpu.memory_space<vmem>>, %arg6: memref<1x32xf32, #tpu.memory_space<vmem>>, %arg7: memref<32x32xf32, #tpu.memory_space<vmem>>, %arg8: memref<1x32xf32, #tpu.memory_space<vmem>>, %arg9: memref<32x32xf32, #tpu.memory_space<vmem>>, %arg10: memref<1x32xf32, #tpu.memory_space<vmem>>, %arg11: memref<32x32xf32, #tpu.memory_space<vmem>>, %arg12: memref<1x32xf32, #tpu.memory_space<vmem>>, %arg13: memref<1x8x32xf32, #tpu.memory_space<vmem>>) attributes {dimension_semantics = [#tpu.dimension_semantics<parallel>], iteration_bounds = array<i64: 2>, scalar_prefetch = 0 : i64, scratch_operands = 0 : i64, tpu.core_type = #tpu.core_type<tc>, window_params = [{transform_indices = @transform_0, window_bounds = array<i64: 1, 8, 32>}, {transform_indices = @transform_1, window_bounds = array<i64: 1, 8, 32>}, {transform_indices = @transform_2, window_bounds = array<i64: 1, 8, 32>}, {transform_indices = @transform_3, window_bounds = array<i64: 1, 8, 8>}, {pipeline_mode = #tpu.pipeline_mode<synchronous>, transform_indices = @transform_4, window_bounds = array<i64: 32, 32>}, {pipeline_mode = #tpu.pipeline_mode<synchronous>, transform_indices = @transform_5, window_bounds = array<i64: 1, 32>}, {pipeline_mode = #tpu.pipeline_mode<synchronous>, transform_indices = @transform_6, window_bounds = array<i64: 32, 32>}, {pipeline_mode = #tpu.pipeline_mode<synchronous>, transform_indices = @transform_7, window_bounds = array<i64: 1, 32>}, {pipeline_mode = #tpu.pipeline_mode<synchronous>, transform_indices = @transform_8, window_bounds = array<i64: 32, 32>}, {pipeline_mode = #tpu.pipeline_mode<synchronous>, transform_indices = @transform_9, window_bounds = array<i64: 1, 32>}, {pipeline_mode = #tpu.pipeline_mode<synchronous>, transform_indices = @transform_10, window_bounds = array<i64: 32, 32>}, {pipeline_mode = #tpu.pipeline_mode<synchronous>, transform_indices = @transform_11, window_bounds = array<i64: 1, 32>}, {transform_indices = @transform_12, window_bounds = array<i64: 1, 8, 32>}]} {
    %c0 = arith.constant 0 : index
    %c0_0 = arith.constant 0 : index
    %c0_1 = arith.constant 0 : index
    %0 = vector.load %arg1[%c0, %c0_0, %c0_1] : memref<1x8x32xf32, #tpu.memory_space<vmem>>, vector<1x8x32xf32>
    %1 = vector.shape_cast %0 : vector<1x8x32xf32> to vector<8x32xf32>
    %c0_2 = arith.constant 0 : index
    %c0_3 = arith.constant 0 : index
    %c0_4 = arith.constant 0 : index
    %2 = vector.load %arg2[%c0_2, %c0_3, %c0_4] : memref<1x8x32xf32, #tpu.memory_space<vmem>>, vector<1x8x32xf32>
    %3 = vector.shape_cast %2 : vector<1x8x32xf32> to vector<8x32xf32>
    %c0_5 = arith.constant 0 : index
    %c0_6 = arith.constant 0 : index
    %c0_7 = arith.constant 0 : index
    %4 = vector.load %arg3[%c0_5, %c0_6, %c0_7] : memref<1x8x32xf32, #tpu.memory_space<vmem>>, vector<1x8x32xf32>
    %5 = vector.shape_cast %4 : vector<1x8x32xf32> to vector<8x32xf32>
    %c0_8 = arith.constant 0 : index
    %c0_9 = arith.constant 0 : index
    %6 = vector.load %arg5[%c0_8, %c0_9] : memref<32x32xf32, #tpu.memory_space<vmem>>, vector<32x32xf32>
    %cst = arith.constant dense<0.000000e+00> : vector<8x32xf32>
    %7 = tpu.matmul %1, %6, %cst {dimension_numbers = #tpu.dot_dimension_numbers<[1], [0], [0], [1], [0, 0, 1, 1], [], []>} : vector<8x32xf32>, vector<32x32xf32>, vector<8x32xf32> -> vector<8x32xf32>
    %c0_10 = arith.constant 0 : index
    %c0_11 = arith.constant 0 : index
    %8 = vector.load %arg6[%c0_10, %c0_11] : memref<1x32xf32, #tpu.memory_space<vmem>>, vector<1x32xf32>
    %9 = vector.broadcast %8 : vector<1x32xf32> to vector<8x32xf32>
    %10 = arith.addf %7, %9 : vector<8x32xf32>
    %cst_12 = arith.constant 0.353553385 : f32
    %11 = vector.broadcast %cst_12 : f32 to vector<8x32xf32>
    %12 = arith.mulf %10, %11 : vector<8x32xf32>
    %13 = vector.shape_cast %12 : vector<8x32xf32> to vector<1x8x32xf32>
    %c0_13 = arith.constant 0 : index
    %c0_14 = arith.constant 0 : index
    %14 = vector.load %arg7[%c0_13, %c0_14] : memref<32x32xf32, #tpu.memory_space<vmem>>, vector<32x32xf32>
    %cst_15 = arith.constant dense<0.000000e+00> : vector<8x32xf32>
    %15 = tpu.matmul %3, %14, %cst_15 {dimension_numbers = #tpu.dot_dimension_numbers<[1], [0], [0], [1], [0, 0, 1, 1], [], []>} : vector<8x32xf32>, vector<32x32xf32>, vector<8x32xf32> -> vector<8x32xf32>
    %c0_16 = arith.constant 0 : index
    %c0_17 = arith.constant 0 : index
    %16 = vector.load %arg8[%c0_16, %c0_17] : memref<1x32xf32, #tpu.memory_space<vmem>>, vector<1x32xf32>
    %17 = vector.broadcast %16 : vector<1x32xf32> to vector<8x32xf32>
    %18 = arith.addf %15, %17 : vector<8x32xf32>
    %19 = vector.shape_cast %18 : vector<8x32xf32> to vector<1x8x32xf32>
    %c0_18 = arith.constant 0 : index
    %c0_19 = arith.constant 0 : index
    %20 = vector.load %arg9[%c0_18, %c0_19] : memref<32x32xf32, #tpu.memory_space<vmem>>, vector<32x32xf32>
    %cst_20 = arith.constant dense<0.000000e+00> : vector<8x32xf32>
    %21 = tpu.matmul %5, %20, %cst_20 {dimension_numbers = #tpu.dot_dimension_numbers<[1], [0], [0], [1], [0, 0, 1, 1], [], []>} : vector<8x32xf32>, vector<32x32xf32>, vector<8x32xf32> -> vector<8x32xf32>
    %c0_21 = arith.constant 0 : index
    %c0_22 = arith.constant 0 : index
    %22 = vector.load %arg10[%c0_21, %c0_22] : memref<1x32xf32, #tpu.memory_space<vmem>>, vector<1x32xf32>
    %23 = vector.broadcast %22 : vector<1x32xf32> to vector<8x32xf32>
    %24 = arith.addf %21, %23 : vector<8x32xf32>
    %25 = vector.shape_cast %24 : vector<8x32xf32> to vector<1x8x32xf32>
    %c0_23 = arith.constant 0 : index
    %c0_24 = arith.constant 0 : index
    %c0_25 = arith.constant 0 : index
    %26 = vector.load %arg4[%c0_23, %c0_24, %c0_25] : memref<1x8x8xi8, #tpu.memory_space<vmem>>, vector<1x8x8xi8>
    %c0_i8 = arith.constant 0 : i8
    %27 = vector.broadcast %c0_i8 : i8 to vector<1x8x8xi8>
    %28 = arith.cmpi ne, %26, %27 : vector<1x8x8xi8>
    %29 = vector.extract_strided_slice %13 {offsets = [0, 0, 0], sizes = [1, 8, 8], strides = [1, 1, 1]} : vector<1x8x32xf32> to vector<1x8x8xf32>
    %30 = vector.extract_strided_slice %19 {offsets = [0, 0, 0], sizes = [1, 8, 8], strides = [1, 1, 1]} : vector<1x8x32xf32> to vector<1x8x8xf32>
    %31 = vector.extract_strided_slice %25 {offsets = [0, 0, 0], sizes = [1, 8, 8], strides = [1, 1, 1]} : vector<1x8x32xf32> to vector<1x8x8xf32>
    "tpu.trace_start"() <{level = 10 : i32, message = "bqd,bkd->bqk"}> : () -> ()
    %cst_26 = arith.constant dense<0.000000e+00> : vector<1x8x8xf32>
    %32 = tpu.matmul %29, %30, %cst_26 {dimension_numbers = #tpu.dot_dimension_numbers<[2], [2], [1], [1], [0, 0, 0, 1, 1, 1], [0], [0]>} : vector<1x8x8xf32>, vector<1x8x8xf32>, vector<1x8x8xf32> -> vector<1x8x8xf32>
    %cst_27 = arith.constant 3.275200e+04 : f32
    "tpu.trace_stop"() : () -> ()
    %33 = vector.broadcast %cst_27 : f32 to vector<1x8x8xf32>
    %34 = arith.select %28, %33, %32 : vector<1x8x8xi1>, vector<1x8x8xf32>
    %cst_28 = arith.constant dense<0xFF800000> : vector<1x8xf32>
    %35 = vector.multi_reduction <maximumf>, %34, %cst_28 [2] : vector<1x8x8xf32> to vector<1x8xf32>
    %36 = vector.shape_cast %35 : vector<1x8xf32> to vector<1x8x1xf32>
    %37 = vector.broadcast %36 : vector<1x8x1xf32> to vector<1x8x8xf32>
    %38 = arith.subf %34, %37 : vector<1x8x8xf32>
    %39 = math.exp %38 : vector<1x8x8xf32>
    %cst_29 = arith.constant dense<0.000000e+00> : vector<1x8xf32>
    %40 = vector.multi_reduction <add>, %39, %cst_29 [2] : vector<1x8x8xf32> to vector<1x8xf32>
    %41 = vector.shape_cast %40 : vector<1x8xf32> to vector<1x8x1xf32>
    %42 = tpu.reciprocal %41 {approx = true} : vector<1x8x1xf32> -> vector<1x8x1xf32>
    %43 = vector.broadcast %42 : vector<1x8x1xf32> to vector<1x8x8xf32>
    %44 = arith.mulf %39, %43 : vector<1x8x8xf32>
    "tpu.trace_start"() <{level = 10 : i32, message = "bqk,bkd->bqd"}> : () -> ()
    %cst_30 = arith.constant dense<0.000000e+00> : vector<1x8x8xf32>
    %45 = tpu.matmul %44, %31, %cst_30 {dimension_numbers = #tpu.dot_dimension_numbers<[2], [1], [1], [2], [0, 0, 0, 1, 1, 2], [0], [0]>} : vector<1x8x8xf32>, vector<1x8x8xf32>, vector<1x8x8xf32> -> vector<1x8x8xf32>
    "tpu.trace_stop"() : () -> ()
    %46 = vector.shape_cast %45 : vector<1x8x8xf32> to vector<8x8xf32>
    %c0_31 = arith.constant 0 : index
    %c0_32 = arith.constant 0 : index
    %47 = vector.load %arg11[%c0_31, %c0_32] : memref<32x32xf32, #tpu.memory_space<vmem>>, vector<8x32xf32>
    %cst_33 = arith.constant dense<0.000000e+00> : vector<8x32xf32>
    %48 = tpu.matmul %46, %47, %cst_33 {dimension_numbers = #tpu.dot_dimension_numbers<[1], [0], [0], [1], [0, 0, 1, 1], [], []>} : vector<8x8xf32>, vector<8x32xf32>, vector<8x32xf32> -> vector<8x32xf32>
    %49 = vector.extract_strided_slice %13 {offsets = [0, 0, 8], sizes = [1, 8, 8], strides = [1, 1, 1]} : vector<1x8x32xf32> to vector<1x8x8xf32>
    %50 = vector.extract_strided_slice %19 {offsets = [0, 0, 8], sizes = [1, 8, 8], strides = [1, 1, 1]} : vector<1x8x32xf32> to vector<1x8x8xf32>
    %51 = vector.extract_strided_slice %25 {offsets = [0, 0, 8], sizes = [1, 8, 8], strides = [1, 1, 1]} : vector<1x8x32xf32> to vector<1x8x8xf32>
    "tpu.trace_start"() <{level = 10 : i32, message = "bqd,bkd->bqk"}> : () -> ()
    %cst_34 = arith.constant dense<0.000000e+00> : vector<1x8x8xf32>
    %52 = tpu.matmul %49, %50, %cst_34 {dimension_numbers = #tpu.dot_dimension_numbers<[2], [2], [1], [1], [0, 0, 0, 1, 1, 1], [0], [0]>} : vector<1x8x8xf32>, vector<1x8x8xf32>, vector<1x8x8xf32> -> vector<1x8x8xf32>
    %cst_35 = arith.constant 3.275200e+04 : f32
    "tpu.trace_stop"() : () -> ()
    %53 = vector.broadcast %cst_35 : f32 to vector<1x8x8xf32>
    %54 = arith.select %28, %53, %52 : vector<1x8x8xi1>, vector<1x8x8xf32>
    %cst_36 = arith.constant dense<0xFF800000> : vector<1x8xf32>
    %55 = vector.multi_reduction <maximumf>, %54, %cst_36 [2] : vector<1x8x8xf32> to vector<1x8xf32>
    %56 = vector.shape_cast %55 : vector<1x8xf32> to vector<1x8x1xf32>
    %57 = vector.broadcast %56 : vector<1x8x1xf32> to vector<1x8x8xf32>
    %58 = arith.subf %54, %57 : vector<1x8x8xf32>
    %59 = math.exp %58 : vector<1x8x8xf32>
    %cst_37 = arith.constant dense<0.000000e+00> : vector<1x8xf32>
    %60 = vector.multi_reduction <add>, %59, %cst_37 [2] : vector<1x8x8xf32> to vector<1x8xf32>
    %61 = vector.shape_cast %60 : vector<1x8xf32> to vector<1x8x1xf32>
    %62 = tpu.reciprocal %61 {approx = true} : vector<1x8x1xf32> -> vector<1x8x1xf32>
    %63 = vector.broadcast %62 : vector<1x8x1xf32> to vector<1x8x8xf32>
    %64 = arith.mulf %59, %63 : vector<1x8x8xf32>
    "tpu.trace_start"() <{level = 10 : i32, message = "bqk,bkd->bqd"}> : () -> ()
    %cst_38 = arith.constant dense<0.000000e+00> : vector<1x8x8xf32>
    %65 = tpu.matmul %64, %51, %cst_38 {dimension_numbers = #tpu.dot_dimension_numbers<[2], [1], [1], [2], [0, 0, 0, 1, 1, 2], [0], [0]>} : vector<1x8x8xf32>, vector<1x8x8xf32>, vector<1x8x8xf32> -> vector<1x8x8xf32>
    "tpu.trace_stop"() : () -> ()
    %66 = vector.shape_cast %65 : vector<1x8x8xf32> to vector<8x8xf32>
    %c8 = arith.constant 8 : index
    %c0_39 = arith.constant 0 : index
    %67 = vector.load %arg11[%c8, %c0_39] : memref<32x32xf32, #tpu.memory_space<vmem>>, vector<8x32xf32>
    %cst_40 = arith.constant dense<0.000000e+00> : vector<8x32xf32>
    %68 = tpu.matmul %66, %67, %cst_40 {dimension_numbers = #tpu.dot_dimension_numbers<[1], [0], [0], [1], [0, 0, 1, 1], [], []>} : vector<8x8xf32>, vector<8x32xf32>, vector<8x32xf32> -> vector<8x32xf32>
    %69 = arith.addf %48, %68 : vector<8x32xf32>
    %70 = vector.extract_strided_slice %13 {offsets = [0, 0, 16], sizes = [1, 8, 8], strides = [1, 1, 1]} : vector<1x8x32xf32> to vector<1x8x8xf32>
    %71 = vector.extract_strided_slice %19 {offsets = [0, 0, 16], sizes = [1, 8, 8], strides = [1, 1, 1]} : vector<1x8x32xf32> to vector<1x8x8xf32>
    %72 = vector.extract_strided_slice %25 {offsets = [0, 0, 16], sizes = [1, 8, 8], strides = [1, 1, 1]} : vector<1x8x32xf32> to vector<1x8x8xf32>
    "tpu.trace_start"() <{level = 10 : i32, message = "bqd,bkd->bqk"}> : () -> ()
    %cst_41 = arith.constant dense<0.000000e+00> : vector<1x8x8xf32>
    %73 = tpu.matmul %70, %71, %cst_41 {dimension_numbers = #tpu.dot_dimension_numbers<[2], [2], [1], [1], [0, 0, 0, 1, 1, 1], [0], [0]>} : vector<1x8x8xf32>, vector<1x8x8xf32>, vector<1x8x8xf32> -> vector<1x8x8xf32>
    %cst_42 = arith.constant 3.275200e+04 : f32
    "tpu.trace_stop"() : () -> ()
    %74 = vector.broadcast %cst_42 : f32 to vector<1x8x8xf32>
    %75 = arith.select %28, %74, %73 : vector<1x8x8xi1>, vector<1x8x8xf32>
    %cst_43 = arith.constant dense<0xFF800000> : vector<1x8xf32>
    %76 = vector.multi_reduction <maximumf>, %75, %cst_43 [2] : vector<1x8x8xf32> to vector<1x8xf32>
    %77 = vector.shape_cast %76 : vector<1x8xf32> to vector<1x8x1xf32>
    %78 = vector.broadcast %77 : vector<1x8x1xf32> to vector<1x8x8xf32>
    %79 = arith.subf %75, %78 : vector<1x8x8xf32>
    %80 = math.exp %79 : vector<1x8x8xf32>
    %cst_44 = arith.constant dense<0.000000e+00> : vector<1x8xf32>
    %81 = vector.multi_reduction <add>, %80, %cst_44 [2] : vector<1x8x8xf32> to vector<1x8xf32>
    %82 = vector.shape_cast %81 : vector<1x8xf32> to vector<1x8x1xf32>
    %83 = tpu.reciprocal %82 {approx = true} : vector<1x8x1xf32> -> vector<1x8x1xf32>
    %84 = vector.broadcast %83 : vector<1x8x1xf32> to vector<1x8x8xf32>
    %85 = arith.mulf %80, %84 : vector<1x8x8xf32>
    "tpu.trace_start"() <{level = 10 : i32, message = "bqk,bkd->bqd"}> : () -> ()
    %cst_45 = arith.constant dense<0.000000e+00> : vector<1x8x8xf32>
    %86 = tpu.matmul %85, %72, %cst_45 {dimension_numbers = #tpu.dot_dimension_numbers<[2], [1], [1], [2], [0, 0, 0, 1, 1, 2], [0], [0]>} : vector<1x8x8xf32>, vector<1x8x8xf32>, vector<1x8x8xf32> -> vector<1x8x8xf32>
    "tpu.trace_stop"() : () -> ()
    %87 = vector.shape_cast %86 : vector<1x8x8xf32> to vector<8x8xf32>
    %c16 = arith.constant 16 : index
    %c0_46 = arith.constant 0 : index
    %88 = vector.load %arg11[%c16, %c0_46] : memref<32x32xf32, #tpu.memory_space<vmem>>, vector<8x32xf32>
    %cst_47 = arith.constant dense<0.000000e+00> : vector<8x32xf32>
    %89 = tpu.matmul %87, %88, %cst_47 {dimension_numbers = #tpu.dot_dimension_numbers<[1], [0], [0], [1], [0, 0, 1, 1], [], []>} : vector<8x8xf32>, vector<8x32xf32>, vector<8x32xf32> -> vector<8x32xf32>
    %90 = arith.addf %69, %89 : vector<8x32xf32>
    %91 = vector.extract_strided_slice %13 {offsets = [0, 0, 24], sizes = [1, 8, 8], strides = [1, 1, 1]} : vector<1x8x32xf32> to vector<1x8x8xf32>
    %92 = vector.extract_strided_slice %19 {offsets = [0, 0, 24], sizes = [1, 8, 8], strides = [1, 1, 1]} : vector<1x8x32xf32> to vector<1x8x8xf32>
    %93 = vector.extract_strided_slice %25 {offsets = [0, 0, 24], sizes = [1, 8, 8], strides = [1, 1, 1]} : vector<1x8x32xf32> to vector<1x8x8xf32>
    "tpu.trace_start"() <{level = 10 : i32, message = "bqd,bkd->bqk"}> : () -> ()
    %cst_48 = arith.constant dense<0.000000e+00> : vector<1x8x8xf32>
    %94 = tpu.matmul %91, %92, %cst_48 {dimension_numbers = #tpu.dot_dimension_numbers<[2], [2], [1], [1], [0, 0, 0, 1, 1, 1], [0], [0]>} : vector<1x8x8xf32>, vector<1x8x8xf32>, vector<1x8x8xf32> -> vector<1x8x8xf32>
    %cst_49 = arith.constant 3.275200e+04 : f32
    "tpu.trace_stop"() : () -> ()
    %95 = vector.broadcast %cst_49 : f32 to vector<1x8x8xf32>
    %96 = arith.select %28, %95, %94 : vector<1x8x8xi1>, vector<1x8x8xf32>
    %cst_50 = arith.constant dense<0xFF800000> : vector<1x8xf32>
    %97 = vector.multi_reduction <maximumf>, %96, %cst_50 [2] : vector<1x8x8xf32> to vector<1x8xf32>
    %98 = vector.shape_cast %97 : vector<1x8xf32> to vector<1x8x1xf32>
    %99 = vector.broadcast %98 : vector<1x8x1xf32> to vector<1x8x8xf32>
    %100 = arith.subf %96, %99 : vector<1x8x8xf32>
    %101 = math.exp %100 : vector<1x8x8xf32>
    %cst_51 = arith.constant dense<0.000000e+00> : vector<1x8xf32>
    %102 = vector.multi_reduction <add>, %101, %cst_51 [2] : vector<1x8x8xf32> to vector<1x8xf32>
    %103 = vector.shape_cast %102 : vector<1x8xf32> to vector<1x8x1xf32>
    %104 = tpu.reciprocal %103 {approx = true} : vector<1x8x1xf32> -> vector<1x8x1xf32>
    %105 = vector.broadcast %104 : vector<1x8x1xf32> to vector<1x8x8xf32>
    %106 = arith.mulf %101, %105 : vector<1x8x8xf32>
    "tpu.trace_start"() <{level = 10 : i32, message = "bqk,bkd->bqd"}> : () -> ()
    %cst_52 = arith.constant dense<0.000000e+00> : vector<1x8x8xf32>
    %107 = tpu.matmul %106, %93, %cst_52 {dimension_numbers = #tpu.dot_dimension_numbers<[2], [1], [1], [2], [0, 0, 0, 1, 1, 2], [0], [0]>} : vector<1x8x8xf32>, vector<1x8x8xf32>, vector<1x8x8xf32> -> vector<1x8x8xf32>
    "tpu.trace_stop"() : () -> ()
    %108 = vector.shape_cast %107 : vector<1x8x8xf32> to vector<8x8xf32>
    %c24 = arith.constant 24 : index
    %c0_53 = arith.constant 0 : index
    %109 = vector.load %arg11[%c24, %c0_53] : memref<32x32xf32, #tpu.memory_space<vmem>>, vector<8x32xf32>
    %cst_54 = arith.constant dense<0.000000e+00> : vector<8x32xf32>
    %110 = tpu.matmul %108, %109, %cst_54 {dimension_numbers = #tpu.dot_dimension_numbers<[1], [0], [0], [1], [0, 0, 1, 1], [], []>} : vector<8x8xf32>, vector<8x32xf32>, vector<8x32xf32> -> vector<8x32xf32>
    %111 = arith.addf %90, %110 : vector<8x32xf32>
    %c0_55 = arith.constant 0 : index
    %c0_56 = arith.constant 0 : index
    %112 = vector.load %arg12[%c0_55, %c0_56] : memref<1x32xf32, #tpu.memory_space<vmem>>, vector<1x32xf32>
    %113 = vector.broadcast %112 : vector<1x32xf32> to vector<8x32xf32>
    %114 = arith.addf %111, %113 : vector<8x32xf32>
    %115 = vector.shape_cast %114 : vector<8x32xf32> to vector<1x8x32xf32>
    %c0_57 = arith.constant 0 : index
    %c0_58 = arith.constant 0 : index
    %c0_59 = arith.constant 0 : index
    %116 = vector.load %arg13[%c0_57, %c0_58, %c0_59] : memref<1x8x32xf32, #tpu.memory_space<vmem>>, vector<1x8x32xf32>
    tpu.vector_store %arg13[%c0_57, %c0_58, %c0_59], %115 {strides = array<i32>} : memref<1x8x32xf32, #tpu.memory_space<vmem>>, vector<1x8x32xf32>,
    return
  }
  func.func @transform_0(%arg0: i32) -> (i32, i32, i32) {
    %c0_i32 = arith.constant 0 : i32
    %c0_i32_0 = arith.constant 0 : i32
    %c0_i32_1 = arith.constant 0 : i32
    return %arg0, %c0_i32, %c0_i32_0 : i32, i32, i32
  }
  func.func @transform_1(%arg0: i32) -> (i32, i32, i32) {
    %c0_i32 = arith.constant 0 : i32
    %c0_i32_0 = arith.constant 0 : i32
    %c0_i32_1 = arith.constant 0 : i32
    return %arg0, %c0_i32, %c0_i32_0 : i32, i32, i32
  }
  func.func @transform_2(%arg0: i32) -> (i32, i32, i32) {
    %c0_i32 = arith.constant 0 : i32
    %c0_i32_0 = arith.constant 0 : i32
    %c0_i32_1 = arith.constant 0 : i32
    return %arg0, %c0_i32, %c0_i32_0 : i32, i32, i32
  }
  func.func @transform_3(%arg0: i32) -> (i32, i32, i32) {
    %c0_i32 = arith.constant 0 : i32
    %c0_i32_0 = arith.constant 0 : i32
    %c0_i32_1 = arith.constant 0 : i32
    return %arg0, %c0_i32, %c0_i32_0 : i32, i32, i32
  }
  func.func @transform_4(%arg0: i32) -> (i32, i32) {
    %c0_i32 = arith.constant 0 : i32
    %c0_i32_0 = arith.constant 0 : i32
    %c0_i32_1 = arith.constant 0 : i32
    return %c0_i32, %c0_i32_0 : i32, i32
  }
  func.func @transform_5(%arg0: i32) -> (i32, i32) {
    %c0_i32 = arith.constant 0 : i32
    %c0_i32_0 = arith.constant 0 : i32
    %c0_i32_1 = arith.constant 0 : i32
    return %c0_i32, %c0_i32_0 : i32, i32
  }
  func.func @transform_6(%arg0: i32) -> (i32, i32) {
    %c0_i32 = arith.constant 0 : i32
    %c0_i32_0 = arith.constant 0 : i32
    %c0_i32_1 = arith.constant 0 : i32
    return %c0_i32, %c0_i32_0 : i32, i32
  }
  func.func @transform_7(%arg0: i32) -> (i32, i32) {
    %c0_i32 = arith.constant 0 : i32
    %c0_i32_0 = arith.constant 0 : i32
    %c0_i32_1 = arith.constant 0 : i32
    return %c0_i32, %c0_i32_0 : i32, i32
  }
  func.func @transform_8(%arg0: i32) -> (i32, i32) {
    %c0_i32 = arith.constant 0 : i32
    %c0_i32_0 = arith.constant 0 : i32
    %c0_i32_1 = arith.constant 0 : i32
    return %c0_i32, %c0_i32_0 : i32, i32
  }
  func.func @transform_9(%arg0: i32) -> (i32, i32) {
    %c0_i32 = arith.constant 0 : i32
    %c0_i32_0 = arith.constant 0 : i32
    %c0_i32_1 = arith.constant 0 : i32
    return %c0_i32, %c0_i32_0 : i32, i32
  }
  func.func @transform_10(%arg0: i32) -> (i32, i32) {
    %c0_i32 = arith.constant 0 : i32
    %c0_i32_0 = arith.constant 0 : i32
    %c0_i32_1 = arith.constant 0 : i32
    return %c0_i32, %c0_i32_0 : i32, i32
  }
  func.func @transform_11(%arg0: i32) -> (i32, i32) {
    %c0_i32 = arith.constant 0 : i32
    %c0_i32_0 = arith.constant 0 : i32
    %c0_i32_1 = arith.constant 0 : i32
    return %c0_i32, %c0_i32_0 : i32, i32
  }
  func.func @transform_12(%arg0: i32) -> (i32, i32, i32) {
    %c0_i32 = arith.constant 0 : i32
    %c0_i32_0 = arith.constant 0 : i32
    %c0_i32_1 = arith.constant 0 : i32
    return %arg0, %c0_i32, %c0_i32_0 : i32, i32, i32
  }
}

module attributes {stable_mosaic.version = 11 : i64} {
  func.func @_mha_kernel(%arg0: i32, %arg1: memref<1x8x32xf32, #tpu.memory_space<vmem>>, %arg2: memref<1x8x32xf32, #tpu.memory_space<vmem>>, %arg3: memref<1x8x32xf32, #tpu.memory_space<vmem>>, %arg4: memref<1x8x8xi8, #tpu.memory_space<vmem>>, %arg5: memref<32x32xf32, #tpu.memory_space<vmem>>, %arg6: memref<1x32xf32, #tpu.memory_space<vmem>>, %arg7: memref<32x32xf32, #tpu.memory_space<vmem>>, %arg8: memref<1x32xf32, #tpu.memory_space<vmem>>, %arg9: memref<32x32xf32, #tpu.memory_space<vmem>>, %arg10: memref<1x32xf32, #tpu.memory_space<vmem>>, %arg11: memref<32x32xf32, #tpu.memory_space<vmem>>, %arg12: memref<1x32xf32, #tpu.memory_space<vmem>>, %arg13: memref<1x8x32xf32, #tpu.memory_space<vmem>>) attributes {dimension_semantics = [#tpu.dimension_semantics<parallel>], iteration_bounds = array<i64: 2>, scalar_prefetch = 0 : i64, scratch_operands = 0 : i64, tpu.core_type = #tpu.core_type<tc>, window_params = [{transform_indices = @transform_0, window_bounds = array<i64: 1, 8, 32>}, {transform_indices = @transform_1, window_bounds = array<i64: 1, 8, 32>}, {transform_indices = @transform_2, window_bounds = array<i64: 1, 8, 32>}, {transform_indices = @transform_3, window_bounds = array<i64: 1, 8, 8>}, {pipeline_mode = #tpu.pipeline_mode<synchronous>, transform_indices = @transform_4, window_bounds = array<i64: 32, 32>}, {pipeline_mode = #tpu.pipeline_mode<synchronous>, transform_indices = @transform_5, window_bounds = array<i64: 1, 32>}, {pipeline_mode = #tpu.pipeline_mode<synchronous>, transform_indices = @transform_6, window_bounds = array<i64: 32, 32>}, {pipeline_mode = #tpu.pipeline_mode<synchronous>, transform_indices = @transform_7, window_bounds = array<i64: 1, 32>}, {pipeline_mode = #tpu.pipeline_mode<synchronous>, transform_indices = @transform_8, window_bounds = array<i64: 32, 32>}, {pipeline_mode = #tpu.pipeline_mode<synchronous>, transform_indices = @transform_9, window_bounds = array<i64: 1, 32>}, {pipeline_mode = #tpu.pipeline_mode<synchronous>, transform_indices = @transform_10, window_bounds = array<i64: 32, 32>}, {pipeline_mode = #tpu.pipeline_mode<synchronous>, transform_indices = @transform_11, window_bounds = array<i64: 1, 32>}, {transform_indices = @transform_12, window_bounds = array<i64: 1, 8, 32>}]} {
    %c0 = arith.constant 0 : index
    %c0_0 = arith.constant 0 : index
    %c0_1 = arith.constant 0 : index
    %0 = vector.load %arg1[%c0, %c0_0, %c0_1] : memref<1x8x32xf32, #tpu.memory_space<vmem>>, vector<1x8x32xf32>
    %1 = vector.shape_cast %0 : vector<1x8x32xf32> to vector<8x32xf32>
    %c0_2 = arith.constant 0 : index
    %c0_3 = arith.constant 0 : index
    %c0_4 = arith.constant 0 : index
    %2 = vector.load %arg2[%c0_2, %c0_3, %c0_4] : memref<1x8x32xf32, #tpu.memory_space<vmem>>, vector<1x8x32xf32>
    %3 = vector.shape_cast %2 : vector<1x8x32xf32> to vector<8x32xf32>
    %c0_5 = arith.constant 0 : index
    %c0_6 = arith.constant 0 : index
    %c0_7 = arith.constant 0 : index
    %4 = vector.load %arg3[%c0_5, %c0_6, %c0_7] : memref<1x8x32xf32, #tpu.memory_space<vmem>>, vector<1x8x32xf32>
    %5 = vector.shape_cast %4 : vector<1x8x32xf32> to vector<8x32xf32>
    %c0_8 = arith.constant 0 : index
    %c0_9 = arith.constant 0 : index
    %6 = vector.load %arg5[%c0_8, %c0_9] : memref<32x32xf32, #tpu.memory_space<vmem>>, vector<32x32xf32>
    %cst = arith.constant dense<0.000000e+00> : vector<8x32xf32>
    %7 = tpu.matmul %1, %6, %cst {dimension_numbers = #tpu.dot_dimension_numbers<[1], [0], [0], [1], [0, 0, 1, 1], [], []>} : vector<8x32xf32>, vector<32x32xf32>, vector<8x32xf32> -> vector<8x32xf32>
    %c0_10 = arith.constant 0 : index
    %c0_11 = arith.constant 0 : index
    %8 = vector.load %arg6[%c0_10, %c0_11] : memref<1x32xf32, #tpu.memory_space<vmem>>, vector<1x32xf32>
    %9 = vector.broadcast %8 : vector<1x32xf32> to vector<8x32xf32>
    %10 = arith.addf %7, %9 : vector<8x32xf32>
    %cst_12 = arith.constant 0.353553385 : f32
    %11 = vector.broadcast %cst_12 : f32 to vector<8x32xf32>
    %12 = arith.mulf %10, %11 : vector<8x32xf32>
    %13 = vector.shape_cast %12 : vector<8x32xf32> to vector<1x8x32xf32>
    %c0_13 = arith.constant 0 : index
    %c0_14 = arith.constant 0 : index
    %14 = vector.load %arg7[%c0_13, %c0_14] : memref<32x32xf32, #tpu.memory_space<vmem>>, vector<32x32xf32>
    %cst_15 = arith.constant dense<0.000000e+00> : vector<8x32xf32>
    %15 = tpu.matmul %3, %14, %cst_15 {dimension_numbers = #tpu.dot_dimension_numbers<[1], [0], [0], [1], [0, 0, 1, 1], [], []>} : vector<8x32xf32>, vector<32x32xf32>, vector<8x32xf32> -> vector<8x32xf32>
    %c0_16 = arith.constant 0 : index
    %c0_17 = arith.constant 0 : index
    %16 = vector.load %arg8[%c0_16, %c0_17] : memref<1x32xf32, #tpu.memory_space<vmem>>, vector<1x32xf32>
    %17 = vector.broadcast %16 : vector<1x32xf32> to vector<8x32xf32>
    %18 = arith.addf %15, %17 : vector<8x32xf32>
    %19 = vector.shape_cast %18 : vector<8x32xf32> to vector<1x8x32xf32>
    %c0_18 = arith.constant 0 : index
    %c0_19 = arith.constant 0 : index
    %20 = vector.load %arg9[%c0_18, %c0_19] : memref<32x32xf32, #tpu.memory_space<vmem>>, vector<32x32xf32>
    %cst_20 = arith.constant dense<0.000000e+00> : vector<8x32xf32>
    %21 = tpu.matmul %5, %20, %cst_20 {dimension_numbers = #tpu.dot_dimension_numbers<[1], [0], [0], [1], [0, 0, 1, 1], [], []>} : vector<8x32xf32>, vector<32x32xf32>, vector<8x32xf32> -> vector<8x32xf32>
    %c0_21 = arith.constant 0 : index
    %c0_22 = arith.constant 0 : index
    %22 = vector.load %arg10[%c0_21, %c0_22] : memref<1x32xf32, #tpu.memory_space<vmem>>, vector<1x32xf32>
    %23 = vector.broadcast %22 : vector<1x32xf32> to vector<8x32xf32>
    %24 = arith.addf %21, %23 : vector<8x32xf32>
    %25 = vector.shape_cast %24 : vector<8x32xf32> to vector<1x8x32xf32>
    %c0_23 = arith.constant 0 : index
    %c0_24 = arith.constant 0 : index
    %c0_25 = arith.constant 0 : index
    %26 = vector.load %arg4[%c0_23, %c0_24, %c0_25] : memref<1x8x8xi8, #tpu.memory_space<vmem>>, vector<1x8x8xi8>
    %c0_i8 = arith.constant 0 : i8
    %27 = vector.broadcast %c0_i8 : i8 to vector<1x8x8xi8>
    %28 = arith.cmpi ne, %26, %27 : vector<1x8x8xi8>
    %29 = vector.extract_strided_slice %13 {offsets = [0, 0, 0], sizes = [1, 8, 8], strides = [1, 1, 1]} : vector<1x8x32xf32> to vector<1x8x8xf32>
    %30 = vector.extract_strided_slice %19 {offsets = [0, 0, 0], sizes = [1, 8, 8], strides = [1, 1, 1]} : vector<1x8x32xf32> to vector<1x8x8xf32>
    %31 = vector.extract_strided_slice %25 {offsets = [0, 0, 0], sizes = [1, 8, 8], strides = [1, 1, 1]} : vector<1x8x32xf32> to vector<1x8x8xf32>
    "tpu.trace_start"() <{level = 10 : i32, message = "bqd,bkd->bqk"}> : () -> ()
    %cst_26 = arith.constant dense<0.000000e+00> : vector<1x8x8xf32>
    %32 = tpu.matmul %29, %30, %cst_26 {dimension_numbers = #tpu.dot_dimension_numbers<[2], [2], [1], [1], [0, 0, 0, 1, 1, 1], [0], [0]>} : vector<1x8x8xf32>, vector<1x8x8xf32>, vector<1x8x8xf32> -> vector<1x8x8xf32>
    %cst_27 = arith.constant 3.275200e+04 : f32
    "tpu.trace_stop"() : () -> ()
    %33 = vector.broadcast %cst_27 : f32 to vector<1x8x8xf32>
    %34 = arith.select %28, %33, %32 : vector<1x8x8xi1>, vector<1x8x8xf32>
    %cst_28 = arith.constant dense<0xFF800000> : vector<1x8xf32>
    %35 = vector.multi_reduction <maximumf>, %34, %cst_28 [2] : vector<1x8x8xf32> to vector<1x8xf32>
    %36 = vector.shape_cast %35 : vector<1x8xf32> to vector<1x8x1xf32>
    %37 = vector.broadcast %36 : vector<1x8x1xf32> to vector<1x8x8xf32>
    %38 = arith.subf %34, %37 : vector<1x8x8xf32>
    %39 = math.exp %38 : vector<1x8x8xf32>
    %cst_29 = arith.constant dense<0.000000e+00> : vector<1x8xf32>
    %40 = vector.multi_reduction <add>, %39, %cst_29 [2] : vector<1x8x8xf32> to vector<1x8xf32>
    %41 = vector.shape_cast %40 : vector<1x8xf32> to vector<1x8x1xf32>
    %42 = tpu.reciprocal %41 {approx = true} : vector<1x8x1xf32> -> vector<1x8x1xf32>
    %43 = vector.broadcast %42 : vector<1x8x1xf32> to vector<1x8x8xf32>
    %44 = arith.mulf %39, %43 : vector<1x8x8xf32>
    "tpu.trace_start"() <{level = 10 : i32, message = "bqk,bkd->bqd"}> : () -> ()
    %cst_30 = arith.constant dense<0.000000e+00> : vector<1x8x8xf32>
    %45 = tpu.matmul %44, %31, %cst_30 {dimension_numbers = #tpu.dot_dimension_numbers<[2], [1], [1], [2], [0, 0, 0, 1, 1, 2], [0], [0]>} : vector<1x8x8xf32>, vector<1x8x8xf32>, vector<1x8x8xf32> -> vector<1x8x8xf32>
    "tpu.trace_stop"() : () -> ()
    %46 = vector.shape_cast %45 : vector<1x8x8xf32> to vector<8x8xf32>
    %c0_31 = arith.constant 0 : index
    %c0_32 = arith.constant 0 : index
    %47 = vector.load %arg11[%c0_31, %c0_32] : memref<32x32xf32, #tpu.memory_space<vmem>>, vector<8x32xf32>
    %cst_33 = arith.constant dense<0.000000e+00> : vector<8x32xf32>
    %48 = tpu.matmul %46, %47, %cst_33 {dimension_numbers = #tpu.dot_dimension_numbers<[1], [0], [0], [1], [0, 0, 1, 1], [], []>} : vector<8x8xf32>, vector<8x32xf32>, vector<8x32xf32> -> vector<8x32xf32>
    %49 = vector.extract_strided_slice %13 {offsets = [0, 0, 8], sizes = [1, 8, 8], strides = [1, 1, 1]} : vector<1x8x32xf32> to vector<1x8x8xf32>
    %50 = vector.extract_strided_slice %19 {offsets = [0, 0, 8], sizes = [1, 8, 8], strides = [1, 1, 1]} : vector<1x8x32xf32> to vector<1x8x8xf32>
    %51 = vector.extract_strided_slice %25 {offsets = [0, 0, 8], sizes = [1, 8, 8], strides = [1, 1, 1]} : vector<1x8x32xf32> to vector<1x8x8xf32>
    "tpu.trace_start"() <{level = 10 : i32, message = "bqd,bkd->bqk"}> : () -> ()
    %cst_34 = arith.constant dense<0.000000e+00> : vector<1x8x8xf32>
    %52 = tpu.matmul %49, %50, %cst_34 {dimension_numbers = #tpu.dot_dimension_numbers<[2], [2], [1], [1], [0, 0, 0, 1, 1, 1], [0], [0]>} : vector<1x8x8xf32>, vector<1x8x8xf32>, vector<1x8x8xf32> -> vector<1x8x8xf32>
    %cst_35 = arith.constant 3.275200e+04 : f32
    "tpu.trace_stop"() : () -> ()
    %53 = vector.broadcast %cst_35 : f32 to vector<1x8x8xf32>
    %54 = arith.select %28, %53, %52 : vector<1x8x8xi1>, vector<1x8x8xf32>
    %cst_36 = arith.constant dense<0xFF800000> : vector<1x8xf32>
    %55 = vector.multi_reduction <maximumf>, %54, %cst_36 [2] : vector<1x8x8xf32> to vector<1x8xf32>
    %56 = vector.shape_cast %55 : vector<1x8xf32> to vector<1x8x1xf32>
    %57 = vector.broadcast %56 : vector<1x8x1xf32> to vector<1x8x8xf32>
    %58 = arith.subf %54, %57 : vector<1x8x8xf32>
    %59 = math.exp %58 : vector<1x8x8xf32>
    %cst_37 = arith.constant dense<0.000000e+00> : vector<1x8xf32>
    %60 = vector.multi_reduction <add>, %59, %cst_37 [2] : vector<1x8x8xf32> to vector<1x8xf32>
    %61 = vector.shape_cast %60 : vector<1x8xf32> to vector<1x8x1xf32>
    %62 = tpu.reciprocal %61 {approx = true} : vector<1x8x1xf32> -> vector<1x8x1xf32>
    %63 = vector.broadcast %62 : vector<1x8x1xf32> to vector<1x8x8xf32>
    %64 = arith.mulf %59, %63 : vector<1x8x8xf32>
    "tpu.trace_start"() <{level = 10 : i32, message = "bqk,bkd->bqd"}> : () -> ()
    %cst_38 = arith.constant dense<0.000000e+00> : vector<1x8x8xf32>
    %65 = tpu.matmul %64, %51, %cst_38 {dimension_numbers = #tpu.dot_dimension_numbers<[2], [1], [1], [2], [0, 0, 0, 1, 1, 2], [0], [0]>} : vector<1x8x8xf32>, vector<1x8x8xf32>, vector<1x8x8xf32> -> vector<1x8x8xf32>
    "tpu.trace_stop"() : () -> ()
    %66 = vector.shape_cast %65 : vector<1x8x8xf32> to vector<8x8xf32>
    %c8 = arith.constant 8 : index
    %c0_39 = arith.constant 0 : index
    %67 = vector.load %arg11[%c8, %c0_39] : memref<32x32xf32, #tpu.memory_space<vmem>>, vector<8x32xf32>
    %cst_40 = arith.constant dense<0.000000e+00> : vector<8x32xf32>
    %68 = tpu.matmul %66, %67, %cst_40 {dimension_numbers = #tpu.dot_dimension_numbers<[1], [0], [0], [1], [0, 0, 1, 1], [], []>} : vector<8x8xf32>, vector<8x32xf32>, vector<8x32xf32> -> vector<8x32xf32>
    %69 = arith.addf %48, %68 : vector<8x32xf32>
    %70 = vector.extract_strided_slice %13 {offsets = [0, 0, 16], sizes = [1, 8, 8], strides = [1, 1, 1]} : vector<1x8x32xf32> to vector<1x8x8xf32>
    %71 = vector.extract_strided_slice %19 {offsets = [0, 0, 16], sizes = [1, 8, 8], strides = [1, 1, 1]} : vector<1x8x32xf32> to vector<1x8x8xf32>
    %72 = vector.extract_strided_slice %25 {offsets = [0, 0, 16], sizes = [1, 8, 8], strides = [1, 1, 1]} : vector<1x8x32xf32> to vector<1x8x8xf32>
    "tpu.trace_start"() <{level = 10 : i32, message = "bqd,bkd->bqk"}> : () -> ()
    %cst_41 = arith.constant dense<0.000000e+00> : vector<1x8x8xf32>
    %73 = tpu.matmul %70, %71, %cst_41 {dimension_numbers = #tpu.dot_dimension_numbers<[2], [2], [1], [1], [0, 0, 0, 1, 1, 1], [0], [0]>} : vector<1x8x8xf32>, vector<1x8x8xf32>, vector<1x8x8xf32> -> vector<1x8x8xf32>
    %cst_42 = arith.constant 3.275200e+04 : f32
    "tpu.trace_stop"() : () -> ()
    %74 = vector.broadcast %cst_42 : f32 to vector<1x8x8xf32>
    %75 = arith.select %28, %74, %73 : vector<1x8x8xi1>, vector<1x8x8xf32>
    %cst_43 = arith.constant dense<0xFF800000> : vector<1x8xf32>
    %76 = vector.multi_reduction <maximumf>, %75, %cst_43 [2] : vector<1x8x8xf32> to vector<1x8xf32>
    %77 = vector.shape_cast %76 : vector<1x8xf32> to vector<1x8x1xf32>
    %78 = vector.broadcast %77 : vector<1x8x1xf32> to vector<1x8x8xf32>
    %79 = arith.subf %75, %78 : vector<1x8x8xf32>
    %80 = math.exp %79 : vector<1x8x8xf32>
    %cst_44 = arith.constant dense<0.000000e+00> : vector<1x8xf32>
    %81 = vector.multi_reduction <add>, %80, %cst_44 [2] : vector<1x8x8xf32> to vector<1x8xf32>
    %82 = vector.shape_cast %81 : vector<1x8xf32> to vector<1x8x1xf32>
    %83 = tpu.reciprocal %82 {approx = true} : vector<1x8x1xf32> -> vector<1x8x1xf32>
    %84 = vector.broadcast %83 : vector<1x8x1xf32> to vector<1x8x8xf32>
    %85 = arith.mulf %80, %84 : vector<1x8x8xf32>
    "tpu.trace_start"() <{level = 10 : i32, message = "bqk,bkd->bqd"}> : () -> ()
    %cst_45 = arith.constant dense<0.000000e+00> : vector<1x8x8xf32>
    %86 = tpu.matmul %85, %72, %cst_45 {dimension_numbers = #tpu.dot_dimension_numbers<[2], [1], [1], [2], [0, 0, 0, 1, 1, 2], [0], [0]>} : vector<1x8x8xf32>, vector<1x8x8xf32>, vector<1x8x8xf32> -> vector<1x8x8xf32>
    "tpu.trace_stop"() : () -> ()
    %87 = vector.shape_cast %86 : vector<1x8x8xf32> to vector<8x8xf32>
    %c16 = arith.constant 16 : index
    %c0_46 = arith.constant 0 : index
    %88 = vector.load %arg11[%c16, %c0_46] : memref<32x32xf32, #tpu.memory_space<vmem>>, vector<8x32xf32>
    %cst_47 = arith.constant dense<0.000000e+00> : vector<8x32xf32>
    %89 = tpu.matmul %87, %88, %cst_47 {dimension_numbers = #tpu.dot_dimension_numbers<[1], [0], [0], [1], [0, 0, 1, 1], [], []>} : vector<8x8xf32>, vector<8x32xf32>, vector<8x32xf32> -> vector<8x32xf32>
    %90 = arith.addf %69, %89 : vector<8x32xf32>
    %91 = vector.extract_strided_slice %13 {offsets = [0, 0, 24], sizes = [1, 8, 8], strides = [1, 1, 1]} : vector<1x8x32xf32> to vector<1x8x8xf32>
    %92 = vector.extract_strided_slice %19 {offsets = [0, 0, 24], sizes = [1, 8, 8], strides = [1, 1, 1]} : vector<1x8x32xf32> to vector<1x8x8xf32>
    %93 = vector.extract_strided_slice %25 {offsets = [0, 0, 24], sizes = [1, 8, 8], strides = [1, 1, 1]} : vector<1x8x32xf32> to vector<1x8x8xf32>
    "tpu.trace_start"() <{level = 10 : i32, message = "bqd,bkd->bqk"}> : () -> ()
    %cst_48 = arith.constant dense<0.000000e+00> : vector<1x8x8xf32>
    %94 = tpu.matmul %91, %92, %cst_48 {dimension_numbers = #tpu.dot_dimension_numbers<[2], [2], [1], [1], [0, 0, 0, 1, 1, 1], [0], [0]>} : vector<1x8x8xf32>, vector<1x8x8xf32>, vector<1x8x8xf32> -> vector<1x8x8xf32>
    %cst_49 = arith.constant 3.275200e+04 : f32
    "tpu.trace_stop"() : () -> ()
    %95 = vector.broadcast %cst_49 : f32 to vector<1x8x8xf32>
    %96 = arith.select %28, %95, %94 : vector<1x8x8xi1>, vector<1x8x8xf32>
    %cst_50 = arith.constant dense<0xFF800000> : vector<1x8xf32>
    %97 = vector.multi_reduction <maximumf>, %96, %cst_50 [2] : vector<1x8x8xf32> to vector<1x8xf32>
    %98 = vector.shape_cast %97 : vector<1x8xf32> to vector<1x8x1xf32>
    %99 = vector.broadcast %98 : vector<1x8x1xf32> to vector<1x8x8xf32>
    %100 = arith.subf %96, %99 : vector<1x8x8xf32>
    %101 = math.exp %100 : vector<1x8x8xf32>
    %cst_51 = arith.constant dense<0.000000e+00> : vector<1x8xf32>
    %102 = vector.multi_reduction <add>, %101, %cst_51 [2] : vector<1x8x8xf32> to vector<1x8xf32>
    %103 = vector.shape_cast %102 : vector<1x8xf32> to vector<1x8x1xf32>
    %104 = tpu.reciprocal %103 {approx = true} : vector<1x8x1xf32> -> vector<1x8x1xf32>
    %105 = vector.broadcast %104 : vector<1x8x1xf32> to vector<1x8x8xf32>
    %106 = arith.mulf %101, %105 : vector<1x8x8xf32>
    "tpu.trace_start"() <{level = 10 : i32, message = "bqk,bkd->bqd"}> : () -> ()
    %cst_52 = arith.constant dense<0.000000e+00> : vector<1x8x8xf32>
    %107 = tpu.matmul %106, %93, %cst_52 {dimension_numbers = #tpu.dot_dimension_numbers<[2], [1], [1], [2], [0, 0, 0, 1, 1, 2], [0], [0]>} : vector<1x8x8xf32>, vector<1x8x8xf32>, vector<1x8x8xf32> -> vector<1x8x8xf32>
    "tpu.trace_stop"() : () -> ()
    %108 = vector.shape_cast %107 : vector<1x8x8xf32> to vector<8x8xf32>
    %c24 = arith.constant 24 : index
    %c0_53 = arith.constant 0 : index
    %109 = vector.load %arg11[%c24, %c0_53] : memref<32x32xf32, #tpu.memory_space<vmem>>, vector<8x32xf32>
    %cst_54 = arith.constant dense<0.000000e+00> : vector<8x32xf32>
    %110 = tpu.matmul %108, %109, %cst_54 {dimension_numbers = #tpu.dot_dimension_numbers<[1], [0], [0], [1], [0, 0, 1, 1], [], []>} : vector<8x8xf32>, vector<8x32xf32>, vector<8x32xf32> -> vector<8x32xf32>
    %111 = arith.addf %90, %110 : vector<8x32xf32>
    %c0_55 = arith.constant 0 : index
    %c0_56 = arith.constant 0 : index
    %112 = vector.load %arg12[%c0_55, %c0_56] : memref<1x32xf32, #tpu.memory_space<vmem>>, vector<1x32xf32>
    %113 = vector.broadcast %112 : vector<1x32xf32> to vector<8x32xf32>
    %114 = arith.addf %111, %113 : vector<8x32xf32>
    %115 = vector.shape_cast %114 : vector<8x32xf32> to vector<1x8x32xf32>
    %c0_57 = arith.constant 0 : index
    %c0_58 = arith.constant 0 : index
    %c0_59 = arith.constant 0 : index
    %116 = vector.load %arg13[%c0_57, %c0_58, %c0_59] : memref<1x8x32xf32, #tpu.memory_space<vmem>>, vector<1x8x32xf32>
    tpu.vector_store %arg13[%c0_57, %c0_58, %c0_59], %115 {strides = array<i32>} : memref<1x8x32xf32, #tpu.memory_space<vmem>>, vector<1x8x32xf32>,
    return
  }
  func.func @transform_0(%arg0: i32) -> (i32, i32, i32) {
    %c0_i32 = arith.constant 0 : i32
    %c0_i32_0 = arith.constant 0 : i32
    %c0_i32_1 = arith.constant 0 : i32
    return %arg0, %c0_i32, %c0_i32_0 : i32, i32, i32
  }
  func.func @transform_1(%arg0: i32) -> (i32, i32, i32) {
    %c0_i32 = arith.constant 0 : i32
    %c0_i32_0 = arith.constant 0 : i32
    %c0_i32_1 = arith.constant 0 : i32
    return %arg0, %c0_i32, %c0_i32_0 : i32, i32, i32
  }
  func.func @transform_2(%arg0: i32) -> (i32, i32, i32) {
    %c0_i32 = arith.constant 0 : i32
    %c0_i32_0 = arith.constant 0 : i32
    %c0_i32_1 = arith.constant 0 : i32
    return %arg0, %c0_i32, %c0_i32_0 : i32, i32, i32
  }
  func.func @transform_3(%arg0: i32) -> (i32, i32, i32) {
    %c0_i32 = arith.constant 0 : i32
    %c0_i32_0 = arith.constant 0 : i32
    %c0_i32_1 = arith.constant 0 : i32
    return %arg0, %c0_i32, %c0_i32_0 : i32, i32, i32
  }
  func.func @transform_4(%arg0: i32) -> (i32, i32) {
    %c0_i32 = arith.constant 0 : i32
    %c0_i32_0 = arith.constant 0 : i32
    %c0_i32_1 = arith.constant 0 : i32
    return %c0_i32, %c0_i32_0 : i32, i32
  }
  func.func @transform_5(%arg0: i32) -> (i32, i32) {
    %c0_i32 = arith.constant 0 : i32
    %c0_i32_0 = arith.constant 0 : i32
    %c0_i32_1 = arith.constant 0 : i32
    return %c0_i32, %c0_i32_0 : i32, i32
  }
  func.func @transform_6(%arg0: i32) -> (i32, i32) {
    %c0_i32 = arith.constant 0 : i32
    %c0_i32_0 = arith.constant 0 : i32
    %c0_i32_1 = arith.constant 0 : i32
    return %c0_i32, %c0_i32_0 : i32, i32
  }
  func.func @transform_7(%arg0: i32) -> (i32, i32) {
    %c0_i32 = arith.constant 0 : i32
    %c0_i32_0 = arith.constant 0 : i32
    %c0_i32_1 = arith.constant 0 : i32
    return %c0_i32, %c0_i32_0 : i32, i32
  }
  func.func @transform_8(%arg0: i32) -> (i32, i32) {
    %c0_i32 = arith.constant 0 : i32
    %c0_i32_0 = arith.constant 0 : i32
    %c0_i32_1 = arith.constant 0 : i32
    return %c0_i32, %c0_i32_0 : i32, i32
  }
  func.func @transform_9(%arg0: i32) -> (i32, i32) {
    %c0_i32 = arith.constant 0 : i32
    %c0_i32_0 = arith.constant 0 : i32
    %c0_i32_1 = arith.constant 0 : i32
    return %c0_i32, %c0_i32_0 : i32, i32
  }
  func.func @transform_10(%arg0: i32) -> (i32, i32) {
    %c0_i32 = arith.constant 0 : i32
    %c0_i32_0 = arith.constant 0 : i32
    %c0_i32_1 = arith.constant 0 : i32
    return %c0_i32, %c0_i32_0 : i32, i32
  }
  func.func @transform_11(%arg0: i32) -> (i32, i32) {
    %c0_i32 = arith.constant 0 : i32
    %c0_i32_0 = arith.constant 0 : i32
    %c0_i32_1 = arith.constant 0 : i32
    return %c0_i32, %c0_i32_0 : i32, i32
  }
  func.func @transform_12(%arg0: i32) -> (i32, i32, i32) {
    %c0_i32 = arith.constant 0 : i32
    %c0_i32_0 = arith.constant 0 : i32
    %c0_i32_1 = arith.constant 0 : i32
    return %arg0, %c0_i32, %c0_i32_0 : i32, i32, i32
  }
}

</mosaic_0001>

<llo_original>
// kernel: tpu_custom_call.1
$region0: #{tpu_custom_call.1}
  #allocation0 [shape = 'u32[]', space=smem, size = 0x4, offset = 0x4, fixed_abs, tag = 'smem constant byte address 0x4 - core index']
  #allocation1 [shape = 'u32[144,128]{1,0:T(1,128)}', space=vmem, size = 0x12000, scoped, tag = 'internal scratch']
  %s0 = inlined_call_operand.hbm [shape: f32[2,8,32], index: 0, kind: input, shape index: {}]
  %s1 = inlined_call_operand.hbm [shape: f32[2,8,32], index: 1, kind: input, shape index: {}]
  %s2 = inlined_call_operand.hbm [shape: f32[2,8,32], index: 2, kind: input, shape index: {}]
  %s3 = inlined_call_operand.vmem [shape: s8[2,8,8], index: 3, kind: input, shape index: {}]
  %s4 = inlined_call_operand.hbm [shape: f32[32,32], index: 4, kind: input, shape index: {}]
  %s5 = inlined_call_operand.vmem [shape: f32[1,32], index: 5, kind: input, shape index: {}]
  %s6 = inlined_call_operand.hbm [shape: f32[32,32], index: 6, kind: input, shape index: {}]
  %s7 = inlined_call_operand.vmem [shape: f32[1,32], index: 7, kind: input, shape index: {}]
  %s8 = inlined_call_operand.hbm [shape: f32[32,32], index: 8, kind: input, shape index: {}]
  %s9 = inlined_call_operand.vmem [shape: f32[1,32], index: 9, kind: input, shape index: {}]
  %s10 = inlined_call_operand.hbm [shape: f32[32,32], index: 10, kind: input, shape index: {}]
  %s11 = inlined_call_operand.vmem [shape: f32[1,32], index: 11, kind: input, shape index: {}]
  %s12 = inlined_call_operand.hbm [shape: f32[2,8,32], index: 12, kind: output, shape index: {}]
  %s13 = sld [smem:[#allocation0]]
  $region109: #{tpu_custom_call.1} parent=0
    _
  %s15 = ssub.s32 1, %s13
  %s16 = scalar_select 0, %s15, %s13
  $region1: #{tpu_custom_call.1} parent=0
    #allocation2 [shape = 'u8[8192]{0}', space=vmem, size = 0x2000, scoped, tag = 'input window, operand 0']
    #allocation3 [shape = 's32[2]{0}', space=sflag, size = 0x8, scoped, tag = 'scoped memory for tpu_custom_call.1']
    #allocation4 [shape = 's32[2]{0}', space=sflag, size = 0x8, scoped, tag = 'scoped memory for tpu_custom_call.1']
    #allocation5 [shape = 'u8[8192]{0}', space=vmem, size = 0x2000, scoped, tag = 'input window, operand 1']
    #allocation6 [shape = 's32[2]{0}', space=sflag, size = 0x8, scoped, tag = 'scoped memory for tpu_custom_call.1']
    #allocation7 [shape = 'u8[8192]{0}', space=vmem, size = 0x2000, scoped, tag = 'input window, operand 2']
    #allocation8 [shape = 'u8[16384]{0}', space=vmem, size = 0x4000, scoped, tag = 'input window, operand 4, single buffered']
    #allocation9 [shape = 's32[1]{0}', space=sflag, size = 0x4, scoped, tag = 'scoped memory for tpu_custom_call.1']
    #allocation10 [shape = 'u8[16384]{0}', space=vmem, size = 0x4000, scoped, tag = 'input window, operand 6, single buffered']
    #allocation11 [shape = 'u8[16384]{0}', space=vmem, size = 0x4000, scoped, tag = 'input window, operand 8, single buffered']
    #allocation12 [shape = 's32[1]{0}', space=sflag, size = 0x4, scoped, tag = 'scoped memory for tpu_custom_call.1']
    #allocation13 [shape = 'u8[16384]{0}', space=vmem, size = 0x4000, scoped, tag = 'input window, operand 10, single buffered']
    #allocation14 [shape = 'u8[8192]{0}', space=vmem, size = 0x2000, scoped, tag = 'output window, operand 0']
    %17 = vsyncpa [#allocation3], 0
    %s18 = scalar_lea.sflag [#allocation3], 1
    %19 = vsyncpa %s18, 0
    %20 = vsyncpa [#allocation6], 0
    %s21 = scalar_lea.sflag [#allocation6], 1
    %22 = vsyncpa %s21, 0
    %23 = vsyncpa [#allocation9], 0
    %24 = vsyncpa [#allocation12], 0
    %25 = vsyncpa [#allocation4], 0
    %s26 = scalar_lea.sflag [#allocation4], 1
    %27 = vsyncpa %s26, 0
    loop: start=0, step=1, limit=4
    $region2: #{tpu_custom_call.1} parent=1 // loop_pre_header
      _
    $region3: #{tpu_custom_call.1} parent=1 // loop_header
      %s29 = sphi 0, %s33
      %p30 = scmp.ge.s32.totalorder %s29, 4
      %s39 = sphi 0, %s41
      %s42 = sphi 0, %s39
      %s43 = sphi 0, %s42
      %s59 = sphi 0, %s43
      %s65 = sphi 0, %s67
      %s68 = sphi 0, %s65
      %s69 = sphi 0, %s68
      %s85 = sphi 0, %s69
      %s91 = sphi 0, %s93
      %s94 = sphi 0, %s91
      %s95 = sphi 0, %s94
      %s111 = sphi 0, %s95
      %s117 = sphi 0, %s119
      %s120 = sphi 0, %s117
      %s121 = sphi 0, %s120
      %s137 = sphi 0, %s121
      %s141 = sphi 0, %s141
      %s143 = sphi 0, %s141
      %s144 = sphi 0, %s143
      %s158 = sphi 0, %s144
      %s162 = sphi 0, %s162
      %s164 = sphi 0, %s162
      %s165 = sphi 0, %s164
      %s179 = sphi 0, %s165
      %s183 = sphi 0, %s183
      %s185 = sphi 0, %s183
      %s186 = sphi 0, %s185
      %s200 = sphi 0, %s186
      %s204 = sphi 0, %s204
      %s206 = sphi 0, %s204
      %s207 = sphi 0, %s206
      %s221 = sphi 0, %s207
      %s225 = sphi 0, %s225
      %s227 = sphi 0, %s225
      %s228 = sphi 0, %s227
      %s242 = sphi 0, %s228
      %s246 = sphi 0, %s246
      %s248 = sphi 0, %s246
      %s249 = sphi 0, %s248
      %s263 = sphi 0, %s249
      %s267 = sphi 0, %s267
      %s269 = sphi 0, %s267
      %s270 = sphi 0, %s269
      %s284 = sphi 0, %s270
      %s288 = sphi 0, %s288
      %s290 = sphi 0, %s288
      %s291 = sphi 0, %s290
      %s305 = sphi 0, %s291
      %s311 = sphi 0, %s313
      %s314 = sphi 0, %s311
      %s315 = sphi 0, %s314
      %s331 = sphi 0, %s315
    $region4: #{tpu_custom_call.1} parent=1 // loop_header_branch
      %32 = sbr.rel (%p30) target = $region8
    $region5: #{tpu_custom_call.1} parent=1 // loop_body
      %s34 = ssub.s32 %s29, 1
      %s35 = ssub.s32 %s29, 2
      %s36 = sadd.s32 %s29, 1
      %s37 = ssub.s32 %s29, %s36
      %p38 = scmp.eq.s32.totalorder %s37, 0
      %s40 = sadd.s32 %s39, 1
      %s41 = scalar_select %p38, %s39, %s40
      %p44 = pneg %p38
      %p45 = scmp.eq.s32.totalorder %s29, 1
      %p46 = por %p44, %p45
      %p47 = scmp.ne.s32.totalorder %s39, %s42
      %p48 = scmp.eq.s32.totalorder %s29, 0
      %p49 = por %p47, %p48
      %p50 = scmp.ne.s32.totalorder %s39, %s42
      %p51 = scmp.eq.s32.totalorder %s34, 1
      %p52 = por %p50, %p51
      %p53 = scmp.ne.s32.totalorder %s42, %s43
      %p54 = scmp.eq.s32.totalorder %s34, 0
      %p55 = por %p53, %p54
      %p56 = scmp.ne.s32.totalorder %s42, %s43
      %p57 = scmp.eq.s32.totalorder %s35, 1
      %p58 = por %p56, %p57
      %p60 = scmp.ne.s32.totalorder %s43, %s59
      %p61 = scmp.eq.s32.totalorder %s35, 0
      %p62 = por %p60, %p61
      %s63 = ssub.s32 %s29, %s36
      %p64 = scmp.eq.s32.totalorder %s63, 0
      %s66 = sadd.s32 %s65, 1
      %s67 = scalar_select %p64, %s65, %s66
      %p70 = pneg %p64
      %p71 = scmp.eq.s32.totalorder %s29, 1
      %p72 = por %p70, %p71
      %p73 = scmp.ne.s32.totalorder %s65, %s68
      %p74 = scmp.eq.s32.totalorder %s29, 0
      %p75 = por %p73, %p74
      %p76 = scmp.ne.s32.totalorder %s65, %s68
      %p77 = scmp.eq.s32.totalorder %s34, 1
      %p78 = por %p76, %p77
      %p79 = scmp.ne.s32.totalorder %s68, %s69
      %p80 = scmp.eq.s32.totalorder %s34, 0
      %p81 = por %p79, %p80
      %p82 = scmp.ne.s32.totalorder %s68, %s69
      %p83 = scmp.eq.s32.totalorder %s35, 1
      %p84 = por %p82, %p83
      %p86 = scmp.ne.s32.totalorder %s69, %s85
      %p87 = scmp.eq.s32.totalorder %s35, 0
      %p88 = por %p86, %p87
      %s89 = ssub.s32 %s29, %s36
      %p90 = scmp.eq.s32.totalorder %s89, 0
      %s92 = sadd.s32 %s91, 1
      %s93 = scalar_select %p90, %s91, %s92
      %p96 = pneg %p90
      %p97 = scmp.eq.s32.totalorder %s29, 1
      %p98 = por %p96, %p97
      %p99 = scmp.ne.s32.totalorder %s91, %s94
      %p100 = scmp.eq.s32.totalorder %s29, 0
      %p101 = por %p99, %p100
      %p102 = scmp.ne.s32.totalorder %s91, %s94
      %p103 = scmp.eq.s32.totalorder %s34, 1
      %p104 = por %p102, %p103
      %p105 = scmp.ne.s32.totalorder %s94, %s95
      %p106 = scmp.eq.s32.totalorder %s34, 0
      %p107 = por %p105, %p106
      %p108 = scmp.ne.s32.totalorder %s94, %s95
      %p109 = scmp.eq.s32.totalorder %s35, 1
      %p110 = por %p108, %p109
      %p112 = scmp.ne.s32.totalorder %s95, %s111
      %p113 = scmp.eq.s32.totalorder %s35, 0
      %p114 = por %p112, %p113
      %s115 = ssub.s32 %s29, %s36
      %p116 = scmp.eq.s32.totalorder %s115, 0
      %s118 = sadd.s32 %s117, 1
      %s119 = scalar_select %p116, %s117, %s118
      %p122 = pneg %p116
      %p123 = scmp.eq.s32.totalorder %s29, 1
      %p124 = por %p122, %p123
      %p125 = scmp.ne.s32.totalorder %s117, %s120
      %p126 = scmp.eq.s32.totalorder %s29, 0
      %p127 = por %p125, %p126
      %p128 = scmp.ne.s32.totalorder %s117, %s120
      %p129 = scmp.eq.s32.totalorder %s34, 1
      %p130 = por %p128, %p129
      %p131 = scmp.ne.s32.totalorder %s120, %s121
      %p132 = scmp.eq.s32.totalorder %s34, 0
      %p133 = por %p131, %p132
      %p134 = scmp.ne.s32.totalorder %s120, %s121
      %p135 = scmp.eq.s32.totalorder %s35, 1
      %p136 = por %p134, %p135
      %p138 = scmp.ne.s32.totalorder %s121, %s137
      %p139 = scmp.eq.s32.totalorder %s35, 0
      %p140 = por %p138, %p139
      %s142 = sadd.s32 %s141, 1
      %p145 = scmp.eq.s32.totalorder %s29, 1
      %p146 = scmp.ne.s32.totalorder %s141, %s143
      %p147 = scmp.eq.s32.totalorder %s29, 0
      %p148 = por %p146, %p147
      %p149 = scmp.ne.s32.totalorder %s141, %s143
      %p150 = scmp.eq.s32.totalorder %s34, 1
      %p151 = por %p149, %p150
      %p152 = scmp.ne.s32.totalorder %s143, %s144
      %p153 = scmp.eq.s32.totalorder %s34, 0
      %p154 = por %p152, %p153
      %p155 = scmp.ne.s32.totalorder %s143, %s144
      %p156 = scmp.eq.s32.totalorder %s35, 1
      %p157 = por %p155, %p156
      %p159 = scmp.ne.s32.totalorder %s144, %s158
      %p160 = scmp.eq.s32.totalorder %s35, 0
      %p161 = por %p159, %p160
      %s163 = sadd.s32 %s162, 1
      %p166 = scmp.eq.s32.totalorder %s29, 1
      %p167 = scmp.ne.s32.totalorder %s162, %s164
      %p168 = scmp.eq.s32.totalorder %s29, 0
      %p169 = por %p167, %p168
      %p170 = scmp.ne.s32.totalorder %s162, %s164
      %p171 = scmp.eq.s32.totalorder %s34, 1
      %p172 = por %p170, %p171
      %p173 = scmp.ne.s32.totalorder %s164, %s165
      %p174 = scmp.eq.s32.totalorder %s34, 0
      %p175 = por %p173, %p174
      %p176 = scmp.ne.s32.totalorder %s164, %s165
      %p177 = scmp.eq.s32.totalorder %s35, 1
      %p178 = por %p176, %p177
      %p180 = scmp.ne.s32.totalorder %s165, %s179
      %p181 = scmp.eq.s32.totalorder %s35, 0
      %p182 = por %p180, %p181
      %s184 = sadd.s32 %s183, 1
      %p187 = scmp.eq.s32.totalorder %s29, 1
      %p188 = scmp.ne.s32.totalorder %s183, %s185
      %p189 = scmp.eq.s32.totalorder %s29, 0
      %p190 = por %p188, %p189
      %p191 = scmp.ne.s32.totalorder %s183, %s185
      %p192 = scmp.eq.s32.totalorder %s34, 1
      %p193 = por %p191, %p192
      %p194 = scmp.ne.s32.totalorder %s185, %s186
      %p195 = scmp.eq.s32.totalorder %s34, 0
      %p196 = por %p194, %p195
      %p197 = scmp.ne.s32.totalorder %s185, %s186
      %p198 = scmp.eq.s32.totalorder %s35, 1
      %p199 = por %p197, %p198
      %p201 = scmp.ne.s32.totalorder %s186, %s200
      %p202 = scmp.eq.s32.totalorder %s35, 0
      %p203 = por %p201, %p202
      %s205 = sadd.s32 %s204, 1
      %p208 = scmp.eq.s32.totalorder %s29, 1
      %p209 = scmp.ne.s32.totalorder %s204, %s206
      %p210 = scmp.eq.s32.totalorder %s29, 0
      %p211 = por %p209, %p210
      %p212 = scmp.ne.s32.totalorder %s204, %s206
      %p213 = scmp.eq.s32.totalorder %s34, 1
      %p214 = por %p212, %p213
      %p215 = scmp.ne.s32.totalorder %s206, %s207
      %p216 = scmp.eq.s32.totalorder %s34, 0
      %p217 = por %p215, %p216
      %p218 = scmp.ne.s32.totalorder %s206, %s207
      %p219 = scmp.eq.s32.totalorder %s35, 1
      %p220 = por %p218, %p219
      %p222 = scmp.ne.s32.totalorder %s207, %s221
      %p223 = scmp.eq.s32.totalorder %s35, 0
      %p224 = por %p222, %p223
      %s226 = sadd.s32 %s225, 1
      %p229 = scmp.eq.s32.totalorder %s29, 1
      %p230 = scmp.ne.s32.totalorder %s225, %s227
      %p231 = scmp.eq.s32.totalorder %s29, 0
      %p232 = por %p230, %p231
      %p233 = scmp.ne.s32.totalorder %s225, %s227
      %p234 = scmp.eq.s32.totalorder %s34, 1
      %p235 = por %p233, %p234
      %p236 = scmp.ne.s32.totalorder %s227, %s228
      %p237 = scmp.eq.s32.totalorder %s34, 0
      %p238 = por %p236, %p237
      %p239 = scmp.ne.s32.totalorder %s227, %s228
      %p240 = scmp.eq.s32.totalorder %s35, 1
      %p241 = por %p239, %p240
      %p243 = scmp.ne.s32.totalorder %s228, %s242
      %p244 = scmp.eq.s32.totalorder %s35, 0
      %p245 = por %p243, %p244
      %s247 = sadd.s32 %s246, 1
      %p250 = scmp.eq.s32.totalorder %s29, 1
      %p251 = scmp.ne.s32.totalorder %s246, %s248
      %p252 = scmp.eq.s32.totalorder %s29, 0
      %p253 = por %p251, %p252
      %p254 = scmp.ne.s32.totalorder %s246, %s248
      %p255 = scmp.eq.s32.totalorder %s34, 1
      %p256 = por %p254, %p255
      %p257 = scmp.ne.s32.totalorder %s248, %s249
      %p258 = scmp.eq.s32.totalorder %s34, 0
      %p259 = por %p257, %p258
      %p260 = scmp.ne.s32.totalorder %s248, %s249
      %p261 = scmp.eq.s32.totalorder %s35, 1
      %p262 = por %p260, %p261
      %p264 = scmp.ne.s32.totalorder %s249, %s263
      %p265 = scmp.eq.s32.totalorder %s35, 0
      %p266 = por %p264, %p265
      %s268 = sadd.s32 %s267, 1
      %p271 = scmp.eq.s32.totalorder %s29, 1
      %p272 = scmp.ne.s32.totalorder %s267, %s269
      %p273 = scmp.eq.s32.totalorder %s29, 0
      %p274 = por %p272, %p273
      %p275 = scmp.ne.s32.totalorder %s267, %s269
      %p276 = scmp.eq.s32.totalorder %s34, 1
      %p277 = por %p275, %p276
      %p278 = scmp.ne.s32.totalorder %s269, %s270
      %p279 = scmp.eq.s32.totalorder %s34, 0
      %p280 = por %p278, %p279
      %p281 = scmp.ne.s32.totalorder %s269, %s270
      %p282 = scmp.eq.s32.totalorder %s35, 1
      %p283 = por %p281, %p282
      %p285 = scmp.ne.s32.totalorder %s270, %s284
      %p286 = scmp.eq.s32.totalorder %s35, 0
      %p287 = por %p285, %p286
      %s289 = sadd.s32 %s288, 1
      %p292 = scmp.eq.s32.totalorder %s29, 1
      %p293 = scmp.ne.s32.totalorder %s288, %s290
      %p294 = scmp.eq.s32.totalorder %s29, 0
      %p295 = por %p293, %p294
      %p296 = scmp.ne.s32.totalorder %s288, %s290
      %p297 = scmp.eq.s32.totalorder %s34, 1
      %p298 = por %p296, %p297
      %p299 = scmp.ne.s32.totalorder %s290, %s291
      %p300 = scmp.eq.s32.totalorder %s34, 0
      %p301 = por %p299, %p300
      %p302 = scmp.ne.s32.totalorder %s290, %s291
      %p303 = scmp.eq.s32.totalorder %s35, 1
      %p304 = por %p302, %p303
      %p306 = scmp.ne.s32.totalorder %s291, %s305
      %p307 = scmp.eq.s32.totalorder %s35, 0
      %p308 = por %p306, %p307
      %s309 = ssub.s32 %s29, %s36
      %p310 = scmp.eq.s32.totalorder %s309, 0
      %s312 = sadd.s32 %s311, 1
      %s313 = scalar_select %p310, %s311, %s312
      %p316 = pneg %p310
      %p317 = scmp.eq.s32.totalorder %s29, 1
      %p318 = por %p316, %p317
      %p319 = scmp.ne.s32.totalorder %s311, %s314
      %p320 = scmp.eq.s32.totalorder %s29, 0
      %p321 = por %p319, %p320
      %p322 = scmp.ne.s32.totalorder %s311, %s314
      %p323 = scmp.eq.s32.totalorder %s34, 1
      %p324 = por %p322, %p323
      %p325 = scmp.ne.s32.totalorder %s314, %s315
      %p326 = scmp.eq.s32.totalorder %s34, 0
      %p327 = por %p325, %p326
      %p328 = scmp.ne.s32.totalorder %s314, %s315
      %p329 = scmp.eq.s32.totalorder %s35, 1
      %p330 = por %p328, %p329
      %p332 = scmp.ne.s32.totalorder %s315, %s331
      %p333 = scmp.eq.s32.totalorder %s35, 0
      %p334 = por %p332, %p333
      %p335 = scmp.le.s32.totalorder 1, %s29
      %p336 = scmp.lt.s32.totalorder %s29, 3
      %p337 = pnand %p335, %p336
      %p338 = pneg %p337
      // Predicated region
      $region9: #{tpu_custom_call.1} parent=5 // pred_check
        _
      $region10: #{tpu_custom_call.1} parent=5 // pred_check_branch
        %340 = sbr.rel (%p337) target = $region12
      $region11: #{tpu_custom_call.1} parent=5 // pred_region
        %s341 = ssub.s32 %s29, 1
        // Predicated region
        $region13: #{tpu_custom_call.1} parent=11 // pred_check
          %p342 = pneg %p154
        $region14: #{tpu_custom_call.1} parent=11 // pred_check_branch
          %344 = sbr.rel (%p342) target = $region16
        $region15: #{tpu_custom_call.1} parent=11 // pred_region
          %s346 = ssub.s32 512, 512
          %347 = vsyncadd [#allocation9], %s346
          %s348 = sshll.u32 [#allocation8], 4
          %s349 = int_to_ptr.vmem [resolvable:$true] %s348
          %354 = dma.hbm_to_vmem [thread:$0]  %s4, 512, %s349, [#allocation9], 128, 128, 8
        $region16: #{tpu_custom_call.1} parent=11 // pred_fallthru
          _
        // Predicated region
        $region17: #{tpu_custom_call.1} parent=11 // pred_check
          %p355 = pneg %p175
        $region18: #{tpu_custom_call.1} parent=11 // pred_check_branch
          %357 = sbr.rel (%p355) target = $region20
        $region19: #{tpu_custom_call.1} parent=11 // pred_region
          _
        $region20: #{tpu_custom_call.1} parent=11 // pred_fallthru
          _
        // Predicated region
        $region21: #{tpu_custom_call.1} parent=11 // pred_check
          %p358 = pneg %p196
        $region22: #{tpu_custom_call.1} parent=11 // pred_check_branch
          %360 = sbr.rel (%p358) target = $region24
        $region23: #{tpu_custom_call.1} parent=11 // pred_region
          %s362 = ssub.s32 512, 512
          %363 = vsyncadd [#allocation9], %s362
          %s364 = sshll.u32 [#allocation10], 4
          %s365 = int_to_ptr.vmem [resolvable:$true] %s364
          %370 = dma.hbm_to_vmem [thread:$0]  %s6, 512, %s365, [#allocation9], 128, 128, 8
        $region24: #{tpu_custom_call.1} parent=11 // pred_fallthru
          _
        // Predicated region
        $region25: #{tpu_custom_call.1} parent=11 // pred_check
          %p371 = pneg %p217
        $region26: #{tpu_custom_call.1} parent=11 // pred_check_branch
          %373 = sbr.rel (%p371) target = $region28
        $region27: #{tpu_custom_call.1} parent=11 // pred_region
          _
        $region28: #{tpu_custom_call.1} parent=11 // pred_fallthru
          _
        // Predicated region
        $region29: #{tpu_custom_call.1} parent=11 // pred_check
          %p374 = pneg %p238
        $region30: #{tpu_custom_call.1} parent=11 // pred_check_branch
          %376 = sbr.rel (%p374) target = $region32
        $region31: #{tpu_custom_call.1} parent=11 // pred_region
          %s378 = ssub.s32 512, 512
          %379 = vsyncadd [#allocation12], %s378
          %s380 = sshll.u32 [#allocation11], 4
          %s381 = int_to_ptr.vmem [resolvable:$true] %s380
          %386 = dma.hbm_to_vmem [thread:$0]  %s8, 512, %s381, [#allocation12], 128, 128, 8
        $region32: #{tpu_custom_call.1} parent=11 // pred_fallthru
          _
        // Predicated region
        $region33: #{tpu_custom_call.1} parent=11 // pred_check
          %p387 = pneg %p259
        $region34: #{tpu_custom_call.1} parent=11 // pred_check_branch
          %389 = sbr.rel (%p387) target = $region36
        $region35: #{tpu_custom_call.1} parent=11 // pred_region
          _
        $region36: #{tpu_custom_call.1} parent=11 // pred_fallthru
          _
        // Predicated region
        $region37: #{tpu_custom_call.1} parent=11 // pred_check
          %p390 = pneg %p280
        $region38: #{tpu_custom_call.1} parent=11 // pred_check_branch
          %392 = sbr.rel (%p390) target = $region40
        $region39: #{tpu_custom_call.1} parent=11 // pred_region
          %s394 = ssub.s32 512, 512
          %395 = vsyncadd [#allocation12], %s394
          %s396 = sshll.u32 [#allocation13], 4
          %s397 = int_to_ptr.vmem [resolvable:$true] %s396
          %402 = dma.hbm_to_vmem [thread:$0]  %s10, 512, %s397, [#allocation12], 128, 128, 8
        $region40: #{tpu_custom_call.1} parent=11 // pred_fallthru
          _
        // Predicated region
        $region41: #{tpu_custom_call.1} parent=11 // pred_check
          %p403 = pneg %p301
        $region42: #{tpu_custom_call.1} parent=11 // pred_check_branch
          %405 = sbr.rel (%p403) target = $region44
        $region43: #{tpu_custom_call.1} parent=11 // pred_region
          _
        $region44: #{tpu_custom_call.1} parent=11 // pred_fallthru
          _
      $region12: #{tpu_custom_call.1} parent=5 // pred_fallthru
        _
      %p406 = scmp.lt.s32.totalorder %s29, 2
      // Predicated region
      $region45: #{tpu_custom_call.1} parent=5 // pred_check
        %p407 = pneg %p406
      $region46: #{tpu_custom_call.1} parent=5 // pred_check_branch
        %409 = sbr.rel (%p407) target = $region48
      $region47: #{tpu_custom_call.1} parent=5 // pred_region
        // Predicated region
        $region49: #{tpu_custom_call.1} parent=47 // pred_check
          %p410 = pneg %p49
        $region50: #{tpu_custom_call.1} parent=47 // pred_check_branch
          %412 = sbr.rel (%p410) target = $region52
        $region51: #{tpu_custom_call.1} parent=47 // pred_region
          %s413 = sand.u32 %s39, 1
          %s414 = scalar_lea.sflag [#allocation3], %s413
          %s415 = sand.u32 %s39, 1
          %s416 = smul.addr %s415, 8
          %s417 = scalar_lea.vmem [#allocation2], %s416
          %s419 = ssub.s32 128, 128
          %420 = vsyncadd %s414, %s419
          %s421 = smul.addr %s29, 128
          %s422 = scalar_lea.hbm %s0, %s421
          %s424 = sshll.u32 %s417, 4
          %s425 = int_to_ptr.vmem [resolvable:$true] %s424
          %427 = dma.hbm_to_vmem [thread:$0]  %s422, 128, %s425, %s414
        $region52: #{tpu_custom_call.1} parent=47 // pred_fallthru
          _
        // Predicated region
        $region53: #{tpu_custom_call.1} parent=47 // pred_check
          %p428 = pneg %p75
        $region54: #{tpu_custom_call.1} parent=47 // pred_check_branch
          %430 = sbr.rel (%p428) target = $region56
        $region55: #{tpu_custom_call.1} parent=47 // pred_region
          %s431 = sand.u32 %s29, 1
          %s432 = scalar_lea.sflag [#allocation6], %s431
          %s433 = sand.u32 %s65, 1
          %s434 = smul.addr %s433, 8
          %s435 = scalar_lea.vmem [#allocation5], %s434
          %s437 = ssub.s32 128, 128
          %438 = vsyncadd %s432, %s437
          %s439 = smul.addr %s29, 128
          %s440 = scalar_lea.hbm %s1, %s439
          %s442 = sshll.u32 %s435, 4
          %s443 = int_to_ptr.vmem [resolvable:$true] %s442
          %445 = dma.hbm_to_vmem [thread:$0]  %s440, 128, %s443, %s432
        $region56: #{tpu_custom_call.1} parent=47 // pred_fallthru
          _
        // Predicated region
        $region57: #{tpu_custom_call.1} parent=47 // pred_check
          %p446 = pneg %p101
        $region58: #{tpu_custom_call.1} parent=47 // pred_check_branch
          %448 = sbr.rel (%p446) target = $region60
        $region59: #{tpu_custom_call.1} parent=47 // pred_region
          %s449 = sand.u32 %s29, 1
          %s450 = scalar_lea.sflag [#allocation6], %s449
          %s451 = sand.u32 %s91, 1
          %s452 = smul.addr %s451, 8
          %s453 = scalar_lea.vmem [#allocation7], %s452
          %s455 = ssub.s32 128, 128
          %456 = vsyncadd %s450, %s455
          %s457 = smul.addr %s29, 128
          %s458 = scalar_lea.hbm %s2, %s457
          %s460 = sshll.u32 %s453, 4
          %s461 = int_to_ptr.vmem [resolvable:$true] %s460
          %463 = dma.hbm_to_vmem [thread:$0]  %s458, 128, %s461, %s450
        $region60: #{tpu_custom_call.1} parent=47 // pred_fallthru
          _
        // Predicated region
        $region61: #{tpu_custom_call.1} parent=47 // pred_check
          %p464 = pneg %p127
        $region62: #{tpu_custom_call.1} parent=47 // pred_check_branch
          %466 = sbr.rel (%p464) target = $region64
        $region63: #{tpu_custom_call.1} parent=47 // pred_region
          %p467 = scmp.lt.s32.totalorder %s29, 1
          %s468 = scalar_select %p467, %s29, 1
          %s469 = smul.addr %s468, 2
          %s470 = scalar_lea.vmem %s3, %s469
        $region64: #{tpu_custom_call.1} parent=47 // pred_fallthru
          _
      $region48: #{tpu_custom_call.1} parent=5 // pred_fallthru
        _
      %p471 = scmp.le.s32.totalorder 1, %s29
      %p472 = scmp.lt.s32.totalorder %s29, 3
      %p473 = pnand %p471, %p472
      %p474 = pneg %p473
      // Predicated region
      $region65: #{tpu_custom_call.1} parent=5 // pred_check
        _
      $region66: #{tpu_custom_call.1} parent=5 // pred_check_branch
        %476 = sbr.rel (%p473) target = $region68
      $region67: #{tpu_custom_call.1} parent=5 // pred_region
        %s477 = ssub.s32 %s29, 1
        %s478 = sand.u32 %s42, 1
        %s479 = scalar_lea.sflag [#allocation3], %s478
        %s480 = sand.u32 %s42, 1
        %s481 = smul.addr %s480, 8
        %s482 = scalar_lea.vmem [#allocation2], %s481
        // Predicated region
        $region69: #{tpu_custom_call.1} parent=67 // pred_check
          %p483 = pneg %p55
        $region70: #{tpu_custom_call.1} parent=67 // pred_check_branch
          %485 = sbr.rel (%p483) target = $region72
        $region71: #{tpu_custom_call.1} parent=67 // pred_region
          %486 = dma.done %s479, 128
        $region72: #{tpu_custom_call.1} parent=67 // pred_fallthru
          _
        %s487 = sand.u32 %s34, 1
        %s488 = scalar_lea.sflag [#allocation6], %s487
        %s489 = sand.u32 %s68, 1
        %s490 = smul.addr %s489, 8
        %s491 = scalar_lea.vmem [#allocation5], %s490
        // Predicated region
        $region73: #{tpu_custom_call.1} parent=67 // pred_check
          %p492 = pneg %p81
        $region74: #{tpu_custom_call.1} parent=67 // pred_check_branch
          %494 = sbr.rel (%p492) target = $region76
        $region75: #{tpu_custom_call.1} parent=67 // pred_region
          %495 = dma.done %s488, 128
        $region76: #{tpu_custom_call.1} parent=67 // pred_fallthru
          _
        %s496 = sand.u32 %s34, 1
        %s497 = scalar_lea.sflag [#allocation6], %s496
        %s498 = sand.u32 %s94, 1
        %s499 = smul.addr %s498, 8
        %s500 = scalar_lea.vmem [#allocation7], %s499
        // Predicated region
        $region77: #{tpu_custom_call.1} parent=67 // pred_check
          %p501 = pneg %p107
        $region78: #{tpu_custom_call.1} parent=67 // pred_check_branch
          %503 = sbr.rel (%p501) target = $region80
        $region79: #{tpu_custom_call.1} parent=67 // pred_region
          %504 = dma.done %s497, 128
        $region80: #{tpu_custom_call.1} parent=67 // pred_fallthru
          _
        // Predicated region
        $region81: #{tpu_custom_call.1} parent=67 // pred_check
          %p505 = pneg %p154
        $region82: #{tpu_custom_call.1} parent=67 // pred_check_branch
          %507 = sbr.rel (%p505) target = $region84
        $region83: #{tpu_custom_call.1} parent=67 // pred_region
          %508 = dma.done [#allocation9], 512
        $region84: #{tpu_custom_call.1} parent=67 // pred_fallthru
          _
        // Predicated region
        $region85: #{tpu_custom_call.1} parent=67 // pred_check
          %p509 = pneg %p196
        $region86: #{tpu_custom_call.1} parent=67 // pred_check_branch
          %511 = sbr.rel (%p509) target = $region88
        $region87: #{tpu_custom_call.1} parent=67 // pred_region
          %512 = dma.done [#allocation9], 512
        $region88: #{tpu_custom_call.1} parent=67 // pred_fallthru
          _
        // Predicated region
        $region89: #{tpu_custom_call.1} parent=67 // pred_check
          %p513 = pneg %p238
        $region90: #{tpu_custom_call.1} parent=67 // pred_check_branch
          %515 = sbr.rel (%p513) target = $region92
        $region91: #{tpu_custom_call.1} parent=67 // pred_region
          %516 = dma.done [#allocation12], 512
        $region92: #{tpu_custom_call.1} parent=67 // pred_fallthru
          _
        // Predicated region
        $region93: #{tpu_custom_call.1} parent=67 // pred_check
          %p517 = pneg %p280
        $region94: #{tpu_custom_call.1} parent=67 // pred_check_branch
          %519 = sbr.rel (%p517) target = $region96
        $region95: #{tpu_custom_call.1} parent=67 // pred_region
          %520 = dma.done [#allocation12], 512
        $region96: #{tpu_custom_call.1} parent=67 // pred_fallthru
          _
        %s521 = sand.u32 %s42, 1
        %s522 = scalar_lea.sflag [#allocation3], %s521
        %s523 = sand.u32 %s42, 1
        %s524 = smul.addr %s523, 8
        %s525 = scalar_lea.vmem [#allocation2], %s524
        %p526 = pneg %p55
        %p527 = pneg %p52
        %s528 = sand.u32 %s34, 1
        %s529 = scalar_lea.sflag [#allocation6], %s528
        %s530 = sand.u32 %s68, 1
        %s531 = smul.addr %s530, 8
        %s532 = scalar_lea.vmem [#allocation5], %s531
        %p533 = pneg %p81
        %p534 = pneg %p78
        %s535 = sand.u32 %s34, 1
        %s536 = scalar_lea.sflag [#allocation6], %s535
        %s537 = sand.u32 %s94, 1
        %s538 = smul.addr %s537, 8
        %s539 = scalar_lea.vmem [#allocation7], %s538
        %p540 = pneg %p107
        %p541 = pneg %p104
        %p542 = scmp.lt.s32.totalorder %s34, 1
        %s543 = scalar_select %p542, %s34, 1
        %s544 = smul.addr %s543, 2
        %s545 = scalar_lea.vmem %s3, %s544
        %p546 = pneg %p133
        %p547 = pneg %p130
        %p548 = pneg %p154
        %p549 = pneg %p151
        %p550 = pneg %p175
        %p551 = pneg %p172
        %p552 = pneg %p196
        %p553 = pneg %p193
        %p554 = pneg %p217
        %p555 = pneg %p214
        %p556 = pneg %p238
        %p557 = pneg %p235
        %p558 = pneg %p259
        %p559 = pneg %p256
        %p560 = pneg %p280
        %p561 = pneg %p277
        %p562 = pneg %p301
        %p563 = pneg %p298
        %p564 = pneg %p327
        %p565 = pneg %p324
        %s566 = sand.u32 %s314, 1
        %s567 = scalar_lea.sflag [#allocation4], %s566
        %s568 = sand.u32 %s314, 1
        %s569 = smul.addr %s568, 8
        %s570 = scalar_lea.vmem [#allocation14], %s569
        %p571 = scmp.lt.s32.totalorder %s34, 1
        %s572 = scalar_select %p571, %s34, 1
        %s573 = smul.addr %s572, 2
        %s574 = scalar_lea.vmem %s3, %s573
        %v577 = vld [vmem:[%s482] sm:$0xff]
        %v578 = vld [vmem:[%s491] sm:$0xff]
        %v579 = vld [vmem:[%s500] sm:$0xff]
        %v580 = vld [vmem:[#allocation8] sm:$0xff]
        %v581 = vld [vmem:[#allocation8 + $0x8] sm:$0xff]
        %v582 = vld [vmem:[#allocation8 + $0x10] sm:$0xff]
        %v583 = vld [vmem:[#allocation8 + $0x18] sm:$0xff]
        %v584 = vld [vmem:[%s5] sm:$0x1]
        %v586 = vlaneseq
        %v587 = vshrl.u32 %v586, 7
        %v588 = vsub.s32 0, %v587
        %v589 = vrot.slane %v584, %v588
        %vm591 = vcmask 261120
        %v593 = vsel %vm591, %v577, 0
        %595 = vmatprep.subr.mxu0 0.0
        %596 = vmatpush1.msra.mxu0 0.0
        %597 = vmatprep.subr.mxu0 0.0
        %598 = vmatpush1.msra.mxu0 0.0
        %599 = vmatprep.subr.mxu0 0.0
        %600 = vmatpush1.msra.mxu0 0.0
        %601 = vmatprep.subr.mxu0 0.0
        %602 = vmatpush1.msra.mxu0 0.0
        %603 = vmatprep.subr.mxu0 0.0
        %604 = vmatpush1.msra.mxu0 0.0
        %605 = vmatprep.subr.mxu0 0.0
        %606 = vmatpush1.msra.mxu0 0.0
        %607 = vmatprep.subr.mxu0 0.0
        %608 = vmatpush1.msra.mxu0 0.0
        %609 = vmatprep.subr.mxu0 0.0
        %610 = vmatpush1.msra.mxu0 0.0
        %611 = vmatprep.subr.mxu0 0.0
        %612 = vmatpush1.msra.mxu0 0.0
        %613 = vmatprep.subr.mxu0 0.0
        %614 = vmatpush1.msra.mxu0 0.0
        %615 = vmatprep.subr.mxu0 0.0
        %616 = vmatpush1.msra.mxu0 0.0
        %617 = vmatprep.subr.mxu0 0.0
        %618 = vmatpush1.msra.mxu0 0.0
        %619 = vmatprep.subr.mxu0 0.0
        %620 = vmatpush1.msra.mxu0 %v583
        %621 = vmatprep.subr.mxu0 0.0
        %622 = vmatpush1.msra.mxu0 %v582
        %623 = vmatprep.subr.mxu0 0.0
        %624 = vmatpush1.msra.mxu0 %v581
        %625 = vmatprep.subr.mxu0 0.0
        %626 = vmatpush1.msra.mxu0 %v580
        %627 = vmatprep.subr.mxu0 0.0
        %628 = vmatpush2.msra.mxu0 0.0
        %629 = vmatprep.subr.mxu0 0.0
        %630 = vmatpush2.msra.mxu0 0.0
        %631 = vmatprep.subr.mxu0 0.0
        %632 = vmatpush2.msra.mxu0 0.0
        %633 = vmatprep.subr.mxu0 0.0
        %634 = vmatpush2.msra.mxu0 0.0
        %635 = vmatprep.subr.mxu0 0.0
        %636 = vmatpush2.msra.mxu0 0.0
        %637 = vmatprep.subr.mxu0 0.0
        %638 = vmatpush2.msra.mxu0 0.0
        %639 = vmatprep.subr.mxu0 0.0
        %640 = vmatpush2.msra.mxu0 0.0
        %641 = vmatprep.subr.mxu0 0.0
        %642 = vmatpush2.msra.mxu0 0.0
        %643 = vmatprep.subr.mxu0 0.0
        %644 = vmatpush2.msra.mxu0 0.0
        %645 = vmatprep.subr.mxu0 0.0
        %646 = vmatpush2.msra.mxu0 0.0
        %647 = vmatprep.subr.mxu0 0.0
        %648 = vmatpush2.msra.mxu0 0.0
        %649 = vmatprep.subr.mxu0 0.0
        %650 = vmatpush2.msra.mxu0 0.0
        %651 = vmatprep.subr.mxu0 0.0
        %652 = vmatpush2.msra.mxu0 0.0
        %653 = vmatprep.subr.mxu0 0.0
        %654 = vmatpush2.msra.mxu0 0.0
        %655 = vmatprep.subr.mxu0 0.0
        %656 = vmatpush2.msra.mxu0 0.0
        %657 = vmatprep.subr.mxu0 0.0
        %658 = vmatpush2.msra.mxu0 0.0
        %659 = vmatprep.mubr.f32.mxu0 0.0
        %660 = vmatmul.mubr.f32.gmra.mxu0 %v593
        %v661 = vpop.f32.mrf.mxu0
        %v662 = vadd.f32 %v589, %v661
        %v663 = vpop.f32.mrf.mxu0
        %664 = vdwg.mxu0
        %v665 = vmul.f32 %v662, 0.35355338
        %v666 = vld [vmem:[#allocation10] sm:$0xff]
        %v667 = vld [vmem:[#allocation10 + $0x8] sm:$0xff]
        %v668 = vld [vmem:[#allocation10 + $0x10] sm:$0xff]
        %v669 = vld [vmem:[#allocation10 + $0x18] sm:$0xff]
        %v670 = vld [vmem:[%s7] sm:$0x1]
        %v672 = vlaneseq
        %v673 = vshrl.u32 %v672, 7
        %v674 = vsub.s32 0, %v673
        %v675 = vrot.slane %v670, %v674
        %v678 = vsel %vm591, %v578, 0
        %680 = vmatprep.subr.mxu0 0.0
        %681 = vmatpush1.msra.mxu0 0.0
        %682 = vmatprep.subr.mxu0 0.0
        %683 = vmatpush1.msra.mxu0 0.0
        %684 = vmatprep.subr.mxu0 0.0
        %685 = vmatpush1.msra.mxu0 0.0
        %686 = vmatprep.subr.mxu0 0.0
        %687 = vmatpush1.msra.mxu0 0.0
        %688 = vmatprep.subr.mxu0 0.0
        %689 = vmatpush1.msra.mxu0 0.0
        %690 = vmatprep.subr.mxu0 0.0
        %691 = vmatpush1.msra.mxu0 0.0
        %692 = vmatprep.subr.mxu0 0.0
        %693 = vmatpush1.msra.mxu0 0.0
        %694 = vmatprep.subr.mxu0 0.0
        %695 = vmatpush1.msra.mxu0 0.0
        %696 = vmatprep.subr.mxu0 0.0
        %697 = vmatpush1.msra.mxu0 0.0
        %698 = vmatprep.subr.mxu0 0.0
        %699 = vmatpush1.msra.mxu0 0.0
        %700 = vmatprep.subr.mxu0 0.0
        %701 = vmatpush1.msra.mxu0 0.0
        %702 = vmatprep.subr.mxu0 0.0
        %703 = vmatpush1.msra.mxu0 0.0
        %704 = vmatprep.subr.mxu0 0.0
        %705 = vmatpush1.msra.mxu0 %v669
        %706 = vmatprep.subr.mxu0 0.0
        %707 = vmatpush1.msra.mxu0 %v668
        %708 = vmatprep.subr.mxu0 0.0
        %709 = vmatpush1.msra.mxu0 %v667
        %710 = vmatprep.subr.mxu0 0.0
        %711 = vmatpush1.msra.mxu0 %v666
        %712 = vmatprep.subr.mxu0 0.0
        %713 = vmatpush2.msra.mxu0 0.0
        %714 = vmatprep.subr.mxu0 0.0
        %715 = vmatpush2.msra.mxu0 0.0
        %716 = vmatprep.subr.mxu0 0.0
        %717 = vmatpush2.msra.mxu0 0.0
        %718 = vmatprep.subr.mxu0 0.0
        %719 = vmatpush2.msra.mxu0 0.0
        %720 = vmatprep.subr.mxu0 0.0
        %721 = vmatpush2.msra.mxu0 0.0
        %722 = vmatprep.subr.mxu0 0.0
        %723 = vmatpush2.msra.mxu0 0.0
        %724 = vmatprep.subr.mxu0 0.0
        %725 = vmatpush2.msra.mxu0 0.0
        %726 = vmatprep.subr.mxu0 0.0
        %727 = vmatpush2.msra.mxu0 0.0
        %728 = vmatprep.subr.mxu0 0.0
        %729 = vmatpush2.msra.mxu0 0.0
        %730 = vmatprep.subr.mxu0 0.0
        %731 = vmatpush2.msra.mxu0 0.0
        %732 = vmatprep.subr.mxu0 0.0
        %733 = vmatpush2.msra.mxu0 0.0
        %734 = vmatprep.subr.mxu0 0.0
        %735 = vmatpush2.msra.mxu0 0.0
        %736 = vmatprep.subr.mxu0 0.0
        %737 = vmatpush2.msra.mxu0 0.0
        %738 = vmatprep.subr.mxu0 0.0
        %739 = vmatpush2.msra.mxu0 0.0
        %740 = vmatprep.subr.mxu0 0.0
        %741 = vmatpush2.msra.mxu0 0.0
        %742 = vmatprep.subr.mxu0 0.0
        %743 = vmatpush2.msra.mxu0 0.0
        %744 = vmatprep.mubr.f32.mxu0 0.0
        %745 = vmatmul.mubr.f32.gmra.mxu0 %v678
        %v746 = vpop.f32.mrf.mxu0
        %v747 = vadd.f32 %v675, %v746
        %v748 = vpop.f32.mrf.mxu0
        %749 = vdwg.mxu0
        %v750 = vld [vmem:[#allocation11] sm:$0xff]
        %v751 = vld [vmem:[#allocation11 + $0x8] sm:$0xff]
        %v752 = vld [vmem:[#allocation11 + $0x10] sm:$0xff]
        %v753 = vld [vmem:[#allocation11 + $0x18] sm:$0xff]
        %v754 = vld [vmem:[%s9] sm:$0x1]
        %v756 = vlaneseq
        %v757 = vshrl.u32 %v756, 7
        %v758 = vsub.s32 0, %v757
        %v759 = vrot.slane %v754, %v758
        %v762 = vsel %vm591, %v579, 0
        %764 = vmatprep.subr.mxu0 0.0
        %765 = vmatpush1.msra.mxu0 0.0
        %766 = vmatprep.subr.mxu0 0.0
        %767 = vmatpush1.msra.mxu0 0.0
        %768 = vmatprep.subr.mxu0 0.0
        %769 = vmatpush1.msra.mxu0 0.0
        %770 = vmatprep.subr.mxu0 0.0
        %771 = vmatpush1.msra.mxu0 0.0
        %772 = vmatprep.subr.mxu0 0.0
        %773 = vmatpush1.msra.mxu0 0.0
        %774 = vmatprep.subr.mxu0 0.0
        %775 = vmatpush1.msra.mxu0 0.0
        %776 = vmatprep.subr.mxu0 0.0
        %777 = vmatpush1.msra.mxu0 0.0
        %778 = vmatprep.subr.mxu0 0.0
        %779 = vmatpush1.msra.mxu0 0.0
        %780 = vmatprep.subr.mxu0 0.0
        %781 = vmatpush1.msra.mxu0 0.0
        %782 = vmatprep.subr.mxu0 0.0
        %783 = vmatpush1.msra.mxu0 0.0
        %784 = vmatprep.subr.mxu0 0.0
        %785 = vmatpush1.msra.mxu0 0.0
        %786 = vmatprep.subr.mxu0 0.0
        %787 = vmatpush1.msra.mxu0 0.0
        %788 = vmatprep.subr.mxu0 0.0
        %789 = vmatpush1.msra.mxu0 %v753
        %790 = vmatprep.subr.mxu0 0.0
        %791 = vmatpush1.msra.mxu0 %v752
        %792 = vmatprep.subr.mxu0 0.0
        %793 = vmatpush1.msra.mxu0 %v751
        %794 = vmatprep.subr.mxu0 0.0
        %795 = vmatpush1.msra.mxu0 %v750
        %796 = vmatprep.subr.mxu0 0.0
        %797 = vmatpush2.msra.mxu0 0.0
        %798 = vmatprep.subr.mxu0 0.0
        %799 = vmatpush2.msra.mxu0 0.0
        %800 = vmatprep.subr.mxu0 0.0
        %801 = vmatpush2.msra.mxu0 0.0
        %802 = vmatprep.subr.mxu0 0.0
        %803 = vmatpush2.msra.mxu0 0.0
        %804 = vmatprep.subr.mxu0 0.0
        %805 = vmatpush2.msra.mxu0 0.0
        %806 = vmatprep.subr.mxu0 0.0
        %807 = vmatpush2.msra.mxu0 0.0
        %808 = vmatprep.subr.mxu0 0.0
        %809 = vmatpush2.msra.mxu0 0.0
        %810 = vmatprep.subr.mxu0 0.0
        %811 = vmatpush2.msra.mxu0 0.0
        %812 = vmatprep.subr.mxu0 0.0
        %813 = vmatpush2.msra.mxu0 0.0
        %814 = vmatprep.subr.mxu0 0.0
        %815 = vmatpush2.msra.mxu0 0.0
        %816 = vmatprep.subr.mxu0 0.0
        %817 = vmatpush2.msra.mxu0 0.0
        %818 = vmatprep.subr.mxu0 0.0
        %819 = vmatpush2.msra.mxu0 0.0
        %820 = vmatprep.subr.mxu0 0.0
        %821 = vmatpush2.msra.mxu0 0.0
        %822 = vmatprep.subr.mxu0 0.0
        %823 = vmatpush2.msra.mxu0 0.0
        %824 = vmatprep.subr.mxu0 0.0
        %825 = vmatpush2.msra.mxu0 0.0
        %826 = vmatprep.subr.mxu0 0.0
        %827 = vmatpush2.msra.mxu0 0.0
        %828 = vmatprep.mubr.f32.mxu0 0.0
        %829 = vmatmul.mubr.f32.gmra.mxu0 %v762
        %v830 = vpop.f32.mrf.mxu0
        %v831 = vadd.f32 %v759, %v830
        %v832 = vpop.f32.mrf.mxu0
        %833 = vdwg.mxu0
        %v834 = vld [vmem:[%s574] sm:$0x3]
        %vm835 = vnez %v834
        %vm836 = vcmask 64512
        %v838 = vsel %vm836, %v665, 0
        %v841 = vsel %vm836, %v747, 0
        %843 = vmatprep.subr.mxu0 0.0
        %844 = vmatpush1.xpose.msra.mxu0 0.0
        %845 = vmatprep.subr.mxu0 0.0
        %846 = vmatpush1.xpose.msra.mxu0 0.0
        %847 = vmatprep.subr.mxu0 0.0
        %848 = vmatpush1.xpose.msra.mxu0 0.0
        %849 = vmatprep.subr.mxu0 0.0
        %850 = vmatpush1.xpose.msra.mxu0 0.0
        %851 = vmatprep.subr.mxu0 0.0
        %852 = vmatpush1.xpose.msra.mxu0 0.0
        %853 = vmatprep.subr.mxu0 0.0
        %854 = vmatpush1.xpose.msra.mxu0 0.0
        %855 = vmatprep.subr.mxu0 0.0
        %856 = vmatpush1.xpose.msra.mxu0 0.0
        %857 = vmatprep.subr.mxu0 0.0
        %858 = vmatpush1.xpose.msra.mxu0 0.0
        %859 = vmatprep.subr.mxu0 0.0
        %860 = vmatpush1.xpose.msra.mxu0 0.0
        %861 = vmatprep.subr.mxu0 0.0
        %862 = vmatpush1.xpose.msra.mxu0 0.0
        %863 = vmatprep.subr.mxu0 0.0
        %864 = vmatpush1.xpose.msra.mxu0 0.0
        %865 = vmatprep.subr.mxu0 0.0
        %866 = vmatpush1.xpose.msra.mxu0 0.0
        %867 = vmatprep.subr.mxu0 0.0
        %868 = vmatpush1.xpose.msra.mxu0 0.0
        %869 = vmatprep.subr.mxu0 0.0
        %870 = vmatpush1.xpose.msra.mxu0 0.0
        %871 = vmatprep.subr.mxu0 0.0
        %872 = vmatpush1.xpose.msra.mxu0 0.0
        %873 = vmatprep.subr.mxu0 0.0
        %874 = vmatpush1.xpose.msra.mxu0 %v841
        %875 = vmatprep.subr.mxu0 0.0
        %876 = vmatpush2.xpose.msra.mxu0 0.0
        %877 = vmatprep.subr.mxu0 0.0
        %878 = vmatpush2.xpose.msra.mxu0 0.0
        %879 = vmatprep.subr.mxu0 0.0
        %880 = vmatpush2.xpose.msra.mxu0 0.0
        %881 = vmatprep.subr.mxu0 0.0
        %882 = vmatpush2.xpose.msra.mxu0 0.0
        %883 = vmatprep.subr.mxu0 0.0
        %884 = vmatpush2.xpose.msra.mxu0 0.0
        %885 = vmatprep.subr.mxu0 0.0
        %886 = vmatpush2.xpose.msra.mxu0 0.0
        %887 = vmatprep.subr.mxu0 0.0
        %888 = vmatpush2.xpose.msra.mxu0 0.0
        %889 = vmatprep.subr.mxu0 0.0
        %890 = vmatpush2.xpose.msra.mxu0 0.0
        %891 = vmatprep.subr.mxu0 0.0
        %892 = vmatpush2.xpose.msra.mxu0 0.0
        %893 = vmatprep.subr.mxu0 0.0
        %894 = vmatpush2.xpose.msra.mxu0 0.0
        %895 = vmatprep.subr.mxu0 0.0
        %896 = vmatpush2.xpose.msra.mxu0 0.0
        %897 = vmatprep.subr.mxu0 0.0
        %898 = vmatpush2.xpose.msra.mxu0 0.0
        %899 = vmatprep.subr.mxu0 0.0
        %900 = vmatpush2.xpose.msra.mxu0 0.0
        %901 = vmatprep.subr.mxu0 0.0
        %902 = vmatpush2.xpose.msra.mxu0 0.0
        %903 = vmatprep.subr.mxu0 0.0
        %904 = vmatpush2.xpose.msra.mxu0 0.0
        %905 = vmatprep.subr.mxu0 0.0
        %906 = vmatpush2.xpose.msra.mxu0 0.0
        %907 = vmatprep.mubr.f32.mxu0 0.0
        %908 = vmatmul.mubr.f32.gmra.mxu0 %v838
        %v909 = vpop.f32.mrf.mxu0
        %v910 = vadd.f32 0.0, %v909
        %v911 = vpop.f32.mrf.mxu0
        %912 = vdwg.mxu0
        %v913 = vsel %vm835, 16843009, 0
        %v914 = vunpack.c.0.s8 %v913
        %vm915 = vcmp.ne.s32.totalorder %v914, 0
        %v916 = vsel %vm915, 32752.0, %v910
        %v917 = vsel %vm836, %v916, -inf
        %918 = vmax.xlane.f32.xlu0 %v917
        %v919 = vpop.xlane.xlu0 %918
        %v920 = vsub.f32 %v916, %v919
        %v921 = vmul.f32 %v920, 1.442695
        %v922 = vpow.pop %v921
        %v923 = vsel %vm836, %v922, 0.0
        %924 = vadd.xlane.f32.xlu0 %v923
        %v925 = vpop.xlane.xlu0 %924
        %v926 = vrcp.pop %v925
        %v927 = vmul.f32 %v922, %v926
        %v929 = vsel %vm836, %v927, 0
        %931 = vmatprep.subr.mxu0 0.0
        %932 = vmatpush1.msra.mxu0 0.0
        %933 = vmatprep.subr.mxu0 0.0
        %934 = vmatpush1.msra.mxu0 0.0
        %935 = vmatprep.subr.mxu0 0.0
        %936 = vmatpush1.msra.mxu0 0.0
        %937 = vmatprep.subr.mxu0 0.0
        %938 = vmatpush1.msra.mxu0 0.0
        %939 = vmatprep.subr.mxu0 0.0
        %940 = vmatpush1.msra.mxu0 0.0
        %941 = vmatprep.subr.mxu0 0.0
        %942 = vmatpush1.msra.mxu0 0.0
        %943 = vmatprep.subr.mxu0 0.0
        %944 = vmatpush1.msra.mxu0 0.0
        %945 = vmatprep.subr.mxu0 0.0
        %946 = vmatpush1.msra.mxu0 0.0
        %947 = vmatprep.subr.mxu0 0.0
        %948 = vmatpush1.msra.mxu0 0.0
        %949 = vmatprep.subr.mxu0 0.0
        %950 = vmatpush1.msra.mxu0 0.0
        %951 = vmatprep.subr.mxu0 0.0
        %952 = vmatpush1.msra.mxu0 0.0
        %953 = vmatprep.subr.mxu0 0.0
        %954 = vmatpush1.msra.mxu0 0.0
        %955 = vmatprep.subr.mxu0 0.0
        %956 = vmatpush1.msra.mxu0 0.0
        %957 = vmatprep.subr.mxu0 0.0
        %958 = vmatpush1.msra.mxu0 0.0
        %959 = vmatprep.subr.mxu0 0.0
        %960 = vmatpush1.msra.mxu0 0.0
        %961 = vmatprep.subr.mxu0 0.0
        %962 = vmatpush1.msra.mxu0 %v831
        %963 = vmatprep.subr.mxu0 0.0
        %964 = vmatpush2.msra.mxu0 0.0
        %965 = vmatprep.subr.mxu0 0.0
        %966 = vmatpush2.msra.mxu0 0.0
        %967 = vmatprep.subr.mxu0 0.0
        %968 = vmatpush2.msra.mxu0 0.0
        %969 = vmatprep.subr.mxu0 0.0
        %970 = vmatpush2.msra.mxu0 0.0
        %971 = vmatprep.subr.mxu0 0.0
        %972 = vmatpush2.msra.mxu0 0.0
        %973 = vmatprep.subr.mxu0 0.0
        %974 = vmatpush2.msra.mxu0 0.0
        %975 = vmatprep.subr.mxu0 0.0
        %976 = vmatpush2.msra.mxu0 0.0
        %977 = vmatprep.subr.mxu0 0.0
        %978 = vmatpush2.msra.mxu0 0.0
        %979 = vmatprep.subr.mxu0 0.0
        %980 = vmatpush2.msra.mxu0 0.0
        %981 = vmatprep.subr.mxu0 0.0
        %982 = vmatpush2.msra.mxu0 0.0
        %983 = vmatprep.subr.mxu0 0.0
        %984 = vmatpush2.msra.mxu0 0.0
        %985 = vmatprep.subr.mxu0 0.0
        %986 = vmatpush2.msra.mxu0 0.0
        %987 = vmatprep.subr.mxu0 0.0
        %988 = vmatpush2.msra.mxu0 0.0
        %989 = vmatprep.subr.mxu0 0.0
        %990 = vmatpush2.msra.mxu0 0.0
        %991 = vmatprep.subr.mxu0 0.0
        %992 = vmatpush2.msra.mxu0 0.0
        %993 = vmatprep.subr.mxu0 0.0
        %994 = vmatpush2.msra.mxu0 0.0
        %995 = vmatprep.mubr.f32.mxu0 0.0
        %996 = vmatmul.mubr.f32.gmra.mxu0 %v929
        %v997 = vpop.f32.mrf.mxu0
        %v998 = vadd.f32 0.0, %v997
        %v999 = vpop.f32.mrf.mxu0
        %1000 = vdwg.mxu0
        %v1001 = vld [vmem:[#allocation13] sm:$0xff]
        %1002 = vrot.lane.b32.xlu0 %v665, 120
        %v1003 = vpop.permute.xlu0 %1002
        %1004 = vrot.lane.b32.xlu0 %v747, 120
        %v1005 = vpop.permute.xlu0 %1004
        %v1006 = vsel %vm836, %v1003, 0
        %v1008 = vsel %vm836, %v1005, 0
        %1010 = vmatprep.subr.mxu0 0.0
        %1011 = vmatpush1.xpose.msra.mxu0 0.0
        %1012 = vmatprep.subr.mxu0 0.0
        %1013 = vmatpush1.xpose.msra.mxu0 0.0
        %1014 = vmatprep.subr.mxu0 0.0
        %1015 = vmatpush1.xpose.msra.mxu0 0.0
        %1016 = vmatprep.subr.mxu0 0.0
        %1017 = vmatpush1.xpose.msra.mxu0 0.0
        %1018 = vmatprep.subr.mxu0 0.0
        %1019 = vmatpush1.xpose.msra.mxu0 0.0
        %1020 = vmatprep.subr.mxu0 0.0
        %1021 = vmatpush1.xpose.msra.mxu0 0.0
        %1022 = vmatprep.subr.mxu0 0.0
        %1023 = vmatpush1.xpose.msra.mxu0 0.0
        %1024 = vmatprep.subr.mxu0 0.0
        %1025 = vmatpush1.xpose.msra.mxu0 0.0
        %1026 = vmatprep.subr.mxu0 0.0
        %1027 = vmatpush1.xpose.msra.mxu0 0.0
        %1028 = vmatprep.subr.mxu0 0.0
        %1029 = vmatpush1.xpose.msra.mxu0 0.0
        %1030 = vmatprep.subr.mxu0 0.0
        %1031 = vmatpush1.xpose.msra.mxu0 0.0
        %1032 = vmatprep.subr.mxu0 0.0
        %1033 = vmatpush1.xpose.msra.mxu0 0.0
        %1034 = vmatprep.subr.mxu0 0.0
        %1035 = vmatpush1.xpose.msra.mxu0 0.0
        %1036 = vmatprep.subr.mxu0 0.0
        %1037 = vmatpush1.xpose.msra.mxu0 0.0
        %1038 = vmatprep.subr.mxu0 0.0
        %1039 = vmatpush1.xpose.msra.mxu0 0.0
        %1040 = vmatprep.subr.mxu0 0.0
        %1041 = vmatpush1.xpose.msra.mxu0 %v1008
        %1042 = vmatprep.subr.mxu0 0.0
        %1043 = vmatpush2.xpose.msra.mxu0 0.0
        %1044 = vmatprep.subr.mxu0 0.0
        %1045 = vmatpush2.xpose.msra.mxu0 0.0
        %1046 = vmatprep.subr.mxu0 0.0
        %1047 = vmatpush2.xpose.msra.mxu0 0.0
        %1048 = vmatprep.subr.mxu0 0.0
        %1049 = vmatpush2.xpose.msra.mxu0 0.0
        %1050 = vmatprep.subr.mxu0 0.0
        %1051 = vmatpush2.xpose.msra.mxu0 0.0
        %1052 = vmatprep.subr.mxu0 0.0
        %1053 = vmatpush2.xpose.msra.mxu0 0.0
        %1054 = vmatprep.subr.mxu0 0.0
        %1055 = vmatpush2.xpose.msra.mxu0 0.0
        %1056 = vmatprep.subr.mxu0 0.0
        %1057 = vmatpush2.xpose.msra.mxu0 0.0
        %1058 = vmatprep.subr.mxu0 0.0
        %1059 = vmatpush2.xpose.msra.mxu0 0.0
        %1060 = vmatprep.subr.mxu0 0.0
        %1061 = vmatpush2.xpose.msra.mxu0 0.0
        %1062 = vmatprep.subr.mxu0 0.0
        %1063 = vmatpush2.xpose.msra.mxu0 0.0
        %1064 = vmatprep.subr.mxu0 0.0
        %1065 = vmatpush2.xpose.msra.mxu0 0.0
        %1066 = vmatprep.subr.mxu0 0.0
        %1067 = vmatpush2.xpose.msra.mxu0 0.0
        %1068 = vmatprep.subr.mxu0 0.0
        %1069 = vmatpush2.xpose.msra.mxu0 0.0
        %1070 = vmatprep.subr.mxu0 0.0
        %1071 = vmatpush2.xpose.msra.mxu0 0.0
        %1072 = vmatprep.subr.mxu0 0.0
        %1073 = vmatpush2.xpose.msra.mxu0 0.0
        %1074 = vmatprep.mubr.f32.mxu0 0.0
        %1075 = vmatmul.mubr.f32.gmra.mxu0 %v1006
        %v1076 = vpop.f32.mrf.mxu0
        %v1077 = vadd.f32 0.0, %v1076
        %v1078 = vpop.f32.mrf.mxu0
        %1079 = vdwg.mxu0
        %v1080 = vsel %vm915, 32752.0, %v1077
        %v1081 = vsel %vm836, %v1080, -inf
        %1082 = vmax.xlane.f32.xlu0 %v1081
        %v1083 = vpop.xlane.xlu0 %1082
        %v1084 = vsub.f32 %v1080, %v1083
        %v1085 = vmul.f32 %v1084, 1.442695
        %v1086 = vpow.pop %v1085
        %v1087 = vsel %vm836, %v1086, 0.0
        %1088 = vadd.xlane.f32.xlu0 %v1087
        %v1089 = vpop.xlane.xlu0 %1088
        %v1090 = vrcp.pop %v1089
        %v1091 = vmul.f32 %v1086, %v1090
        %1093 = vrot.lane.b32.xlu0 %v831, 120
        %v1094 = vpop.permute.xlu0 %1093
        %v1097 = vsel %vm836, %v1091, 0
        %1099 = vmatprep.subr.mxu0 0.0
        %1100 = vmatpush1.msra.mxu0 0.0
        %1101 = vmatprep.subr.mxu0 0.0
        %1102 = vmatpush1.msra.mxu0 0.0
        %1103 = vmatprep.subr.mxu0 0.0
        %1104 = vmatpush1.msra.mxu0 0.0
        %1105 = vmatprep.subr.mxu0 0.0
        %1106 = vmatpush1.msra.mxu0 0.0
        %1107 = vmatprep.subr.mxu0 0.0
        %1108 = vmatpush1.msra.mxu0 0.0
        %1109 = vmatprep.subr.mxu0 0.0
        %1110 = vmatpush1.msra.mxu0 0.0
        %1111 = vmatprep.subr.mxu0 0.0
        %1112 = vmatpush1.msra.mxu0 0.0
        %1113 = vmatprep.subr.mxu0 0.0
        %1114 = vmatpush1.msra.mxu0 0.0
        %1115 = vmatprep.subr.mxu0 0.0
        %1116 = vmatpush1.msra.mxu0 0.0
        %1117 = vmatprep.subr.mxu0 0.0
        %1118 = vmatpush1.msra.mxu0 0.0
        %1119 = vmatprep.subr.mxu0 0.0
        %1120 = vmatpush1.msra.mxu0 0.0
        %1121 = vmatprep.subr.mxu0 0.0
        %1122 = vmatpush1.msra.mxu0 0.0
        %1123 = vmatprep.subr.mxu0 0.0
        %1124 = vmatpush1.msra.mxu0 0.0
        %1125 = vmatprep.subr.mxu0 0.0
        %1126 = vmatpush1.msra.mxu0 0.0
        %1127 = vmatprep.subr.mxu0 0.0
        %1128 = vmatpush1.msra.mxu0 0.0
        %1129 = vmatprep.subr.mxu0 0.0
        %1130 = vmatpush1.msra.mxu0 %v1094
        %1131 = vmatprep.subr.mxu0 0.0
        %1132 = vmatpush2.msra.mxu0 0.0
        %1133 = vmatprep.subr.mxu0 0.0
        %1134 = vmatpush2.msra.mxu0 0.0
        %1135 = vmatprep.subr.mxu0 0.0
        %1136 = vmatpush2.msra.mxu0 0.0
        %1137 = vmatprep.subr.mxu0 0.0
        %1138 = vmatpush2.msra.mxu0 0.0
        %1139 = vmatprep.subr.mxu0 0.0
        %1140 = vmatpush2.msra.mxu0 0.0
        %1141 = vmatprep.subr.mxu0 0.0
        %1142 = vmatpush2.msra.mxu0 0.0
        %1143 = vmatprep.subr.mxu0 0.0
        %1144 = vmatpush2.msra.mxu0 0.0
        %1145 = vmatprep.subr.mxu0 0.0
        %1146 = vmatpush2.msra.mxu0 0.0
        %1147 = vmatprep.subr.mxu0 0.0
        %1148 = vmatpush2.msra.mxu0 0.0
        %1149 = vmatprep.subr.mxu0 0.0
        %1150 = vmatpush2.msra.mxu0 0.0
        %1151 = vmatprep.subr.mxu0 0.0
        %1152 = vmatpush2.msra.mxu0 0.0
        %1153 = vmatprep.subr.mxu0 0.0
        %1154 = vmatpush2.msra.mxu0 0.0
        %1155 = vmatprep.subr.mxu0 0.0
        %1156 = vmatpush2.msra.mxu0 0.0
        %1157 = vmatprep.subr.mxu0 0.0
        %1158 = vmatpush2.msra.mxu0 0.0
        %1159 = vmatprep.subr.mxu0 0.0
        %1160 = vmatpush2.msra.mxu0 0.0
        %1161 = vmatprep.subr.mxu0 0.0
        %1162 = vmatpush2.msra.mxu0 0.0
        %1163 = vmatprep.mubr.f32.mxu0 0.0
        %1164 = vmatmul.mubr.f32.gmra.mxu0 %v1097
        %v1165 = vpop.f32.mrf.mxu0
        %v1166 = vadd.f32 0.0, %v1165
        %v1167 = vpop.f32.mrf.mxu0
        %1168 = vdwg.mxu0
        %v1169 = vld [vmem:[#allocation13 + $0x8] sm:$0xff]
        %v1171 = vsel %vm836, %v1166, 0
        %1173 = vmatprep.subr.mxu0 0.0
        %1174 = vmatpush1.msra.mxu0 0.0
        %1175 = vmatprep.subr.mxu0 0.0
        %1176 = vmatpush1.msra.mxu0 0.0
        %1177 = vmatprep.subr.mxu0 0.0
        %1178 = vmatpush1.msra.mxu0 0.0
        %1179 = vmatprep.subr.mxu0 0.0
        %1180 = vmatpush1.msra.mxu0 0.0
        %1181 = vmatprep.subr.mxu0 0.0
        %1182 = vmatpush1.msra.mxu0 0.0
        %1183 = vmatprep.subr.mxu0 0.0
        %1184 = vmatpush1.msra.mxu0 0.0
        %1185 = vmatprep.subr.mxu0 0.0
        %1186 = vmatpush1.msra.mxu0 0.0
        %1187 = vmatprep.subr.mxu0 0.0
        %1188 = vmatpush1.msra.mxu0 0.0
        %1189 = vmatprep.subr.mxu0 0.0
        %1190 = vmatpush1.msra.mxu0 0.0
        %1191 = vmatprep.subr.mxu0 0.0
        %1192 = vmatpush1.msra.mxu0 0.0
        %1193 = vmatprep.subr.mxu0 0.0
        %1194 = vmatpush1.msra.mxu0 0.0
        %1195 = vmatprep.subr.mxu0 0.0
        %1196 = vmatpush1.msra.mxu0 0.0
        %1197 = vmatprep.subr.mxu0 0.0
        %1198 = vmatpush1.msra.mxu0 0.0
        %1199 = vmatprep.subr.mxu0 0.0
        %1200 = vmatpush1.msra.mxu0 0.0
        %1201 = vmatprep.subr.mxu0 0.0
        %1202 = vmatpush1.msra.mxu0 0.0
        %1203 = vmatprep.subr.mxu0 0.0
        %1204 = vmatpush1.msra.mxu0 %v1169
        %1205 = vmatprep.subr.mxu0 0.0
        %1206 = vmatpush2.msra.mxu0 0.0
        %1207 = vmatprep.subr.mxu0 0.0
        %1208 = vmatpush2.msra.mxu0 0.0
        %1209 = vmatprep.subr.mxu0 0.0
        %1210 = vmatpush2.msra.mxu0 0.0
        %1211 = vmatprep.subr.mxu0 0.0
        %1212 = vmatpush2.msra.mxu0 0.0
        %1213 = vmatprep.subr.mxu0 0.0
        %1214 = vmatpush2.msra.mxu0 0.0
        %1215 = vmatprep.subr.mxu0 0.0
        %1216 = vmatpush2.msra.mxu0 0.0
        %1217 = vmatprep.subr.mxu0 0.0
        %1218 = vmatpush2.msra.mxu0 0.0
        %1219 = vmatprep.subr.mxu0 0.0
        %1220 = vmatpush2.msra.mxu0 0.0
        %1221 = vmatprep.subr.mxu0 0.0
        %1222 = vmatpush2.msra.mxu0 0.0
        %1223 = vmatprep.subr.mxu0 0.0
        %1224 = vmatpush2.msra.mxu0 0.0
        %1225 = vmatprep.subr.mxu0 0.0
        %1226 = vmatpush2.msra.mxu0 0.0
        %1227 = vmatprep.subr.mxu0 0.0
        %1228 = vmatpush2.msra.mxu0 0.0
        %1229 = vmatprep.subr.mxu0 0.0
        %1230 = vmatpush2.msra.mxu0 0.0
        %1231 = vmatprep.subr.mxu0 0.0
        %1232 = vmatpush2.msra.mxu0 0.0
        %1233 = vmatprep.subr.mxu0 0.0
        %1234 = vmatpush2.msra.mxu0 0.0
        %1235 = vmatprep.subr.mxu0 0.0
        %1236 = vmatpush2.msra.mxu0 0.0
        %1237 = vmatprep.mubr.f32.mxu0 0.0
        %1238 = vmatmul.mubr.f32.gmra.mxu0 %v1171
        %v1239 = vpop.f32.mrf.mxu0
        %v1240 = vadd.f32 0.0, %v1239
        %v1241 = vpop.f32.mrf.mxu0
        %1242 = vdwg.mxu0
        %v1244 = vsel %vm836, %v998, 0
        %1246 = vmatprep.subr.mxu0 0.0
        %1247 = vmatpush1.msra.mxu0 0.0
        %1248 = vmatprep.subr.mxu0 0.0
        %1249 = vmatpush1.msra.mxu0 0.0
        %1250 = vmatprep.subr.mxu0 0.0
        %1251 = vmatpush1.msra.mxu0 0.0
        %1252 = vmatprep.subr.mxu0 0.0
        %1253 = vmatpush1.msra.mxu0 0.0
        %1254 = vmatprep.subr.mxu0 0.0
        %1255 = vmatpush1.msra.mxu0 0.0
        %1256 = vmatprep.subr.mxu0 0.0
        %1257 = vmatpush1.msra.mxu0 0.0
        %1258 = vmatprep.subr.mxu0 0.0
        %1259 = vmatpush1.msra.mxu0 0.0
        %1260 = vmatprep.subr.mxu0 0.0
        %1261 = vmatpush1.msra.mxu0 0.0
        %1262 = vmatprep.subr.mxu0 0.0
        %1263 = vmatpush1.msra.mxu0 0.0
        %1264 = vmatprep.subr.mxu0 0.0
        %1265 = vmatpush1.msra.mxu0 0.0
        %1266 = vmatprep.subr.mxu0 0.0
        %1267 = vmatpush1.msra.mxu0 0.0
        %1268 = vmatprep.subr.mxu0 0.0
        %1269 = vmatpush1.msra.mxu0 0.0
        %1270 = vmatprep.subr.mxu0 0.0
        %1271 = vmatpush1.msra.mxu0 0.0
        %1272 = vmatprep.subr.mxu0 0.0
        %1273 = vmatpush1.msra.mxu0 0.0
        %1274 = vmatprep.subr.mxu0 0.0
        %1275 = vmatpush1.msra.mxu0 0.0
        %1276 = vmatprep.subr.mxu0 0.0
        %1277 = vmatpush1.msra.mxu0 %v1001
        %1278 = vmatprep.subr.mxu0 0.0
        %1279 = vmatpush2.msra.mxu0 0.0
        %1280 = vmatprep.subr.mxu0 0.0
        %1281 = vmatpush2.msra.mxu0 0.0
        %1282 = vmatprep.subr.mxu0 0.0
        %1283 = vmatpush2.msra.mxu0 0.0
        %1284 = vmatprep.subr.mxu0 0.0
        %1285 = vmatpush2.msra.mxu0 0.0
        %1286 = vmatprep.subr.mxu0 0.0
        %1287 = vmatpush2.msra.mxu0 0.0
        %1288 = vmatprep.subr.mxu0 0.0
        %1289 = vmatpush2.msra.mxu0 0.0
        %1290 = vmatprep.subr.mxu0 0.0
        %1291 = vmatpush2.msra.mxu0 0.0
        %1292 = vmatprep.subr.mxu0 0.0
        %1293 = vmatpush2.msra.mxu0 0.0
        %1294 = vmatprep.subr.mxu0 0.0
        %1295 = vmatpush2.msra.mxu0 0.0
        %1296 = vmatprep.subr.mxu0 0.0
        %1297 = vmatpush2.msra.mxu0 0.0
        %1298 = vmatprep.subr.mxu0 0.0
        %1299 = vmatpush2.msra.mxu0 0.0
        %1300 = vmatprep.subr.mxu0 0.0
        %1301 = vmatpush2.msra.mxu0 0.0
        %1302 = vmatprep.subr.mxu0 0.0
        %1303 = vmatpush2.msra.mxu0 0.0
        %1304 = vmatprep.subr.mxu0 0.0
        %1305 = vmatpush2.msra.mxu0 0.0
        %1306 = vmatprep.subr.mxu0 0.0
        %1307 = vmatpush2.msra.mxu0 0.0
        %1308 = vmatprep.subr.mxu0 0.0
        %1309 = vmatpush2.msra.mxu0 0.0
        %1310 = vmatprep.mubr.f32.mxu0 0.0
        %1311 = vmatmul.mubr.f32.gmra.mxu0 %v1244
        %v1312 = vpop.f32.mrf.mxu0
        %v1313 = vadd.f32 %v1240, %v1312
        %v1314 = vpop.f32.mrf.mxu0
        %1315 = vdwg.mxu0
        %1316 = vrot.lane.b32.xlu0 %v665, 112
        %v1317 = vpop.permute.xlu0 %1316
        %1318 = vrot.lane.b32.xlu0 %v747, 112
        %v1319 = vpop.permute.xlu0 %1318
        %v1320 = vsel %vm836, %v1317, 0
        %v1322 = vsel %vm836, %v1319, 0
        %1324 = vmatprep.subr.mxu0 0.0
        %1325 = vmatpush1.xpose.msra.mxu0 0.0
        %1326 = vmatprep.subr.mxu0 0.0
        %1327 = vmatpush1.xpose.msra.mxu0 0.0
        %1328 = vmatprep.subr.mxu0 0.0
        %1329 = vmatpush1.xpose.msra.mxu0 0.0
        %1330 = vmatprep.subr.mxu0 0.0
        %1331 = vmatpush1.xpose.msra.mxu0 0.0
        %1332 = vmatprep.subr.mxu0 0.0
        %1333 = vmatpush1.xpose.msra.mxu0 0.0
        %1334 = vmatprep.subr.mxu0 0.0
        %1335 = vmatpush1.xpose.msra.mxu0 0.0
        %1336 = vmatprep.subr.mxu0 0.0
        %1337 = vmatpush1.xpose.msra.mxu0 0.0
        %1338 = vmatprep.subr.mxu0 0.0
        %1339 = vmatpush1.xpose.msra.mxu0 0.0
        %1340 = vmatprep.subr.mxu0 0.0
        %1341 = vmatpush1.xpose.msra.mxu0 0.0
        %1342 = vmatprep.subr.mxu0 0.0
        %1343 = vmatpush1.xpose.msra.mxu0 0.0
        %1344 = vmatprep.subr.mxu0 0.0
        %1345 = vmatpush1.xpose.msra.mxu0 0.0
        %1346 = vmatprep.subr.mxu0 0.0
        %1347 = vmatpush1.xpose.msra.mxu0 0.0
        %1348 = vmatprep.subr.mxu0 0.0
        %1349 = vmatpush1.xpose.msra.mxu0 0.0
        %1350 = vmatprep.subr.mxu0 0.0
        %1351 = vmatpush1.xpose.msra.mxu0 0.0
        %1352 = vmatprep.subr.mxu0 0.0
        %1353 = vmatpush1.xpose.msra.mxu0 0.0
        %1354 = vmatprep.subr.mxu0 0.0
        %1355 = vmatpush1.xpose.msra.mxu0 %v1322
        %1356 = vmatprep.subr.mxu0 0.0
        %1357 = vmatpush2.xpose.msra.mxu0 0.0
        %1358 = vmatprep.subr.mxu0 0.0
        %1359 = vmatpush2.xpose.msra.mxu0 0.0
        %1360 = vmatprep.subr.mxu0 0.0
        %1361 = vmatpush2.xpose.msra.mxu0 0.0
        %1362 = vmatprep.subr.mxu0 0.0
        %1363 = vmatpush2.xpose.msra.mxu0 0.0
        %1364 = vmatprep.subr.mxu0 0.0
        %1365 = vmatpush2.xpose.msra.mxu0 0.0
        %1366 = vmatprep.subr.mxu0 0.0
        %1367 = vmatpush2.xpose.msra.mxu0 0.0
        %1368 = vmatprep.subr.mxu0 0.0
        %1369 = vmatpush2.xpose.msra.mxu0 0.0
        %1370 = vmatprep.subr.mxu0 0.0
        %1371 = vmatpush2.xpose.msra.mxu0 0.0
        %1372 = vmatprep.subr.mxu0 0.0
        %1373 = vmatpush2.xpose.msra.mxu0 0.0
        %1374 = vmatprep.subr.mxu0 0.0
        %1375 = vmatpush2.xpose.msra.mxu0 0.0
        %1376 = vmatprep.subr.mxu0 0.0
        %1377 = vmatpush2.xpose.msra.mxu0 0.0
        %1378 = vmatprep.subr.mxu0 0.0
        %1379 = vmatpush2.xpose.msra.mxu0 0.0
        %1380 = vmatprep.subr.mxu0 0.0
        %1381 = vmatpush2.xpose.msra.mxu0 0.0
        %1382 = vmatprep.subr.mxu0 0.0
        %1383 = vmatpush2.xpose.msra.mxu0 0.0
        %1384 = vmatprep.subr.mxu0 0.0
        %1385 = vmatpush2.xpose.msra.mxu0 0.0
        %1386 = vmatprep.subr.mxu0 0.0
        %1387 = vmatpush2.xpose.msra.mxu0 0.0
        %1388 = vmatprep.mubr.f32.mxu0 0.0
        %1389 = vmatmul.mubr.f32.gmra.mxu0 %v1320
        %v1390 = vpop.f32.mrf.mxu0
        %v1391 = vadd.f32 0.0, %v1390
        %v1392 = vpop.f32.mrf.mxu0
        %1393 = vdwg.mxu0
        %v1394 = vsel %vm915, 32752.0, %v1391
        %v1395 = vsel %vm836, %v1394, -inf
        %1396 = vmax.xlane.f32.xlu0 %v1395
        %v1397 = vpop.xlane.xlu0 %1396
        %v1398 = vsub.f32 %v1394, %v1397
        %v1399 = vmul.f32 %v1398, 1.442695
        %v1400 = vpow.pop %v1399
        %v1401 = vsel %vm836, %v1400, 0.0
        %1402 = vadd.xlane.f32.xlu0 %v1401
        %v1403 = vpop.xlane.xlu0 %1402
        %v1404 = vrcp.pop %v1403
        %v1405 = vmul.f32 %v1400, %v1404
        %1406 = vrot.lane.b32.xlu0 %v831, 112
        %v1407 = vpop.permute.xlu0 %1406
        %v1410 = vsel %vm836, %v1405, 0
        %1412 = vmatprep.subr.mxu0 0.0
        %1413 = vmatpush1.msra.mxu0 0.0
        %1414 = vmatprep.subr.mxu0 0.0
        %1415 = vmatpush1.msra.mxu0 0.0
        %1416 = vmatprep.subr.mxu0 0.0
        %1417 = vmatpush1.msra.mxu0 0.0
        %1418 = vmatprep.subr.mxu0 0.0
        %1419 = vmatpush1.msra.mxu0 0.0
        %1420 = vmatprep.subr.mxu0 0.0
        %1421 = vmatpush1.msra.mxu0 0.0
        %1422 = vmatprep.subr.mxu0 0.0
        %1423 = vmatpush1.msra.mxu0 0.0
        %1424 = vmatprep.subr.mxu0 0.0
        %1425 = vmatpush1.msra.mxu0 0.0
        %1426 = vmatprep.subr.mxu0 0.0
        %1427 = vmatpush1.msra.mxu0 0.0
        %1428 = vmatprep.subr.mxu0 0.0
        %1429 = vmatpush1.msra.mxu0 0.0
        %1430 = vmatprep.subr.mxu0 0.0
        %1431 = vmatpush1.msra.mxu0 0.0
        %1432 = vmatprep.subr.mxu0 0.0
        %1433 = vmatpush1.msra.mxu0 0.0
        %1434 = vmatprep.subr.mxu0 0.0
        %1435 = vmatpush1.msra.mxu0 0.0
        %1436 = vmatprep.subr.mxu0 0.0
        %1437 = vmatpush1.msra.mxu0 0.0
        %1438 = vmatprep.subr.mxu0 0.0
        %1439 = vmatpush1.msra.mxu0 0.0
        %1440 = vmatprep.subr.mxu0 0.0
        %1441 = vmatpush1.msra.mxu0 0.0
        %1442 = vmatprep.subr.mxu0 0.0
        %1443 = vmatpush1.msra.mxu0 %v1407
        %1444 = vmatprep.subr.mxu0 0.0
        %1445 = vmatpush2.msra.mxu0 0.0
        %1446 = vmatprep.subr.mxu0 0.0
        %1447 = vmatpush2.msra.mxu0 0.0
        %1448 = vmatprep.subr.mxu0 0.0
        %1449 = vmatpush2.msra.mxu0 0.0
        %1450 = vmatprep.subr.mxu0 0.0
        %1451 = vmatpush2.msra.mxu0 0.0
        %1452 = vmatprep.subr.mxu0 0.0
        %1453 = vmatpush2.msra.mxu0 0.0
        %1454 = vmatprep.subr.mxu0 0.0
        %1455 = vmatpush2.msra.mxu0 0.0
        %1456 = vmatprep.subr.mxu0 0.0
        %1457 = vmatpush2.msra.mxu0 0.0
        %1458 = vmatprep.subr.mxu0 0.0
        %1459 = vmatpush2.msra.mxu0 0.0
        %1460 = vmatprep.subr.mxu0 0.0
        %1461 = vmatpush2.msra.mxu0 0.0
        %1462 = vmatprep.subr.mxu0 0.0
        %1463 = vmatpush2.msra.mxu0 0.0
        %1464 = vmatprep.subr.mxu0 0.0
        %1465 = vmatpush2.msra.mxu0 0.0
        %1466 = vmatprep.subr.mxu0 0.0
        %1467 = vmatpush2.msra.mxu0 0.0
        %1468 = vmatprep.subr.mxu0 0.0
        %1469 = vmatpush2.msra.mxu0 0.0
        %1470 = vmatprep.subr.mxu0 0.0
        %1471 = vmatpush2.msra.mxu0 0.0
        %1472 = vmatprep.subr.mxu0 0.0
        %1473 = vmatpush2.msra.mxu0 0.0
        %1474 = vmatprep.subr.mxu0 0.0
        %1475 = vmatpush2.msra.mxu0 0.0
        %1476 = vmatprep.mubr.f32.mxu0 0.0
        %1477 = vmatmul.mubr.f32.gmra.mxu0 %v1410
        %v1478 = vpop.f32.mrf.mxu0
        %v1479 = vadd.f32 0.0, %v1478
        %v1480 = vpop.f32.mrf.mxu0
        %1481 = vdwg.mxu0
        %v1482 = vld [vmem:[#allocation13 + $0x10] sm:$0xff]
        %v1484 = vsel %vm836, %v1479, 0
        %1486 = vmatprep.subr.mxu0 0.0
        %1487 = vmatpush1.msra.mxu0 0.0
        %1488 = vmatprep.subr.mxu0 0.0
        %1489 = vmatpush1.msra.mxu0 0.0
        %1490 = vmatprep.subr.mxu0 0.0
        %1491 = vmatpush1.msra.mxu0 0.0
        %1492 = vmatprep.subr.mxu0 0.0
        %1493 = vmatpush1.msra.mxu0 0.0
        %1494 = vmatprep.subr.mxu0 0.0
        %1495 = vmatpush1.msra.mxu0 0.0
        %1496 = vmatprep.subr.mxu0 0.0
        %1497 = vmatpush1.msra.mxu0 0.0
        %1498 = vmatprep.subr.mxu0 0.0
        %1499 = vmatpush1.msra.mxu0 0.0
        %1500 = vmatprep.subr.mxu0 0.0
        %1501 = vmatpush1.msra.mxu0 0.0
        %1502 = vmatprep.subr.mxu0 0.0
        %1503 = vmatpush1.msra.mxu0 0.0
        %1504 = vmatprep.subr.mxu0 0.0
        %1505 = vmatpush1.msra.mxu0 0.0
        %1506 = vmatprep.subr.mxu0 0.0
        %1507 = vmatpush1.msra.mxu0 0.0
        %1508 = vmatprep.subr.mxu0 0.0
        %1509 = vmatpush1.msra.mxu0 0.0
        %1510 = vmatprep.subr.mxu0 0.0
        %1511 = vmatpush1.msra.mxu0 0.0
        %1512 = vmatprep.subr.mxu0 0.0
        %1513 = vmatpush1.msra.mxu0 0.0
        %1514 = vmatprep.subr.mxu0 0.0
        %1515 = vmatpush1.msra.mxu0 0.0
        %1516 = vmatprep.subr.mxu0 0.0
        %1517 = vmatpush1.msra.mxu0 %v1482
        %1518 = vmatprep.subr.mxu0 0.0
        %1519 = vmatpush2.msra.mxu0 0.0
        %1520 = vmatprep.subr.mxu0 0.0
        %1521 = vmatpush2.msra.mxu0 0.0
        %1522 = vmatprep.subr.mxu0 0.0
        %1523 = vmatpush2.msra.mxu0 0.0
        %1524 = vmatprep.subr.mxu0 0.0
        %1525 = vmatpush2.msra.mxu0 0.0
        %1526 = vmatprep.subr.mxu0 0.0
        %1527 = vmatpush2.msra.mxu0 0.0
        %1528 = vmatprep.subr.mxu0 0.0
        %1529 = vmatpush2.msra.mxu0 0.0
        %1530 = vmatprep.subr.mxu0 0.0
        %1531 = vmatpush2.msra.mxu0 0.0
        %1532 = vmatprep.subr.mxu0 0.0
        %1533 = vmatpush2.msra.mxu0 0.0
        %1534 = vmatprep.subr.mxu0 0.0
        %1535 = vmatpush2.msra.mxu0 0.0
        %1536 = vmatprep.subr.mxu0 0.0
        %1537 = vmatpush2.msra.mxu0 0.0
        %1538 = vmatprep.subr.mxu0 0.0
        %1539 = vmatpush2.msra.mxu0 0.0
        %1540 = vmatprep.subr.mxu0 0.0
        %1541 = vmatpush2.msra.mxu0 0.0
        %1542 = vmatprep.subr.mxu0 0.0
        %1543 = vmatpush2.msra.mxu0 0.0
        %1544 = vmatprep.subr.mxu0 0.0
        %1545 = vmatpush2.msra.mxu0 0.0
        %1546 = vmatprep.subr.mxu0 0.0
        %1547 = vmatpush2.msra.mxu0 0.0
        %1548 = vmatprep.subr.mxu0 0.0
        %1549 = vmatpush2.msra.mxu0 0.0
        %1550 = vmatprep.mubr.f32.mxu0 0.0
        %1551 = vmatmul.mubr.f32.gmra.mxu0 %v1484
        %v1552 = vpop.f32.mrf.mxu0
        %v1553 = vadd.f32 0.0, %v1552
        %v1554 = vpop.f32.mrf.mxu0
        %1555 = vdwg.mxu0
        %v1556 = vadd.f32 %v1313, %v1553
        %1557 = vrot.lane.b32.xlu0 %v665, 104
        %v1558 = vpop.permute.xlu0 %1557
        %1559 = vrot.lane.b32.xlu0 %v747, 104
        %v1560 = vpop.permute.xlu0 %1559
        %v1561 = vsel %vm836, %v1558, 0
        %v1563 = vsel %vm836, %v1560, 0
        %1565 = vmatprep.subr.mxu0 0.0
        %1566 = vmatpush1.xpose.msra.mxu0 0.0
        %1567 = vmatprep.subr.mxu0 0.0
        %1568 = vmatpush1.xpose.msra.mxu0 0.0
        %1569 = vmatprep.subr.mxu0 0.0
        %1570 = vmatpush1.xpose.msra.mxu0 0.0
        %1571 = vmatprep.subr.mxu0 0.0
        %1572 = vmatpush1.xpose.msra.mxu0 0.0
        %1573 = vmatprep.subr.mxu0 0.0
        %1574 = vmatpush1.xpose.msra.mxu0 0.0
        %1575 = vmatprep.subr.mxu0 0.0
        %1576 = vmatpush1.xpose.msra.mxu0 0.0
        %1577 = vmatprep.subr.mxu0 0.0
        %1578 = vmatpush1.xpose.msra.mxu0 0.0
        %1579 = vmatprep.subr.mxu0 0.0
        %1580 = vmatpush1.xpose.msra.mxu0 0.0
        %1581 = vmatprep.subr.mxu0 0.0
        %1582 = vmatpush1.xpose.msra.mxu0 0.0
        %1583 = vmatprep.subr.mxu0 0.0
        %1584 = vmatpush1.xpose.msra.mxu0 0.0
        %1585 = vmatprep.subr.mxu0 0.0
        %1586 = vmatpush1.xpose.msra.mxu0 0.0
        %1587 = vmatprep.subr.mxu0 0.0
        %1588 = vmatpush1.xpose.msra.mxu0 0.0
        %1589 = vmatprep.subr.mxu0 0.0
        %1590 = vmatpush1.xpose.msra.mxu0 0.0
        %1591 = vmatprep.subr.mxu0 0.0
        %1592 = vmatpush1.xpose.msra.mxu0 0.0
        %1593 = vmatprep.subr.mxu0 0.0
        %1594 = vmatpush1.xpose.msra.mxu0 0.0
        %1595 = vmatprep.subr.mxu0 0.0
        %1596 = vmatpush1.xpose.msra.mxu0 %v1563
        %1597 = vmatprep.subr.mxu0 0.0
        %1598 = vmatpush2.xpose.msra.mxu0 0.0
        %1599 = vmatprep.subr.mxu0 0.0
        %1600 = vmatpush2.xpose.msra.mxu0 0.0
        %1601 = vmatprep.subr.mxu0 0.0
        %1602 = vmatpush2.xpose.msra.mxu0 0.0
        %1603 = vmatprep.subr.mxu0 0.0
        %1604 = vmatpush2.xpose.msra.mxu0 0.0
        %1605 = vmatprep.subr.mxu0 0.0
        %1606 = vmatpush2.xpose.msra.mxu0 0.0
        %1607 = vmatprep.subr.mxu0 0.0
        %1608 = vmatpush2.xpose.msra.mxu0 0.0
        %1609 = vmatprep.subr.mxu0 0.0
        %1610 = vmatpush2.xpose.msra.mxu0 0.0
        %1611 = vmatprep.subr.mxu0 0.0
        %1612 = vmatpush2.xpose.msra.mxu0 0.0
        %1613 = vmatprep.subr.mxu0 0.0
        %1614 = vmatpush2.xpose.msra.mxu0 0.0
        %1615 = vmatprep.subr.mxu0 0.0
        %1616 = vmatpush2.xpose.msra.mxu0 0.0
        %1617 = vmatprep.subr.mxu0 0.0
        %1618 = vmatpush2.xpose.msra.mxu0 0.0
        %1619 = vmatprep.subr.mxu0 0.0
        %1620 = vmatpush2.xpose.msra.mxu0 0.0
        %1621 = vmatprep.subr.mxu0 0.0
        %1622 = vmatpush2.xpose.msra.mxu0 0.0
        %1623 = vmatprep.subr.mxu0 0.0
        %1624 = vmatpush2.xpose.msra.mxu0 0.0
        %1625 = vmatprep.subr.mxu0 0.0
        %1626 = vmatpush2.xpose.msra.mxu0 0.0
        %1627 = vmatprep.subr.mxu0 0.0
        %1628 = vmatpush2.xpose.msra.mxu0 0.0
        %1629 = vmatprep.mubr.f32.mxu0 0.0
        %1630 = vmatmul.mubr.f32.gmra.mxu0 %v1561
        %v1631 = vpop.f32.mrf.mxu0
        %v1632 = vadd.f32 0.0, %v1631
        %v1633 = vpop.f32.mrf.mxu0
        %1634 = vdwg.mxu0
        %v1635 = vsel %vm915, 32752.0, %v1632
        %v1636 = vsel %vm836, %v1635, -inf
        %1637 = vmax.xlane.f32.xlu0 %v1636
        %v1638 = vpop.xlane.xlu0 %1637
        %v1639 = vsub.f32 %v1635, %v1638
        %v1640 = vmul.f32 %v1639, 1.442695
        %v1641 = vpow.pop %v1640
        %v1642 = vsel %vm836, %v1641, 0.0
        %1643 = vadd.xlane.f32.xlu0 %v1642
        %v1644 = vpop.xlane.xlu0 %1643
        %v1645 = vrcp.pop %v1644
        %v1646 = vmul.f32 %v1641, %v1645
        %1647 = vrot.lane.b32.xlu0 %v831, 104
        %v1648 = vpop.permute.xlu0 %1647
        %v1651 = vsel %vm836, %v1646, 0
        %1653 = vmatprep.subr.mxu0 0.0
        %1654 = vmatpush1.msra.mxu0 0.0
        %1655 = vmatprep.subr.mxu0 0.0
        %1656 = vmatpush1.msra.mxu0 0.0
        %1657 = vmatprep.subr.mxu0 0.0
        %1658 = vmatpush1.msra.mxu0 0.0
        %1659 = vmatprep.subr.mxu0 0.0
        %1660 = vmatpush1.msra.mxu0 0.0
        %1661 = vmatprep.subr.mxu0 0.0
        %1662 = vmatpush1.msra.mxu0 0.0
        %1663 = vmatprep.subr.mxu0 0.0
        %1664 = vmatpush1.msra.mxu0 0.0
        %1665 = vmatprep.subr.mxu0 0.0
        %1666 = vmatpush1.msra.mxu0 0.0
        %1667 = vmatprep.subr.mxu0 0.0
        %1668 = vmatpush1.msra.mxu0 0.0
        %1669 = vmatprep.subr.mxu0 0.0
        %1670 = vmatpush1.msra.mxu0 0.0
        %1671 = vmatprep.subr.mxu0 0.0
        %1672 = vmatpush1.msra.mxu0 0.0
        %1673 = vmatprep.subr.mxu0 0.0
        %1674 = vmatpush1.msra.mxu0 0.0
        %1675 = vmatprep.subr.mxu0 0.0
        %1676 = vmatpush1.msra.mxu0 0.0
        %1677 = vmatprep.subr.mxu0 0.0
        %1678 = vmatpush1.msra.mxu0 0.0
        %1679 = vmatprep.subr.mxu0 0.0
        %1680 = vmatpush1.msra.mxu0 0.0
        %1681 = vmatprep.subr.mxu0 0.0
        %1682 = vmatpush1.msra.mxu0 0.0
        %1683 = vmatprep.subr.mxu0 0.0
        %1684 = vmatpush1.msra.mxu0 %v1648
        %1685 = vmatprep.subr.mxu0 0.0
        %1686 = vmatpush2.msra.mxu0 0.0
        %1687 = vmatprep.subr.mxu0 0.0
        %1688 = vmatpush2.msra.mxu0 0.0
        %1689 = vmatprep.subr.mxu0 0.0
        %1690 = vmatpush2.msra.mxu0 0.0
        %1691 = vmatprep.subr.mxu0 0.0
        %1692 = vmatpush2.msra.mxu0 0.0
        %1693 = vmatprep.subr.mxu0 0.0
        %1694 = vmatpush2.msra.mxu0 0.0
        %1695 = vmatprep.subr.mxu0 0.0
        %1696 = vmatpush2.msra.mxu0 0.0
        %1697 = vmatprep.subr.mxu0 0.0
        %1698 = vmatpush2.msra.mxu0 0.0
        %1699 = vmatprep.subr.mxu0 0.0
        %1700 = vmatpush2.msra.mxu0 0.0
        %1701 = vmatprep.subr.mxu0 0.0
        %1702 = vmatpush2.msra.mxu0 0.0
        %1703 = vmatprep.subr.mxu0 0.0
        %1704 = vmatpush2.msra.mxu0 0.0
        %1705 = vmatprep.subr.mxu0 0.0
        %1706 = vmatpush2.msra.mxu0 0.0
        %1707 = vmatprep.subr.mxu0 0.0
        %1708 = vmatpush2.msra.mxu0 0.0
        %1709 = vmatprep.subr.mxu0 0.0
        %1710 = vmatpush2.msra.mxu0 0.0
        %1711 = vmatprep.subr.mxu0 0.0
        %1712 = vmatpush2.msra.mxu0 0.0
        %1713 = vmatprep.subr.mxu0 0.0
        %1714 = vmatpush2.msra.mxu0 0.0
        %1715 = vmatprep.subr.mxu0 0.0
        %1716 = vmatpush2.msra.mxu0 0.0
        %1717 = vmatprep.mubr.f32.mxu0 0.0
        %1718 = vmatmul.mubr.f32.gmra.mxu0 %v1651
        %v1719 = vpop.f32.mrf.mxu0
        %v1720 = vadd.f32 0.0, %v1719
        %v1721 = vpop.f32.mrf.mxu0
        %1722 = vdwg.mxu0
        %v1723 = vld [vmem:[#allocation13 + $0x18] sm:$0xff]
        %v1725 = vsel %vm836, %v1720, 0
        %1727 = vmatprep.subr.mxu0 0.0
        %1728 = vmatpush1.msra.mxu0 0.0
        %1729 = vmatprep.subr.mxu0 0.0
        %1730 = vmatpush1.msra.mxu0 0.0
        %1731 = vmatprep.subr.mxu0 0.0
        %1732 = vmatpush1.msra.mxu0 0.0
        %1733 = vmatprep.subr.mxu0 0.0
        %1734 = vmatpush1.msra.mxu0 0.0
        %1735 = vmatprep.subr.mxu0 0.0
        %1736 = vmatpush1.msra.mxu0 0.0
        %1737 = vmatprep.subr.mxu0 0.0
        %1738 = vmatpush1.msra.mxu0 0.0
        %1739 = vmatprep.subr.mxu0 0.0
        %1740 = vmatpush1.msra.mxu0 0.0
        %1741 = vmatprep.subr.mxu0 0.0
        %1742 = vmatpush1.msra.mxu0 0.0
        %1743 = vmatprep.subr.mxu0 0.0
        %1744 = vmatpush1.msra.mxu0 0.0
        %1745 = vmatprep.subr.mxu0 0.0
        %1746 = vmatpush1.msra.mxu0 0.0
        %1747 = vmatprep.subr.mxu0 0.0
        %1748 = vmatpush1.msra.mxu0 0.0
        %1749 = vmatprep.subr.mxu0 0.0
        %1750 = vmatpush1.msra.mxu0 0.0
        %1751 = vmatprep.subr.mxu0 0.0
        %1752 = vmatpush1.msra.mxu0 0.0
        %1753 = vmatprep.subr.mxu0 0.0
        %1754 = vmatpush1.msra.mxu0 0.0
        %1755 = vmatprep.subr.mxu0 0.0
        %1756 = vmatpush1.msra.mxu0 0.0
        %1757 = vmatprep.subr.mxu0 0.0
        %1758 = vmatpush1.msra.mxu0 %v1723
        %1759 = vmatprep.subr.mxu0 0.0
        %1760 = vmatpush2.msra.mxu0 0.0
        %1761 = vmatprep.subr.mxu0 0.0
        %1762 = vmatpush2.msra.mxu0 0.0
        %1763 = vmatprep.subr.mxu0 0.0
        %1764 = vmatpush2.msra.mxu0 0.0
        %1765 = vmatprep.subr.mxu0 0.0
        %1766 = vmatpush2.msra.mxu0 0.0
        %1767 = vmatprep.subr.mxu0 0.0
        %1768 = vmatpush2.msra.mxu0 0.0
        %1769 = vmatprep.subr.mxu0 0.0
        %1770 = vmatpush2.msra.mxu0 0.0
        %1771 = vmatprep.subr.mxu0 0.0
        %1772 = vmatpush2.msra.mxu0 0.0
        %1773 = vmatprep.subr.mxu0 0.0
        %1774 = vmatpush2.msra.mxu0 0.0
        %1775 = vmatprep.subr.mxu0 0.0
        %1776 = vmatpush2.msra.mxu0 0.0
        %1777 = vmatprep.subr.mxu0 0.0
        %1778 = vmatpush2.msra.mxu0 0.0
        %1779 = vmatprep.subr.mxu0 0.0
        %1780 = vmatpush2.msra.mxu0 0.0
        %1781 = vmatprep.subr.mxu0 0.0
        %1782 = vmatpush2.msra.mxu0 0.0
        %1783 = vmatprep.subr.mxu0 0.0
        %1784 = vmatpush2.msra.mxu0 0.0
        %1785 = vmatprep.subr.mxu0 0.0
        %1786 = vmatpush2.msra.mxu0 0.0
        %1787 = vmatprep.subr.mxu0 0.0
        %1788 = vmatpush2.msra.mxu0 0.0
        %1789 = vmatprep.subr.mxu0 0.0
        %1790 = vmatpush2.msra.mxu0 0.0
        %1791 = vmatprep.mubr.f32.mxu0 0.0
        %1792 = vmatmul.mubr.f32.gmra.mxu0 %v1725
        %v1793 = vpop.f32.mrf.mxu0
        %v1794 = vadd.f32 0.0, %v1793
        %v1795 = vpop.f32.mrf.mxu0
        %1796 = vdwg.mxu0
        %v1797 = vadd.f32 %v1556, %v1794
        %v1798 = vld [vmem:[%s11] sm:$0x1]
        %v1800 = vlaneseq
        %v1801 = vshrl.u32 %v1800, 7
        %v1802 = vsub.s32 0, %v1801
        %v1803 = vrot.slane %v1798, %v1802
        %v1805 = vadd.f32 %v1797, %v1803
        %1806 = vst.msk [vmem:[%s570] sm:$0xff] %vm591, %v1805
        %s1807 = sand.u32 %s314, 1
        %s1808 = scalar_lea.sflag [#allocation4], %s1807
        %s1809 = sand.u32 %s314, 1
        %s1810 = smul.addr %s1809, 8
        %s1811 = scalar_lea.vmem [#allocation14], %s1810
        // Predicated region
        $region97: #{tpu_custom_call.1} parent=67 // pred_check
          %p1812 = pneg %p324
        $region98: #{tpu_custom_call.1} parent=67 // pred_check_branch
          %1814 = sbr.rel (%p1812) target = $region100
        $region99: #{tpu_custom_call.1} parent=67 // pred_region
          %s1816 = ssub.s32 128, 128
          %1817 = vsyncadd %s1808, %s1816
          %s1818 = smul.addr %s34, 128
          %s1819 = scalar_lea.hbm %s12, %s1818
          %s1821 = sshll.u32 %s1811, 4
          %s1822 = int_to_ptr.vmem [resolvable:$true] %s1821
          %1824 = dma.vmem_to_hbm [thread:$0]  %s1822, 128, %s1819, %s1808
        $region100: #{tpu_custom_call.1} parent=67 // pred_fallthru
          _
      $region68: #{tpu_custom_call.1} parent=5 // pred_fallthru
        _
      %p1825 = scmp.le.s32.totalorder 2, %s29
      // Predicated region
      $region101: #{tpu_custom_call.1} parent=5 // pred_check
        %p1826 = pneg %p1825
      $region102: #{tpu_custom_call.1} parent=5 // pred_check_branch
        %1828 = sbr.rel (%p1826) target = $region104
      $region103: #{tpu_custom_call.1} parent=5 // pred_region
        %s1829 = ssub.s32 %s29, 2
        // Predicated region
        $region105: #{tpu_custom_call.1} parent=103 // pred_check
          %p1830 = pneg %p330
        $region106: #{tpu_custom_call.1} parent=103 // pred_check_branch
          %1832 = sbr.rel (%p1830) target = $region108
        $region107: #{tpu_custom_call.1} parent=103 // pred_region
          %s1833 = sand.u32 %s315, 1
          %s1834 = scalar_lea.sflag [#allocation4], %s1833
          %s1835 = sand.u32 %s315, 1
          %s1836 = smul.addr %s1835, 8
          %s1837 = scalar_lea.vmem [#allocation14], %s1836
          %1838 = dma.done %s1834, 128
        $region108: #{tpu_custom_call.1} parent=103 // pred_fallthru
          _
      $region104: #{tpu_custom_call.1} parent=5 // pred_fallthru
        _
    $region6: #{tpu_custom_call.1} parent=1 // loop_footer
      %s33 = sadd.s32 1, %s29
    $region7: #{tpu_custom_call.1} parent=1 // loop_footer_branch
      %28 = sbr.rel target = $region3
    $region8: #{tpu_custom_call.1} parent=1 // loop_exit
      _
    %1839 = vsyncpa [#allocation3], 1
    %s1840 = scalar_lea.sflag [#allocation3], 1
    %1841 = vsyncpa %s1840, 1
    %1842 = vsyncpa [#allocation6], 1
    %s1843 = scalar_lea.sflag [#allocation6], 1
    %1844 = vsyncpa %s1843, 1
    %1845 = vsyncpa [#allocation9], 1
    %1846 = vsyncpa [#allocation12], 1
    %1847 = vsyncpa [#allocation4], 1
    %s1848 = scalar_lea.sflag [#allocation4], 1
    %1849 = vsyncpa %s1848, 1

// kernel: tpu_custom_call.1
$region0: #{tpu_custom_call.1}
  #allocation0 [shape = 'u32[]', space=smem, size = 0x4, offset = 0x4, fixed_abs, tag = 'smem constant byte address 0x4 - core index']
  #allocation1 [shape = 'u32[144,128]{1,0:T(1,128)}', space=vmem, size = 0x12000, scoped, tag = 'internal scratch']
  %s0 = inlined_call_operand.hbm [shape: f32[2,8,32], index: 0, kind: input, shape index: {}]
  %s1 = inlined_call_operand.hbm [shape: f32[2,8,32], index: 1, kind: input, shape index: {}]
  %s2 = inlined_call_operand.hbm [shape: f32[2,8,32], index: 2, kind: input, shape index: {}]
  %s3 = inlined_call_operand.vmem [shape: s8[2,8,8], index: 3, kind: input, shape index: {}]
  %s4 = inlined_call_operand.hbm [shape: f32[32,32], index: 4, kind: input, shape index: {}]
  %s5 = inlined_call_operand.vmem [shape: f32[1,32], index: 5, kind: input, shape index: {}]
  %s6 = inlined_call_operand.hbm [shape: f32[32,32], index: 6, kind: input, shape index: {}]
  %s7 = inlined_call_operand.vmem [shape: f32[1,32], index: 7, kind: input, shape index: {}]
  %s8 = inlined_call_operand.hbm [shape: f32[32,32], index: 8, kind: input, shape index: {}]
  %s9 = inlined_call_operand.vmem [shape: f32[1,32], index: 9, kind: input, shape index: {}]
  %s10 = inlined_call_operand.hbm [shape: f32[32,32], index: 10, kind: input, shape index: {}]
  %s11 = inlined_call_operand.vmem [shape: f32[1,32], index: 11, kind: input, shape index: {}]
  %s12 = inlined_call_operand.hbm [shape: f32[2,8,32], index: 12, kind: output, shape index: {}]
  %s13 = sld [smem:[#allocation0]]
  $region109: #{tpu_custom_call.1} parent=0
    _
  %s15 = ssub.s32 1, %s13
  %s16 = scalar_select 0, %s15, %s13
  $region1: #{tpu_custom_call.1} parent=0
    #allocation2 [shape = 'u8[8192]{0}', space=vmem, size = 0x2000, scoped, tag = 'input window, operand 0']
    #allocation3 [shape = 's32[2]{0}', space=sflag, size = 0x8, scoped, tag = 'scoped memory for tpu_custom_call.1']
    #allocation4 [shape = 's32[2]{0}', space=sflag, size = 0x8, scoped, tag = 'scoped memory for tpu_custom_call.1']
    #allocation5 [shape = 'u8[8192]{0}', space=vmem, size = 0x2000, scoped, tag = 'input window, operand 1']
    #allocation6 [shape = 's32[2]{0}', space=sflag, size = 0x8, scoped, tag = 'scoped memory for tpu_custom_call.1']
    #allocation7 [shape = 'u8[8192]{0}', space=vmem, size = 0x2000, scoped, tag = 'input window, operand 2']
    #allocation8 [shape = 'u8[16384]{0}', space=vmem, size = 0x4000, scoped, tag = 'input window, operand 4, single buffered']
    #allocation9 [shape = 's32[1]{0}', space=sflag, size = 0x4, scoped, tag = 'scoped memory for tpu_custom_call.1']
    #allocation10 [shape = 'u8[16384]{0}', space=vmem, size = 0x4000, scoped, tag = 'input window, operand 6, single buffered']
    #allocation11 [shape = 'u8[16384]{0}', space=vmem, size = 0x4000, scoped, tag = 'input window, operand 8, single buffered']
    #allocation12 [shape = 's32[1]{0}', space=sflag, size = 0x4, scoped, tag = 'scoped memory for tpu_custom_call.1']
    #allocation13 [shape = 'u8[16384]{0}', space=vmem, size = 0x4000, scoped, tag = 'input window, operand 10, single buffered']
    #allocation14 [shape = 'u8[8192]{0}', space=vmem, size = 0x2000, scoped, tag = 'output window, operand 0']
    %17 = vsyncpa [#allocation3], 0
    %s18 = scalar_lea.sflag [#allocation3], 1
    %19 = vsyncpa %s18, 0
    %20 = vsyncpa [#allocation6], 0
    %s21 = scalar_lea.sflag [#allocation6], 1
    %22 = vsyncpa %s21, 0
    %23 = vsyncpa [#allocation9], 0
    %24 = vsyncpa [#allocation12], 0
    %25 = vsyncpa [#allocation4], 0
    %s26 = scalar_lea.sflag [#allocation4], 1
    %27 = vsyncpa %s26, 0
    loop: start=0, step=1, limit=4
    $region2: #{tpu_custom_call.1} parent=1 // loop_pre_header
      _
    $region3: #{tpu_custom_call.1} parent=1 // loop_header
      %s29 = sphi 0, %s33
      %p30 = scmp.ge.s32.totalorder %s29, 4
      %s39 = sphi 0, %s41
      %s42 = sphi 0, %s39
      %s43 = sphi 0, %s42
      %s59 = sphi 0, %s43
      %s65 = sphi 0, %s67
      %s68 = sphi 0, %s65
      %s69 = sphi 0, %s68
      %s85 = sphi 0, %s69
      %s91 = sphi 0, %s93
      %s94 = sphi 0, %s91
      %s95 = sphi 0, %s94
      %s111 = sphi 0, %s95
      %s117 = sphi 0, %s119
      %s120 = sphi 0, %s117
      %s121 = sphi 0, %s120
      %s137 = sphi 0, %s121
      %s141 = sphi 0, %s141
      %s143 = sphi 0, %s141
      %s144 = sphi 0, %s143
      %s158 = sphi 0, %s144
      %s162 = sphi 0, %s162
      %s164 = sphi 0, %s162
      %s165 = sphi 0, %s164
      %s179 = sphi 0, %s165
      %s183 = sphi 0, %s183
      %s185 = sphi 0, %s183
      %s186 = sphi 0, %s185
      %s200 = sphi 0, %s186
      %s204 = sphi 0, %s204
      %s206 = sphi 0, %s204
      %s207 = sphi 0, %s206
      %s221 = sphi 0, %s207
      %s225 = sphi 0, %s225
      %s227 = sphi 0, %s225
      %s228 = sphi 0, %s227
      %s242 = sphi 0, %s228
      %s246 = sphi 0, %s246
      %s248 = sphi 0, %s246
      %s249 = sphi 0, %s248
      %s263 = sphi 0, %s249
      %s267 = sphi 0, %s267
      %s269 = sphi 0, %s267
      %s270 = sphi 0, %s269
      %s284 = sphi 0, %s270
      %s288 = sphi 0, %s288
      %s290 = sphi 0, %s288
      %s291 = sphi 0, %s290
      %s305 = sphi 0, %s291
      %s311 = sphi 0, %s313
      %s314 = sphi 0, %s311
      %s315 = sphi 0, %s314
      %s331 = sphi 0, %s315
    $region4: #{tpu_custom_call.1} parent=1 // loop_header_branch
      %32 = sbr.rel (%p30) target = $region8
    $region5: #{tpu_custom_call.1} parent=1 // loop_body
      %s34 = ssub.s32 %s29, 1
      %s35 = ssub.s32 %s29, 2
      %s36 = sadd.s32 %s29, 1
      %s37 = ssub.s32 %s29, %s36
      %p38 = scmp.eq.s32.totalorder %s37, 0
      %s40 = sadd.s32 %s39, 1
      %s41 = scalar_select %p38, %s39, %s40
      %p44 = pneg %p38
      %p45 = scmp.eq.s32.totalorder %s29, 1
      %p46 = por %p44, %p45
      %p47 = scmp.ne.s32.totalorder %s39, %s42
      %p48 = scmp.eq.s32.totalorder %s29, 0
      %p49 = por %p47, %p48
      %p50 = scmp.ne.s32.totalorder %s39, %s42
      %p51 = scmp.eq.s32.totalorder %s34, 1
      %p52 = por %p50, %p51
      %p53 = scmp.ne.s32.totalorder %s42, %s43
      %p54 = scmp.eq.s32.totalorder %s34, 0
      %p55 = por %p53, %p54
      %p56 = scmp.ne.s32.totalorder %s42, %s43
      %p57 = scmp.eq.s32.totalorder %s35, 1
      %p58 = por %p56, %p57
      %p60 = scmp.ne.s32.totalorder %s43, %s59
      %p61 = scmp.eq.s32.totalorder %s35, 0
      %p62 = por %p60, %p61
      %s63 = ssub.s32 %s29, %s36
      %p64 = scmp.eq.s32.totalorder %s63, 0
      %s66 = sadd.s32 %s65, 1
      %s67 = scalar_select %p64, %s65, %s66
      %p70 = pneg %p64
      %p71 = scmp.eq.s32.totalorder %s29, 1
      %p72 = por %p70, %p71
      %p73 = scmp.ne.s32.totalorder %s65, %s68
      %p74 = scmp.eq.s32.totalorder %s29, 0
      %p75 = por %p73, %p74
      %p76 = scmp.ne.s32.totalorder %s65, %s68
      %p77 = scmp.eq.s32.totalorder %s34, 1
      %p78 = por %p76, %p77
      %p79 = scmp.ne.s32.totalorder %s68, %s69
      %p80 = scmp.eq.s32.totalorder %s34, 0
      %p81 = por %p79, %p80
      %p82 = scmp.ne.s32.totalorder %s68, %s69
      %p83 = scmp.eq.s32.totalorder %s35, 1
      %p84 = por %p82, %p83
      %p86 = scmp.ne.s32.totalorder %s69, %s85
      %p87 = scmp.eq.s32.totalorder %s35, 0
      %p88 = por %p86, %p87
      %s89 = ssub.s32 %s29, %s36
      %p90 = scmp.eq.s32.totalorder %s89, 0
      %s92 = sadd.s32 %s91, 1
      %s93 = scalar_select %p90, %s91, %s92
      %p96 = pneg %p90
      %p97 = scmp.eq.s32.totalorder %s29, 1
      %p98 = por %p96, %p97
      %p99 = scmp.ne.s32.totalorder %s91, %s94
      %p100 = scmp.eq.s32.totalorder %s29, 0
      %p101 = por %p99, %p100
      %p102 = scmp.ne.s32.totalorder %s91, %s94
      %p103 = scmp.eq.s32.totalorder %s34, 1
      %p104 = por %p102, %p103
      %p105 = scmp.ne.s32.totalorder %s94, %s95
      %p106 = scmp.eq.s32.totalorder %s34, 0
      %p107 = por %p105, %p106
      %p108 = scmp.ne.s32.totalorder %s94, %s95
      %p109 = scmp.eq.s32.totalorder %s35, 1
      %p110 = por %p108, %p109
      %p112 = scmp.ne.s32.totalorder %s95, %s111
      %p113 = scmp.eq.s32.totalorder %s35, 0
      %p114 = por %p112, %p113
      %s115 = ssub.s32 %s29, %s36
      %p116 = scmp.eq.s32.totalorder %s115, 0
      %s118 = sadd.s32 %s117, 1
      %s119 = scalar_select %p116, %s117, %s118
      %p122 = pneg %p116
      %p123 = scmp.eq.s32.totalorder %s29, 1
      %p124 = por %p122, %p123
      %p125 = scmp.ne.s32.totalorder %s117, %s120
      %p126 = scmp.eq.s32.totalorder %s29, 0
      %p127 = por %p125, %p126
      %p128 = scmp.ne.s32.totalorder %s117, %s120
      %p129 = scmp.eq.s32.totalorder %s34, 1
      %p130 = por %p128, %p129
      %p131 = scmp.ne.s32.totalorder %s120, %s121
      %p132 = scmp.eq.s32.totalorder %s34, 0
      %p133 = por %p131, %p132
      %p134 = scmp.ne.s32.totalorder %s120, %s121
      %p135 = scmp.eq.s32.totalorder %s35, 1
      %p136 = por %p134, %p135
      %p138 = scmp.ne.s32.totalorder %s121, %s137
      %p139 = scmp.eq.s32.totalorder %s35, 0
      %p140 = por %p138, %p139
      %s142 = sadd.s32 %s141, 1
      %p145 = scmp.eq.s32.totalorder %s29, 1
      %p146 = scmp.ne.s32.totalorder %s141, %s143
      %p147 = scmp.eq.s32.totalorder %s29, 0
      %p148 = por %p146, %p147
      %p149 = scmp.ne.s32.totalorder %s141, %s143
      %p150 = scmp.eq.s32.totalorder %s34, 1
      %p151 = por %p149, %p150
      %p152 = scmp.ne.s32.totalorder %s143, %s144
      %p153 = scmp.eq.s32.totalorder %s34, 0
      %p154 = por %p152, %p153
      %p155 = scmp.ne.s32.totalorder %s143, %s144
      %p156 = scmp.eq.s32.totalorder %s35, 1
      %p157 = por %p155, %p156
      %p159 = scmp.ne.s32.totalorder %s144, %s158
      %p160 = scmp.eq.s32.totalorder %s35, 0
      %p161 = por %p159, %p160
      %s163 = sadd.s32 %s162, 1
      %p166 = scmp.eq.s32.totalorder %s29, 1
      %p167 = scmp.ne.s32.totalorder %s162, %s164
      %p168 = scmp.eq.s32.totalorder %s29, 0
      %p169 = por %p167, %p168
      %p170 = scmp.ne.s32.totalorder %s162, %s164
      %p171 = scmp.eq.s32.totalorder %s34, 1
      %p172 = por %p170, %p171
      %p173 = scmp.ne.s32.totalorder %s164, %s165
      %p174 = scmp.eq.s32.totalorder %s34, 0
      %p175 = por %p173, %p174
      %p176 = scmp.ne.s32.totalorder %s164, %s165
      %p177 = scmp.eq.s32.totalorder %s35, 1
      %p178 = por %p176, %p177
      %p180 = scmp.ne.s32.totalorder %s165, %s179
      %p181 = scmp.eq.s32.totalorder %s35, 0
      %p182 = por %p180, %p181
      %s184 = sadd.s32 %s183, 1
      %p187 = scmp.eq.s32.totalorder %s29, 1
      %p188 = scmp.ne.s32.totalorder %s183, %s185
      %p189 = scmp.eq.s32.totalorder %s29, 0
      %p190 = por %p188, %p189
      %p191 = scmp.ne.s32.totalorder %s183, %s185
      %p192 = scmp.eq.s32.totalorder %s34, 1
      %p193 = por %p191, %p192
      %p194 = scmp.ne.s32.totalorder %s185, %s186
      %p195 = scmp.eq.s32.totalorder %s34, 0
      %p196 = por %p194, %p195
      %p197 = scmp.ne.s32.totalorder %s185, %s186
      %p198 = scmp.eq.s32.totalorder %s35, 1
      %p199 = por %p197, %p198
      %p201 = scmp.ne.s32.totalorder %s186, %s200
      %p202 = scmp.eq.s32.totalorder %s35, 0
      %p203 = por %p201, %p202
      %s205 = sadd.s32 %s204, 1
      %p208 = scmp.eq.s32.totalorder %s29, 1
      %p209 = scmp.ne.s32.totalorder %s204, %s206
      %p210 = scmp.eq.s32.totalorder %s29, 0
      %p211 = por %p209, %p210
      %p212 = scmp.ne.s32.totalorder %s204, %s206
      %p213 = scmp.eq.s32.totalorder %s34, 1
      %p214 = por %p212, %p213
      %p215 = scmp.ne.s32.totalorder %s206, %s207
      %p216 = scmp.eq.s32.totalorder %s34, 0
      %p217 = por %p215, %p216
      %p218 = scmp.ne.s32.totalorder %s206, %s207
      %p219 = scmp.eq.s32.totalorder %s35, 1
      %p220 = por %p218, %p219
      %p222 = scmp.ne.s32.totalorder %s207, %s221
      %p223 = scmp.eq.s32.totalorder %s35, 0
      %p224 = por %p222, %p223
      %s226 = sadd.s32 %s225, 1
      %p229 = scmp.eq.s32.totalorder %s29, 1
      %p230 = scmp.ne.s32.totalorder %s225, %s227
      %p231 = scmp.eq.s32.totalorder %s29, 0
      %p232 = por %p230, %p231
      %p233 = scmp.ne.s32.totalorder %s225, %s227
      %p234 = scmp.eq.s32.totalorder %s34, 1
      %p235 = por %p233, %p234
      %p236 = scmp.ne.s32.totalorder %s227, %s228
      %p237 = scmp.eq.s32.totalorder %s34, 0
      %p238 = por %p236, %p237
      %p239 = scmp.ne.s32.totalorder %s227, %s228
      %p240 = scmp.eq.s32.totalorder %s35, 1
      %p241 = por %p239, %p240
      %p243 = scmp.ne.s32.totalorder %s228, %s242
      %p244 = scmp.eq.s32.totalorder %s35, 0
      %p245 = por %p243, %p244
      %s247 = sadd.s32 %s246, 1
      %p250 = scmp.eq.s32.totalorder %s29, 1
      %p251 = scmp.ne.s32.totalorder %s246, %s248
      %p252 = scmp.eq.s32.totalorder %s29, 0
      %p253 = por %p251, %p252
      %p254 = scmp.ne.s32.totalorder %s246, %s248
      %p255 = scmp.eq.s32.totalorder %s34, 1
      %p256 = por %p254, %p255
      %p257 = scmp.ne.s32.totalorder %s248, %s249
      %p258 = scmp.eq.s32.totalorder %s34, 0
      %p259 = por %p257, %p258
      %p260 = scmp.ne.s32.totalorder %s248, %s249
      %p261 = scmp.eq.s32.totalorder %s35, 1
      %p262 = por %p260, %p261
      %p264 = scmp.ne.s32.totalorder %s249, %s263
      %p265 = scmp.eq.s32.totalorder %s35, 0
      %p266 = por %p264, %p265
      %s268 = sadd.s32 %s267, 1
      %p271 = scmp.eq.s32.totalorder %s29, 1
      %p272 = scmp.ne.s32.totalorder %s267, %s269
      %p273 = scmp.eq.s32.totalorder %s29, 0
      %p274 = por %p272, %p273
      %p275 = scmp.ne.s32.totalorder %s267, %s269
      %p276 = scmp.eq.s32.totalorder %s34, 1
      %p277 = por %p275, %p276
      %p278 = scmp.ne.s32.totalorder %s269, %s270
      %p279 = scmp.eq.s32.totalorder %s34, 0
      %p280 = por %p278, %p279
      %p281 = scmp.ne.s32.totalorder %s269, %s270
      %p282 = scmp.eq.s32.totalorder %s35, 1
      %p283 = por %p281, %p282
      %p285 = scmp.ne.s32.totalorder %s270, %s284
      %p286 = scmp.eq.s32.totalorder %s35, 0
      %p287 = por %p285, %p286
      %s289 = sadd.s32 %s288, 1
      %p292 = scmp.eq.s32.totalorder %s29, 1
      %p293 = scmp.ne.s32.totalorder %s288, %s290
      %p294 = scmp.eq.s32.totalorder %s29, 0
      %p295 = por %p293, %p294
      %p296 = scmp.ne.s32.totalorder %s288, %s290
      %p297 = scmp.eq.s32.totalorder %s34, 1
      %p298 = por %p296, %p297
      %p299 = scmp.ne.s32.totalorder %s290, %s291
      %p300 = scmp.eq.s32.totalorder %s34, 0
      %p301 = por %p299, %p300
      %p302 = scmp.ne.s32.totalorder %s290, %s291
      %p303 = scmp.eq.s32.totalorder %s35, 1
      %p304 = por %p302, %p303
      %p306 = scmp.ne.s32.totalorder %s291, %s305
      %p307 = scmp.eq.s32.totalorder %s35, 0
      %p308 = por %p306, %p307
      %s309 = ssub.s32 %s29, %s36
      %p310 = scmp.eq.s32.totalorder %s309, 0
      %s312 = sadd.s32 %s311, 1
      %s313 = scalar_select %p310, %s311, %s312
      %p316 = pneg %p310
      %p317 = scmp.eq.s32.totalorder %s29, 1
      %p318 = por %p316, %p317
      %p319 = scmp.ne.s32.totalorder %s311, %s314
      %p320 = scmp.eq.s32.totalorder %s29, 0
      %p321 = por %p319, %p320
      %p322 = scmp.ne.s32.totalorder %s311, %s314
      %p323 = scmp.eq.s32.totalorder %s34, 1
      %p324 = por %p322, %p323
      %p325 = scmp.ne.s32.totalorder %s314, %s315
      %p326 = scmp.eq.s32.totalorder %s34, 0
      %p327 = por %p325, %p326
      %p328 = scmp.ne.s32.totalorder %s314, %s315
      %p329 = scmp.eq.s32.totalorder %s35, 1
      %p330 = por %p328, %p329
      %p332 = scmp.ne.s32.totalorder %s315, %s331
      %p333 = scmp.eq.s32.totalorder %s35, 0
      %p334 = por %p332, %p333
      %p335 = scmp.le.s32.totalorder 1, %s29
      %p336 = scmp.lt.s32.totalorder %s29, 3
      %p337 = pnand %p335, %p336
      %p338 = pneg %p337
      // Predicated region
      $region9: #{tpu_custom_call.1} parent=5 // pred_check
        _
      $region10: #{tpu_custom_call.1} parent=5 // pred_check_branch
        %340 = sbr.rel (%p337) target = $region12
      $region11: #{tpu_custom_call.1} parent=5 // pred_region
        %s341 = ssub.s32 %s29, 1
        // Predicated region
        $region13: #{tpu_custom_call.1} parent=11 // pred_check
          %p342 = pneg %p154
        $region14: #{tpu_custom_call.1} parent=11 // pred_check_branch
          %344 = sbr.rel (%p342) target = $region16
        $region15: #{tpu_custom_call.1} parent=11 // pred_region
          %s346 = ssub.s32 512, 512
          %347 = vsyncadd [#allocation9], %s346
          %s348 = sshll.u32 [#allocation8], 4
          %s349 = int_to_ptr.vmem [resolvable:$true] %s348
          %354 = dma.hbm_to_vmem [thread:$0]  %s4, 512, %s349, [#allocation9], 128, 128, 8
        $region16: #{tpu_custom_call.1} parent=11 // pred_fallthru
          _
        // Predicated region
        $region17: #{tpu_custom_call.1} parent=11 // pred_check
          %p355 = pneg %p175
        $region18: #{tpu_custom_call.1} parent=11 // pred_check_branch
          %357 = sbr.rel (%p355) target = $region20
        $region19: #{tpu_custom_call.1} parent=11 // pred_region
          _
        $region20: #{tpu_custom_call.1} parent=11 // pred_fallthru
          _
        // Predicated region
        $region21: #{tpu_custom_call.1} parent=11 // pred_check
          %p358 = pneg %p196
        $region22: #{tpu_custom_call.1} parent=11 // pred_check_branch
          %360 = sbr.rel (%p358) target = $region24
        $region23: #{tpu_custom_call.1} parent=11 // pred_region
          %s362 = ssub.s32 512, 512
          %363 = vsyncadd [#allocation9], %s362
          %s364 = sshll.u32 [#allocation10], 4
          %s365 = int_to_ptr.vmem [resolvable:$true] %s364
          %370 = dma.hbm_to_vmem [thread:$0]  %s6, 512, %s365, [#allocation9], 128, 128, 8
        $region24: #{tpu_custom_call.1} parent=11 // pred_fallthru
          _
        // Predicated region
        $region25: #{tpu_custom_call.1} parent=11 // pred_check
          %p371 = pneg %p217
        $region26: #{tpu_custom_call.1} parent=11 // pred_check_branch
          %373 = sbr.rel (%p371) target = $region28
        $region27: #{tpu_custom_call.1} parent=11 // pred_region
          _
        $region28: #{tpu_custom_call.1} parent=11 // pred_fallthru
          _
        // Predicated region
        $region29: #{tpu_custom_call.1} parent=11 // pred_check
          %p374 = pneg %p238
        $region30: #{tpu_custom_call.1} parent=11 // pred_check_branch
          %376 = sbr.rel (%p374) target = $region32
        $region31: #{tpu_custom_call.1} parent=11 // pred_region
          %s378 = ssub.s32 512, 512
          %379 = vsyncadd [#allocation12], %s378
          %s380 = sshll.u32 [#allocation11], 4
          %s381 = int_to_ptr.vmem [resolvable:$true] %s380
          %386 = dma.hbm_to_vmem [thread:$0]  %s8, 512, %s381, [#allocation12], 128, 128, 8
        $region32: #{tpu_custom_call.1} parent=11 // pred_fallthru
          _
        // Predicated region
        $region33: #{tpu_custom_call.1} parent=11 // pred_check
          %p387 = pneg %p259
        $region34: #{tpu_custom_call.1} parent=11 // pred_check_branch
          %389 = sbr.rel (%p387) target = $region36
        $region35: #{tpu_custom_call.1} parent=11 // pred_region
          _
        $region36: #{tpu_custom_call.1} parent=11 // pred_fallthru
          _
        // Predicated region
        $region37: #{tpu_custom_call.1} parent=11 // pred_check
          %p390 = pneg %p280
        $region38: #{tpu_custom_call.1} parent=11 // pred_check_branch
          %392 = sbr.rel (%p390) target = $region40
        $region39: #{tpu_custom_call.1} parent=11 // pred_region
          %s394 = ssub.s32 512, 512
          %395 = vsyncadd [#allocation12], %s394
          %s396 = sshll.u32 [#allocation13], 4
          %s397 = int_to_ptr.vmem [resolvable:$true] %s396
          %402 = dma.hbm_to_vmem [thread:$0]  %s10, 512, %s397, [#allocation12], 128, 128, 8
        $region40: #{tpu_custom_call.1} parent=11 // pred_fallthru
          _
        // Predicated region
        $region41: #{tpu_custom_call.1} parent=11 // pred_check
          %p403 = pneg %p301
        $region42: #{tpu_custom_call.1} parent=11 // pred_check_branch
          %405 = sbr.rel (%p403) target = $region44
        $region43: #{tpu_custom_call.1} parent=11 // pred_region
          _
        $region44: #{tpu_custom_call.1} parent=11 // pred_fallthru
          _
      $region12: #{tpu_custom_call.1} parent=5 // pred_fallthru
        _
      %p406 = scmp.lt.s32.totalorder %s29, 2
      // Predicated region
      $region45: #{tpu_custom_call.1} parent=5 // pred_check
        %p407 = pneg %p406
      $region46: #{tpu_custom_call.1} parent=5 // pred_check_branch
        %409 = sbr.rel (%p407) target = $region48
      $region47: #{tpu_custom_call.1} parent=5 // pred_region
        // Predicated region
        $region49: #{tpu_custom_call.1} parent=47 // pred_check
          %p410 = pneg %p49
        $region50: #{tpu_custom_call.1} parent=47 // pred_check_branch
          %412 = sbr.rel (%p410) target = $region52
        $region51: #{tpu_custom_call.1} parent=47 // pred_region
          %s413 = sand.u32 %s39, 1
          %s414 = scalar_lea.sflag [#allocation3], %s413
          %s415 = sand.u32 %s39, 1
          %s416 = smul.addr %s415, 8
          %s417 = scalar_lea.vmem [#allocation2], %s416
          %s419 = ssub.s32 128, 128
          %420 = vsyncadd %s414, %s419
          %s421 = smul.addr %s29, 128
          %s422 = scalar_lea.hbm %s0, %s421
          %s424 = sshll.u32 %s417, 4
          %s425 = int_to_ptr.vmem [resolvable:$true] %s424
          %427 = dma.hbm_to_vmem [thread:$0]  %s422, 128, %s425, %s414
        $region52: #{tpu_custom_call.1} parent=47 // pred_fallthru
          _
        // Predicated region
        $region53: #{tpu_custom_call.1} parent=47 // pred_check
          %p428 = pneg %p75
        $region54: #{tpu_custom_call.1} parent=47 // pred_check_branch
          %430 = sbr.rel (%p428) target = $region56
        $region55: #{tpu_custom_call.1} parent=47 // pred_region
          %s431 = sand.u32 %s29, 1
          %s432 = scalar_lea.sflag [#allocation6], %s431
          %s433 = sand.u32 %s65, 1
          %s434 = smul.addr %s433, 8
          %s435 = scalar_lea.vmem [#allocation5], %s434
          %s437 = ssub.s32 128, 128
          %438 = vsyncadd %s432, %s437
          %s439 = smul.addr %s29, 128
          %s440 = scalar_lea.hbm %s1, %s439
          %s442 = sshll.u32 %s435, 4
          %s443 = int_to_ptr.vmem [resolvable:$true] %s442
          %445 = dma.hbm_to_vmem [thread:$0]  %s440, 128, %s443, %s432
        $region56: #{tpu_custom_call.1} parent=47 // pred_fallthru
          _
        // Predicated region
        $region57: #{tpu_custom_call.1} parent=47 // pred_check
          %p446 = pneg %p101
        $region58: #{tpu_custom_call.1} parent=47 // pred_check_branch
          %448 = sbr.rel (%p446) target = $region60
        $region59: #{tpu_custom_call.1} parent=47 // pred_region
          %s449 = sand.u32 %s29, 1
          %s450 = scalar_lea.sflag [#allocation6], %s449
          %s451 = sand.u32 %s91, 1
          %s452 = smul.addr %s451, 8
          %s453 = scalar_lea.vmem [#allocation7], %s452
          %s455 = ssub.s32 128, 128
          %456 = vsyncadd %s450, %s455
          %s457 = smul.addr %s29, 128
          %s458 = scalar_lea.hbm %s2, %s457
          %s460 = sshll.u32 %s453, 4
          %s461 = int_to_ptr.vmem [resolvable:$true] %s460
          %463 = dma.hbm_to_vmem [thread:$0]  %s458, 128, %s461, %s450
        $region60: #{tpu_custom_call.1} parent=47 // pred_fallthru
          _
        // Predicated region
        $region61: #{tpu_custom_call.1} parent=47 // pred_check
          %p464 = pneg %p127
        $region62: #{tpu_custom_call.1} parent=47 // pred_check_branch
          %466 = sbr.rel (%p464) target = $region64
        $region63: #{tpu_custom_call.1} parent=47 // pred_region
          %p467 = scmp.lt.s32.totalorder %s29, 1
          %s468 = scalar_select %p467, %s29, 1
          %s469 = smul.addr %s468, 2
          %s470 = scalar_lea.vmem %s3, %s469
        $region64: #{tpu_custom_call.1} parent=47 // pred_fallthru
          _
      $region48: #{tpu_custom_call.1} parent=5 // pred_fallthru
        _
      %p471 = scmp.le.s32.totalorder 1, %s29
      %p472 = scmp.lt.s32.totalorder %s29, 3
      %p473 = pnand %p471, %p472
      %p474 = pneg %p473
      // Predicated region
      $region65: #{tpu_custom_call.1} parent=5 // pred_check
        _
      $region66: #{tpu_custom_call.1} parent=5 // pred_check_branch
        %476 = sbr.rel (%p473) target = $region68
      $region67: #{tpu_custom_call.1} parent=5 // pred_region
        %s477 = ssub.s32 %s29, 1
        %s478 = sand.u32 %s42, 1
        %s479 = scalar_lea.sflag [#allocation3], %s478
        %s480 = sand.u32 %s42, 1
        %s481 = smul.addr %s480, 8
        %s482 = scalar_lea.vmem [#allocation2], %s481
        // Predicated region
        $region69: #{tpu_custom_call.1} parent=67 // pred_check
          %p483 = pneg %p55
        $region70: #{tpu_custom_call.1} parent=67 // pred_check_branch
          %485 = sbr.rel (%p483) target = $region72
        $region71: #{tpu_custom_call.1} parent=67 // pred_region
          %486 = dma.done %s479, 128
        $region72: #{tpu_custom_call.1} parent=67 // pred_fallthru
          _
        %s487 = sand.u32 %s34, 1
        %s488 = scalar_lea.sflag [#allocation6], %s487
        %s489 = sand.u32 %s68, 1
        %s490 = smul.addr %s489, 8
        %s491 = scalar_lea.vmem [#allocation5], %s490
        // Predicated region
        $region73: #{tpu_custom_call.1} parent=67 // pred_check
          %p492 = pneg %p81
        $region74: #{tpu_custom_call.1} parent=67 // pred_check_branch
          %494 = sbr.rel (%p492) target = $region76
        $region75: #{tpu_custom_call.1} parent=67 // pred_region
          %495 = dma.done %s488, 128
        $region76: #{tpu_custom_call.1} parent=67 // pred_fallthru
          _
        %s496 = sand.u32 %s34, 1
        %s497 = scalar_lea.sflag [#allocation6], %s496
        %s498 = sand.u32 %s94, 1
        %s499 = smul.addr %s498, 8
        %s500 = scalar_lea.vmem [#allocation7], %s499
        // Predicated region
        $region77: #{tpu_custom_call.1} parent=67 // pred_check
          %p501 = pneg %p107
        $region78: #{tpu_custom_call.1} parent=67 // pred_check_branch
          %503 = sbr.rel (%p501) target = $region80
        $region79: #{tpu_custom_call.1} parent=67 // pred_region
          %504 = dma.done %s497, 128
        $region80: #{tpu_custom_call.1} parent=67 // pred_fallthru
          _
        // Predicated region
        $region81: #{tpu_custom_call.1} parent=67 // pred_check
          %p505 = pneg %p154
        $region82: #{tpu_custom_call.1} parent=67 // pred_check_branch
          %507 = sbr.rel (%p505) target = $region84
        $region83: #{tpu_custom_call.1} parent=67 // pred_region
          %508 = dma.done [#allocation9], 512
        $region84: #{tpu_custom_call.1} parent=67 // pred_fallthru
          _
        // Predicated region
        $region85: #{tpu_custom_call.1} parent=67 // pred_check
          %p509 = pneg %p196
        $region86: #{tpu_custom_call.1} parent=67 // pred_check_branch
          %511 = sbr.rel (%p509) target = $region88
        $region87: #{tpu_custom_call.1} parent=67 // pred_region
          %512 = dma.done [#allocation9], 512
        $region88: #{tpu_custom_call.1} parent=67 // pred_fallthru
          _
        // Predicated region
        $region89: #{tpu_custom_call.1} parent=67 // pred_check
          %p513 = pneg %p238
        $region90: #{tpu_custom_call.1} parent=67 // pred_check_branch
          %515 = sbr.rel (%p513) target = $region92
        $region91: #{tpu_custom_call.1} parent=67 // pred_region
          %516 = dma.done [#allocation12], 512
        $region92: #{tpu_custom_call.1} parent=67 // pred_fallthru
          _
        // Predicated region
        $region93: #{tpu_custom_call.1} parent=67 // pred_check
          %p517 = pneg %p280
        $region94: #{tpu_custom_call.1} parent=67 // pred_check_branch
          %519 = sbr.rel (%p517) target = $region96
        $region95: #{tpu_custom_call.1} parent=67 // pred_region
          %520 = dma.done [#allocation12], 512
        $region96: #{tpu_custom_call.1} parent=67 // pred_fallthru
          _
        %s521 = sand.u32 %s42, 1
        %s522 = scalar_lea.sflag [#allocation3], %s521
        %s523 = sand.u32 %s42, 1
        %s524 = smul.addr %s523, 8
        %s525 = scalar_lea.vmem [#allocation2], %s524
        %p526 = pneg %p55
        %p527 = pneg %p52
        %s528 = sand.u32 %s34, 1
        %s529 = scalar_lea.sflag [#allocation6], %s528
        %s530 = sand.u32 %s68, 1
        %s531 = smul.addr %s530, 8
        %s532 = scalar_lea.vmem [#allocation5], %s531
        %p533 = pneg %p81
        %p534 = pneg %p78
        %s535 = sand.u32 %s34, 1
        %s536 = scalar_lea.sflag [#allocation6], %s535
        %s537 = sand.u32 %s94, 1
        %s538 = smul.addr %s537, 8
        %s539 = scalar_lea.vmem [#allocation7], %s538
        %p540 = pneg %p107
        %p541 = pneg %p104
        %p542 = scmp.lt.s32.totalorder %s34, 1
        %s543 = scalar_select %p542, %s34, 1
        %s544 = smul.addr %s543, 2
        %s545 = scalar_lea.vmem %s3, %s544
        %p546 = pneg %p133
        %p547 = pneg %p130
        %p548 = pneg %p154
        %p549 = pneg %p151
        %p550 = pneg %p175
        %p551 = pneg %p172
        %p552 = pneg %p196
        %p553 = pneg %p193
        %p554 = pneg %p217
        %p555 = pneg %p214
        %p556 = pneg %p238
        %p557 = pneg %p235
        %p558 = pneg %p259
        %p559 = pneg %p256
        %p560 = pneg %p280
        %p561 = pneg %p277
        %p562 = pneg %p301
        %p563 = pneg %p298
        %p564 = pneg %p327
        %p565 = pneg %p324
        %s566 = sand.u32 %s314, 1
        %s567 = scalar_lea.sflag [#allocation4], %s566
        %s568 = sand.u32 %s314, 1
        %s569 = smul.addr %s568, 8
        %s570 = scalar_lea.vmem [#allocation14], %s569
        %p571 = scmp.lt.s32.totalorder %s34, 1
        %s572 = scalar_select %p571, %s34, 1
        %s573 = smul.addr %s572, 2
        %s574 = scalar_lea.vmem %s3, %s573
        %v577 = vld [vmem:[%s482] sm:$0xff]
        %v578 = vld [vmem:[%s491] sm:$0xff]
        %v579 = vld [vmem:[%s500] sm:$0xff]
        %v580 = vld [vmem:[#allocation8] sm:$0xff]
        %v581 = vld [vmem:[#allocation8 + $0x8] sm:$0xff]
        %v582 = vld [vmem:[#allocation8 + $0x10] sm:$0xff]
        %v583 = vld [vmem:[#allocation8 + $0x18] sm:$0xff]
        %v584 = vld [vmem:[%s5] sm:$0x1]
        %v586 = vlaneseq
        %v587 = vshrl.u32 %v586, 7
        %v588 = vsub.s32 0, %v587
        %v589 = vrot.slane %v584, %v588
        %vm591 = vcmask 261120
        %v593 = vsel %vm591, %v577, 0
        %595 = vmatprep.subr.mxu0 0.0
        %596 = vmatpush1.msra.mxu0 0.0
        %597 = vmatprep.subr.mxu0 0.0
        %598 = vmatpush1.msra.mxu0 0.0
        %599 = vmatprep.subr.mxu0 0.0
        %600 = vmatpush1.msra.mxu0 0.0
        %601 = vmatprep.subr.mxu0 0.0
        %602 = vmatpush1.msra.mxu0 0.0
        %603 = vmatprep.subr.mxu0 0.0
        %604 = vmatpush1.msra.mxu0 0.0
        %605 = vmatprep.subr.mxu0 0.0
        %606 = vmatpush1.msra.mxu0 0.0
        %607 = vmatprep.subr.mxu0 0.0
        %608 = vmatpush1.msra.mxu0 0.0
        %609 = vmatprep.subr.mxu0 0.0
        %610 = vmatpush1.msra.mxu0 0.0
        %611 = vmatprep.subr.mxu0 0.0
        %612 = vmatpush1.msra.mxu0 0.0
        %613 = vmatprep.subr.mxu0 0.0
        %614 = vmatpush1.msra.mxu0 0.0
        %615 = vmatprep.subr.mxu0 0.0
        %616 = vmatpush1.msra.mxu0 0.0
        %617 = vmatprep.subr.mxu0 0.0
        %618 = vmatpush1.msra.mxu0 0.0
        %619 = vmatprep.subr.mxu0 0.0
        %620 = vmatpush1.msra.mxu0 %v583
        %621 = vmatprep.subr.mxu0 0.0
        %622 = vmatpush1.msra.mxu0 %v582
        %623 = vmatprep.subr.mxu0 0.0
        %624 = vmatpush1.msra.mxu0 %v581
        %625 = vmatprep.subr.mxu0 0.0
        %626 = vmatpush1.msra.mxu0 %v580
        %627 = vmatprep.subr.mxu0 0.0
        %628 = vmatpush2.msra.mxu0 0.0
        %629 = vmatprep.subr.mxu0 0.0
        %630 = vmatpush2.msra.mxu0 0.0
        %631 = vmatprep.subr.mxu0 0.0
        %632 = vmatpush2.msra.mxu0 0.0
        %633 = vmatprep.subr.mxu0 0.0
        %634 = vmatpush2.msra.mxu0 0.0
        %635 = vmatprep.subr.mxu0 0.0
        %636 = vmatpush2.msra.mxu0 0.0
        %637 = vmatprep.subr.mxu0 0.0
        %638 = vmatpush2.msra.mxu0 0.0
        %639 = vmatprep.subr.mxu0 0.0
        %640 = vmatpush2.msra.mxu0 0.0
        %641 = vmatprep.subr.mxu0 0.0
        %642 = vmatpush2.msra.mxu0 0.0
        %643 = vmatprep.subr.mxu0 0.0
        %644 = vmatpush2.msra.mxu0 0.0
        %645 = vmatprep.subr.mxu0 0.0
        %646 = vmatpush2.msra.mxu0 0.0
        %647 = vmatprep.subr.mxu0 0.0
        %648 = vmatpush2.msra.mxu0 0.0
        %649 = vmatprep.subr.mxu0 0.0
        %650 = vmatpush2.msra.mxu0 0.0
        %651 = vmatprep.subr.mxu0 0.0
        %652 = vmatpush2.msra.mxu0 0.0
        %653 = vmatprep.subr.mxu0 0.0
        %654 = vmatpush2.msra.mxu0 0.0
        %655 = vmatprep.subr.mxu0 0.0
        %656 = vmatpush2.msra.mxu0 0.0
        %657 = vmatprep.subr.mxu0 0.0
        %658 = vmatpush2.msra.mxu0 0.0
        %659 = vmatprep.mubr.f32.mxu0 0.0
        %660 = vmatmul.mubr.f32.gmra.mxu0 %v593
        %v661 = vpop.f32.mrf.mxu0
        %v662 = vadd.f32 %v589, %v661
        %v663 = vpop.f32.mrf.mxu0
        %664 = vdwg.mxu0
        %v665 = vmul.f32 %v662, 0.35355338
        %v666 = vld [vmem:[#allocation10] sm:$0xff]
        %v667 = vld [vmem:[#allocation10 + $0x8] sm:$0xff]
        %v668 = vld [vmem:[#allocation10 + $0x10] sm:$0xff]
        %v669 = vld [vmem:[#allocation10 + $0x18] sm:$0xff]
        %v670 = vld [vmem:[%s7] sm:$0x1]
        %v672 = vlaneseq
        %v673 = vshrl.u32 %v672, 7
        %v674 = vsub.s32 0, %v673
        %v675 = vrot.slane %v670, %v674
        %v678 = vsel %vm591, %v578, 0
        %680 = vmatprep.subr.mxu0 0.0
        %681 = vmatpush1.msra.mxu0 0.0
        %682 = vmatprep.subr.mxu0 0.0
        %683 = vmatpush1.msra.mxu0 0.0
        %684 = vmatprep.subr.mxu0 0.0
        %685 = vmatpush1.msra.mxu0 0.0
        %686 = vmatprep.subr.mxu0 0.0
        %687 = vmatpush1.msra.mxu0 0.0
        %688 = vmatprep.subr.mxu0 0.0
        %689 = vmatpush1.msra.mxu0 0.0
        %690 = vmatprep.subr.mxu0 0.0
        %691 = vmatpush1.msra.mxu0 0.0
        %692 = vmatprep.subr.mxu0 0.0
        %693 = vmatpush1.msra.mxu0 0.0
        %694 = vmatprep.subr.mxu0 0.0
        %695 = vmatpush1.msra.mxu0 0.0
        %696 = vmatprep.subr.mxu0 0.0
        %697 = vmatpush1.msra.mxu0 0.0
        %698 = vmatprep.subr.mxu0 0.0
        %699 = vmatpush1.msra.mxu0 0.0
        %700 = vmatprep.subr.mxu0 0.0
        %701 = vmatpush1.msra.mxu0 0.0
        %702 = vmatprep.subr.mxu0 0.0
        %703 = vmatpush1.msra.mxu0 0.0
        %704 = vmatprep.subr.mxu0 0.0
        %705 = vmatpush1.msra.mxu0 %v669
        %706 = vmatprep.subr.mxu0 0.0
        %707 = vmatpush1.msra.mxu0 %v668
        %708 = vmatprep.subr.mxu0 0.0
        %709 = vmatpush1.msra.mxu0 %v667
        %710 = vmatprep.subr.mxu0 0.0
        %711 = vmatpush1.msra.mxu0 %v666
        %712 = vmatprep.subr.mxu0 0.0
        %713 = vmatpush2.msra.mxu0 0.0
        %714 = vmatprep.subr.mxu0 0.0
        %715 = vmatpush2.msra.mxu0 0.0
        %716 = vmatprep.subr.mxu0 0.0
        %717 = vmatpush2.msra.mxu0 0.0
        %718 = vmatprep.subr.mxu0 0.0
        %719 = vmatpush2.msra.mxu0 0.0
        %720 = vmatprep.subr.mxu0 0.0
        %721 = vmatpush2.msra.mxu0 0.0
        %722 = vmatprep.subr.mxu0 0.0
        %723 = vmatpush2.msra.mxu0 0.0
        %724 = vmatprep.subr.mxu0 0.0
        %725 = vmatpush2.msra.mxu0 0.0
        %726 = vmatprep.subr.mxu0 0.0
        %727 = vmatpush2.msra.mxu0 0.0
        %728 = vmatprep.subr.mxu0 0.0
        %729 = vmatpush2.msra.mxu0 0.0
        %730 = vmatprep.subr.mxu0 0.0
        %731 = vmatpush2.msra.mxu0 0.0
        %732 = vmatprep.subr.mxu0 0.0
        %733 = vmatpush2.msra.mxu0 0.0
        %734 = vmatprep.subr.mxu0 0.0
        %735 = vmatpush2.msra.mxu0 0.0
        %736 = vmatprep.subr.mxu0 0.0
        %737 = vmatpush2.msra.mxu0 0.0
        %738 = vmatprep.subr.mxu0 0.0
        %739 = vmatpush2.msra.mxu0 0.0
        %740 = vmatprep.subr.mxu0 0.0
        %741 = vmatpush2.msra.mxu0 0.0
        %742 = vmatprep.subr.mxu0 0.0
        %743 = vmatpush2.msra.mxu0 0.0
        %744 = vmatprep.mubr.f32.mxu0 0.0
        %745 = vmatmul.mubr.f32.gmra.mxu0 %v678
        %v746 = vpop.f32.mrf.mxu0
        %v747 = vadd.f32 %v675, %v746
        %v748 = vpop.f32.mrf.mxu0
        %749 = vdwg.mxu0
        %v750 = vld [vmem:[#allocation11] sm:$0xff]
        %v751 = vld [vmem:[#allocation11 + $0x8] sm:$0xff]
        %v752 = vld [vmem:[#allocation11 + $0x10] sm:$0xff]
        %v753 = vld [vmem:[#allocation11 + $0x18] sm:$0xff]
        %v754 = vld [vmem:[%s9] sm:$0x1]
        %v756 = vlaneseq
        %v757 = vshrl.u32 %v756, 7
        %v758 = vsub.s32 0, %v757
        %v759 = vrot.slane %v754, %v758
        %v762 = vsel %vm591, %v579, 0
        %764 = vmatprep.subr.mxu0 0.0
        %765 = vmatpush1.msra.mxu0 0.0
        %766 = vmatprep.subr.mxu0 0.0
        %767 = vmatpush1.msra.mxu0 0.0
        %768 = vmatprep.subr.mxu0 0.0
        %769 = vmatpush1.msra.mxu0 0.0
        %770 = vmatprep.subr.mxu0 0.0
        %771 = vmatpush1.msra.mxu0 0.0
        %772 = vmatprep.subr.mxu0 0.0
        %773 = vmatpush1.msra.mxu0 0.0
        %774 = vmatprep.subr.mxu0 0.0
        %775 = vmatpush1.msra.mxu0 0.0
        %776 = vmatprep.subr.mxu0 0.0
        %777 = vmatpush1.msra.mxu0 0.0
        %778 = vmatprep.subr.mxu0 0.0
        %779 = vmatpush1.msra.mxu0 0.0
        %780 = vmatprep.subr.mxu0 0.0
        %781 = vmatpush1.msra.mxu0 0.0
        %782 = vmatprep.subr.mxu0 0.0
        %783 = vmatpush1.msra.mxu0 0.0
        %784 = vmatprep.subr.mxu0 0.0
        %785 = vmatpush1.msra.mxu0 0.0
        %786 = vmatprep.subr.mxu0 0.0
        %787 = vmatpush1.msra.mxu0 0.0
        %788 = vmatprep.subr.mxu0 0.0
        %789 = vmatpush1.msra.mxu0 %v753
        %790 = vmatprep.subr.mxu0 0.0
        %791 = vmatpush1.msra.mxu0 %v752
        %792 = vmatprep.subr.mxu0 0.0
        %793 = vmatpush1.msra.mxu0 %v751
        %794 = vmatprep.subr.mxu0 0.0
        %795 = vmatpush1.msra.mxu0 %v750
        %796 = vmatprep.subr.mxu0 0.0
        %797 = vmatpush2.msra.mxu0 0.0
        %798 = vmatprep.subr.mxu0 0.0
        %799 = vmatpush2.msra.mxu0 0.0
        %800 = vmatprep.subr.mxu0 0.0
        %801 = vmatpush2.msra.mxu0 0.0
        %802 = vmatprep.subr.mxu0 0.0
        %803 = vmatpush2.msra.mxu0 0.0
        %804 = vmatprep.subr.mxu0 0.0
        %805 = vmatpush2.msra.mxu0 0.0
        %806 = vmatprep.subr.mxu0 0.0
        %807 = vmatpush2.msra.mxu0 0.0
        %808 = vmatprep.subr.mxu0 0.0
        %809 = vmatpush2.msra.mxu0 0.0
        %810 = vmatprep.subr.mxu0 0.0
        %811 = vmatpush2.msra.mxu0 0.0
        %812 = vmatprep.subr.mxu0 0.0
        %813 = vmatpush2.msra.mxu0 0.0
        %814 = vmatprep.subr.mxu0 0.0
        %815 = vmatpush2.msra.mxu0 0.0
        %816 = vmatprep.subr.mxu0 0.0
        %817 = vmatpush2.msra.mxu0 0.0
        %818 = vmatprep.subr.mxu0 0.0
        %819 = vmatpush2.msra.mxu0 0.0
        %820 = vmatprep.subr.mxu0 0.0
        %821 = vmatpush2.msra.mxu0 0.0
        %822 = vmatprep.subr.mxu0 0.0
        %823 = vmatpush2.msra.mxu0 0.0
        %824 = vmatprep.subr.mxu0 0.0
        %825 = vmatpush2.msra.mxu0 0.0
        %826 = vmatprep.subr.mxu0 0.0
        %827 = vmatpush2.msra.mxu0 0.0
        %828 = vmatprep.mubr.f32.mxu0 0.0
        %829 = vmatmul.mubr.f32.gmra.mxu0 %v762
        %v830 = vpop.f32.mrf.mxu0
        %v831 = vadd.f32 %v759, %v830
        %v832 = vpop.f32.mrf.mxu0
        %833 = vdwg.mxu0
        %v834 = vld [vmem:[%s574] sm:$0x3]
        %vm835 = vnez %v834
        %vm836 = vcmask 64512
        %v838 = vsel %vm836, %v665, 0
        %v841 = vsel %vm836, %v747, 0
        %843 = vmatprep.subr.mxu0 0.0
        %844 = vmatpush1.xpose.msra.mxu0 0.0
        %845 = vmatprep.subr.mxu0 0.0
        %846 = vmatpush1.xpose.msra.mxu0 0.0
        %847 = vmatprep.subr.mxu0 0.0
        %848 = vmatpush1.xpose.msra.mxu0 0.0
        %849 = vmatprep.subr.mxu0 0.0
        %850 = vmatpush1.xpose.msra.mxu0 0.0
        %851 = vmatprep.subr.mxu0 0.0
        %852 = vmatpush1.xpose.msra.mxu0 0.0
        %853 = vmatprep.subr.mxu0 0.0
        %854 = vmatpush1.xpose.msra.mxu0 0.0
        %855 = vmatprep.subr.mxu0 0.0
        %856 = vmatpush1.xpose.msra.mxu0 0.0
        %857 = vmatprep.subr.mxu0 0.0
        %858 = vmatpush1.xpose.msra.mxu0 0.0
        %859 = vmatprep.subr.mxu0 0.0
        %860 = vmatpush1.xpose.msra.mxu0 0.0
        %861 = vmatprep.subr.mxu0 0.0
        %862 = vmatpush1.xpose.msra.mxu0 0.0
        %863 = vmatprep.subr.mxu0 0.0
        %864 = vmatpush1.xpose.msra.mxu0 0.0
        %865 = vmatprep.subr.mxu0 0.0
        %866 = vmatpush1.xpose.msra.mxu0 0.0
        %867 = vmatprep.subr.mxu0 0.0
        %868 = vmatpush1.xpose.msra.mxu0 0.0
        %869 = vmatprep.subr.mxu0 0.0
        %870 = vmatpush1.xpose.msra.mxu0 0.0
        %871 = vmatprep.subr.mxu0 0.0
        %872 = vmatpush1.xpose.msra.mxu0 0.0
        %873 = vmatprep.subr.mxu0 0.0
        %874 = vmatpush1.xpose.msra.mxu0 %v841
        %875 = vmatprep.subr.mxu0 0.0
        %876 = vmatpush2.xpose.msra.mxu0 0.0
        %877 = vmatprep.subr.mxu0 0.0
        %878 = vmatpush2.xpose.msra.mxu0 0.0
        %879 = vmatprep.subr.mxu0 0.0
        %880 = vmatpush2.xpose.msra.mxu0 0.0
        %881 = vmatprep.subr.mxu0 0.0
        %882 = vmatpush2.xpose.msra.mxu0 0.0
        %883 = vmatprep.subr.mxu0 0.0
        %884 = vmatpush2.xpose.msra.mxu0 0.0
        %885 = vmatprep.subr.mxu0 0.0
        %886 = vmatpush2.xpose.msra.mxu0 0.0
        %887 = vmatprep.subr.mxu0 0.0
        %888 = vmatpush2.xpose.msra.mxu0 0.0
        %889 = vmatprep.subr.mxu0 0.0
        %890 = vmatpush2.xpose.msra.mxu0 0.0
        %891 = vmatprep.subr.mxu0 0.0
        %892 = vmatpush2.xpose.msra.mxu0 0.0
        %893 = vmatprep.subr.mxu0 0.0
        %894 = vmatpush2.xpose.msra.mxu0 0.0
        %895 = vmatprep.subr.mxu0 0.0
        %896 = vmatpush2.xpose.msra.mxu0 0.0
        %897 = vmatprep.subr.mxu0 0.0
        %898 = vmatpush2.xpose.msra.mxu0 0.0
        %899 = vmatprep.subr.mxu0 0.0
        %900 = vmatpush2.xpose.msra.mxu0 0.0
        %901 = vmatprep.subr.mxu0 0.0
        %902 = vmatpush2.xpose.msra.mxu0 0.0
        %903 = vmatprep.subr.mxu0 0.0
        %904 = vmatpush2.xpose.msra.mxu0 0.0
        %905 = vmatprep.subr.mxu0 0.0
        %906 = vmatpush2.xpose.msra.mxu0 0.0
        %907 = vmatprep.mubr.f32.mxu0 0.0
        %908 = vmatmul.mubr.f32.gmra.mxu0 %v838
        %v909 = vpop.f32.mrf.mxu0
        %v910 = vadd.f32 0.0, %v909
        %v911 = vpop.f32.mrf.mxu0
        %912 = vdwg.mxu0
        %v913 = vsel %vm835, 16843009, 0
        %v914 = vunpack.c.0.s8 %v913
        %vm915 = vcmp.ne.s32.totalorder %v914, 0
        %v916 = vsel %vm915, 32752.0, %v910
        %v917 = vsel %vm836, %v916, -inf
        %918 = vmax.xlane.f32.xlu0 %v917
        %v919 = vpop.xlane.xlu0 %918
        %v920 = vsub.f32 %v916, %v919
        %v921 = vmul.f32 %v920, 1.442695
        %v922 = vpow.pop %v921
        %v923 = vsel %vm836, %v922, 0.0
        %924 = vadd.xlane.f32.xlu0 %v923
        %v925 = vpop.xlane.xlu0 %924
        %v926 = vrcp.pop %v925
        %v927 = vmul.f32 %v922, %v926
        %v929 = vsel %vm836, %v927, 0
        %931 = vmatprep.subr.mxu0 0.0
        %932 = vmatpush1.msra.mxu0 0.0
        %933 = vmatprep.subr.mxu0 0.0
        %934 = vmatpush1.msra.mxu0 0.0
        %935 = vmatprep.subr.mxu0 0.0
        %936 = vmatpush1.msra.mxu0 0.0
        %937 = vmatprep.subr.mxu0 0.0
        %938 = vmatpush1.msra.mxu0 0.0
        %939 = vmatprep.subr.mxu0 0.0
        %940 = vmatpush1.msra.mxu0 0.0
        %941 = vmatprep.subr.mxu0 0.0
        %942 = vmatpush1.msra.mxu0 0.0
        %943 = vmatprep.subr.mxu0 0.0
        %944 = vmatpush1.msra.mxu0 0.0
        %945 = vmatprep.subr.mxu0 0.0
        %946 = vmatpush1.msra.mxu0 0.0
        %947 = vmatprep.subr.mxu0 0.0
        %948 = vmatpush1.msra.mxu0 0.0
        %949 = vmatprep.subr.mxu0 0.0
        %950 = vmatpush1.msra.mxu0 0.0
        %951 = vmatprep.subr.mxu0 0.0
        %952 = vmatpush1.msra.mxu0 0.0
        %953 = vmatprep.subr.mxu0 0.0
        %954 = vmatpush1.msra.mxu0 0.0
        %955 = vmatprep.subr.mxu0 0.0
        %956 = vmatpush1.msra.mxu0 0.0
        %957 = vmatprep.subr.mxu0 0.0
        %958 = vmatpush1.msra.mxu0 0.0
        %959 = vmatprep.subr.mxu0 0.0
        %960 = vmatpush1.msra.mxu0 0.0
        %961 = vmatprep.subr.mxu0 0.0
        %962 = vmatpush1.msra.mxu0 %v831
        %963 = vmatprep.subr.mxu0 0.0
        %964 = vmatpush2.msra.mxu0 0.0
        %965 = vmatprep.subr.mxu0 0.0
        %966 = vmatpush2.msra.mxu0 0.0
        %967 = vmatprep.subr.mxu0 0.0
        %968 = vmatpush2.msra.mxu0 0.0
        %969 = vmatprep.subr.mxu0 0.0
        %970 = vmatpush2.msra.mxu0 0.0
        %971 = vmatprep.subr.mxu0 0.0
        %972 = vmatpush2.msra.mxu0 0.0
        %973 = vmatprep.subr.mxu0 0.0
        %974 = vmatpush2.msra.mxu0 0.0
        %975 = vmatprep.subr.mxu0 0.0
        %976 = vmatpush2.msra.mxu0 0.0
        %977 = vmatprep.subr.mxu0 0.0
        %978 = vmatpush2.msra.mxu0 0.0
        %979 = vmatprep.subr.mxu0 0.0
        %980 = vmatpush2.msra.mxu0 0.0
        %981 = vmatprep.subr.mxu0 0.0
        %982 = vmatpush2.msra.mxu0 0.0
        %983 = vmatprep.subr.mxu0 0.0
        %984 = vmatpush2.msra.mxu0 0.0
        %985 = vmatprep.subr.mxu0 0.0
        %986 = vmatpush2.msra.mxu0 0.0
        %987 = vmatprep.subr.mxu0 0.0
        %988 = vmatpush2.msra.mxu0 0.0
        %989 = vmatprep.subr.mxu0 0.0
        %990 = vmatpush2.msra.mxu0 0.0
        %991 = vmatprep.subr.mxu0 0.0
        %992 = vmatpush2.msra.mxu0 0.0
        %993 = vmatprep.subr.mxu0 0.0
        %994 = vmatpush2.msra.mxu0 0.0
        %995 = vmatprep.mubr.f32.mxu0 0.0
        %996 = vmatmul.mubr.f32.gmra.mxu0 %v929
        %v997 = vpop.f32.mrf.mxu0
        %v998 = vadd.f32 0.0, %v997
        %v999 = vpop.f32.mrf.mxu0
        %1000 = vdwg.mxu0
        %v1001 = vld [vmem:[#allocation13] sm:$0xff]
        %1002 = vrot.lane.b32.xlu0 %v665, 120
        %v1003 = vpop.permute.xlu0 %1002
        %1004 = vrot.lane.b32.xlu0 %v747, 120
        %v1005 = vpop.permute.xlu0 %1004
        %v1006 = vsel %vm836, %v1003, 0
        %v1008 = vsel %vm836, %v1005, 0
        %1010 = vmatprep.subr.mxu0 0.0
        %1011 = vmatpush1.xpose.msra.mxu0 0.0
        %1012 = vmatprep.subr.mxu0 0.0
        %1013 = vmatpush1.xpose.msra.mxu0 0.0
        %1014 = vmatprep.subr.mxu0 0.0
        %1015 = vmatpush1.xpose.msra.mxu0 0.0
        %1016 = vmatprep.subr.mxu0 0.0
        %1017 = vmatpush1.xpose.msra.mxu0 0.0
        %1018 = vmatprep.subr.mxu0 0.0
        %1019 = vmatpush1.xpose.msra.mxu0 0.0
        %1020 = vmatprep.subr.mxu0 0.0
        %1021 = vmatpush1.xpose.msra.mxu0 0.0
        %1022 = vmatprep.subr.mxu0 0.0
        %1023 = vmatpush1.xpose.msra.mxu0 0.0
        %1024 = vmatprep.subr.mxu0 0.0
        %1025 = vmatpush1.xpose.msra.mxu0 0.0
        %1026 = vmatprep.subr.mxu0 0.0
        %1027 = vmatpush1.xpose.msra.mxu0 0.0
        %1028 = vmatprep.subr.mxu0 0.0
        %1029 = vmatpush1.xpose.msra.mxu0 0.0
        %1030 = vmatprep.subr.mxu0 0.0
        %1031 = vmatpush1.xpose.msra.mxu0 0.0
        %1032 = vmatprep.subr.mxu0 0.0
        %1033 = vmatpush1.xpose.msra.mxu0 0.0
        %1034 = vmatprep.subr.mxu0 0.0
        %1035 = vmatpush1.xpose.msra.mxu0 0.0
        %1036 = vmatprep.subr.mxu0 0.0
        %1037 = vmatpush1.xpose.msra.mxu0 0.0
        %1038 = vmatprep.subr.mxu0 0.0
        %1039 = vmatpush1.xpose.msra.mxu0 0.0
        %1040 = vmatprep.subr.mxu0 0.0
        %1041 = vmatpush1.xpose.msra.mxu0 %v1008
        %1042 = vmatprep.subr.mxu0 0.0
        %1043 = vmatpush2.xpose.msra.mxu0 0.0
        %1044 = vmatprep.subr.mxu0 0.0
        %1045 = vmatpush2.xpose.msra.mxu0 0.0
        %1046 = vmatprep.subr.mxu0 0.0
        %1047 = vmatpush2.xpose.msra.mxu0 0.0
        %1048 = vmatprep.subr.mxu0 0.0
        %1049 = vmatpush2.xpose.msra.mxu0 0.0
        %1050 = vmatprep.subr.mxu0 0.0
        %1051 = vmatpush2.xpose.msra.mxu0 0.0
        %1052 = vmatprep.subr.mxu0 0.0
        %1053 = vmatpush2.xpose.msra.mxu0 0.0
        %1054 = vmatprep.subr.mxu0 0.0
        %1055 = vmatpush2.xpose.msra.mxu0 0.0
        %1056 = vmatprep.subr.mxu0 0.0
        %1057 = vmatpush2.xpose.msra.mxu0 0.0
        %1058 = vmatprep.subr.mxu0 0.0
        %1059 = vmatpush2.xpose.msra.mxu0 0.0
        %1060 = vmatprep.subr.mxu0 0.0
        %1061 = vmatpush2.xpose.msra.mxu0 0.0
        %1062 = vmatprep.subr.mxu0 0.0
        %1063 = vmatpush2.xpose.msra.mxu0 0.0
        %1064 = vmatprep.subr.mxu0 0.0
        %1065 = vmatpush2.xpose.msra.mxu0 0.0
        %1066 = vmatprep.subr.mxu0 0.0
        %1067 = vmatpush2.xpose.msra.mxu0 0.0
        %1068 = vmatprep.subr.mxu0 0.0
        %1069 = vmatpush2.xpose.msra.mxu0 0.0
        %1070 = vmatprep.subr.mxu0 0.0
        %1071 = vmatpush2.xpose.msra.mxu0 0.0
        %1072 = vmatprep.subr.mxu0 0.0
        %1073 = vmatpush2.xpose.msra.mxu0 0.0
        %1074 = vmatprep.mubr.f32.mxu0 0.0
        %1075 = vmatmul.mubr.f32.gmra.mxu0 %v1006
        %v1076 = vpop.f32.mrf.mxu0
        %v1077 = vadd.f32 0.0, %v1076
        %v1078 = vpop.f32.mrf.mxu0
        %1079 = vdwg.mxu0
        %v1080 = vsel %vm915, 32752.0, %v1077
        %v1081 = vsel %vm836, %v1080, -inf
        %1082 = vmax.xlane.f32.xlu0 %v1081
        %v1083 = vpop.xlane.xlu0 %1082
        %v1084 = vsub.f32 %v1080, %v1083
        %v1085 = vmul.f32 %v1084, 1.442695
        %v1086 = vpow.pop %v1085
        %v1087 = vsel %vm836, %v1086, 0.0
        %1088 = vadd.xlane.f32.xlu0 %v1087
        %v1089 = vpop.xlane.xlu0 %1088
        %v1090 = vrcp.pop %v1089
        %v1091 = vmul.f32 %v1086, %v1090
        %1093 = vrot.lane.b32.xlu0 %v831, 120
        %v1094 = vpop.permute.xlu0 %1093
        %v1097 = vsel %vm836, %v1091, 0
        %1099 = vmatprep.subr.mxu0 0.0
        %1100 = vmatpush1.msra.mxu0 0.0
        %1101 = vmatprep.subr.mxu0 0.0
        %1102 = vmatpush1.msra.mxu0 0.0
        %1103 = vmatprep.subr.mxu0 0.0
        %1104 = vmatpush1.msra.mxu0 0.0
        %1105 = vmatprep.subr.mxu0 0.0
        %1106 = vmatpush1.msra.mxu0 0.0
        %1107 = vmatprep.subr.mxu0 0.0
        %1108 = vmatpush1.msra.mxu0 0.0
        %1109 = vmatprep.subr.mxu0 0.0
        %1110 = vmatpush1.msra.mxu0 0.0
        %1111 = vmatprep.subr.mxu0 0.0
        %1112 = vmatpush1.msra.mxu0 0.0
        %1113 = vmatprep.subr.mxu0 0.0
        %1114 = vmatpush1.msra.mxu0 0.0
        %1115 = vmatprep.subr.mxu0 0.0
        %1116 = vmatpush1.msra.mxu0 0.0
        %1117 = vmatprep.subr.mxu0 0.0
        %1118 = vmatpush1.msra.mxu0 0.0
        %1119 = vmatprep.subr.mxu0 0.0
        %1120 = vmatpush1.msra.mxu0 0.0
        %1121 = vmatprep.subr.mxu0 0.0
        %1122 = vmatpush1.msra.mxu0 0.0
        %1123 = vmatprep.subr.mxu0 0.0
        %1124 = vmatpush1.msra.mxu0 0.0
        %1125 = vmatprep.subr.mxu0 0.0
        %1126 = vmatpush1.msra.mxu0 0.0
        %1127 = vmatprep.subr.mxu0 0.0
        %1128 = vmatpush1.msra.mxu0 0.0
        %1129 = vmatprep.subr.mxu0 0.0
        %1130 = vmatpush1.msra.mxu0 %v1094
        %1131 = vmatprep.subr.mxu0 0.0
        %1132 = vmatpush2.msra.mxu0 0.0
        %1133 = vmatprep.subr.mxu0 0.0
        %1134 = vmatpush2.msra.mxu0 0.0
        %1135 = vmatprep.subr.mxu0 0.0
        %1136 = vmatpush2.msra.mxu0 0.0
        %1137 = vmatprep.subr.mxu0 0.0
        %1138 = vmatpush2.msra.mxu0 0.0
        %1139 = vmatprep.subr.mxu0 0.0
        %1140 = vmatpush2.msra.mxu0 0.0
        %1141 = vmatprep.subr.mxu0 0.0
        %1142 = vmatpush2.msra.mxu0 0.0
        %1143 = vmatprep.subr.mxu0 0.0
        %1144 = vmatpush2.msra.mxu0 0.0
        %1145 = vmatprep.subr.mxu0 0.0
        %1146 = vmatpush2.msra.mxu0 0.0
        %1147 = vmatprep.subr.mxu0 0.0
        %1148 = vmatpush2.msra.mxu0 0.0
        %1149 = vmatprep.subr.mxu0 0.0
        %1150 = vmatpush2.msra.mxu0 0.0
        %1151 = vmatprep.subr.mxu0 0.0
        %1152 = vmatpush2.msra.mxu0 0.0
        %1153 = vmatprep.subr.mxu0 0.0
        %1154 = vmatpush2.msra.mxu0 0.0
        %1155 = vmatprep.subr.mxu0 0.0
        %1156 = vmatpush2.msra.mxu0 0.0
        %1157 = vmatprep.subr.mxu0 0.0
        %1158 = vmatpush2.msra.mxu0 0.0
        %1159 = vmatprep.subr.mxu0 0.0
        %1160 = vmatpush2.msra.mxu0 0.0
        %1161 = vmatprep.subr.mxu0 0.0
        %1162 = vmatpush2.msra.mxu0 0.0
        %1163 = vmatprep.mubr.f32.mxu0 0.0
        %1164 = vmatmul.mubr.f32.gmra.mxu0 %v1097
        %v1165 = vpop.f32.mrf.mxu0
        %v1166 = vadd.f32 0.0, %v1165
        %v1167 = vpop.f32.mrf.mxu0
        %1168 = vdwg.mxu0
        %v1169 = vld [vmem:[#allocation13 + $0x8] sm:$0xff]
        %v1171 = vsel %vm836, %v1166, 0
        %1173 = vmatprep.subr.mxu0 0.0
        %1174 = vmatpush1.msra.mxu0 0.0
        %1175 = vmatprep.subr.mxu0 0.0
        %1176 = vmatpush1.msra.mxu0 0.0
        %1177 = vmatprep.subr.mxu0 0.0
        %1178 = vmatpush1.msra.mxu0 0.0
        %1179 = vmatprep.subr.mxu0 0.0
        %1180 = vmatpush1.msra.mxu0 0.0
        %1181 = vmatprep.subr.mxu0 0.0
        %1182 = vmatpush1.msra.mxu0 0.0
        %1183 = vmatprep.subr.mxu0 0.0
        %1184 = vmatpush1.msra.mxu0 0.0
        %1185 = vmatprep.subr.mxu0 0.0
        %1186 = vmatpush1.msra.mxu0 0.0
        %1187 = vmatprep.subr.mxu0 0.0
        %1188 = vmatpush1.msra.mxu0 0.0
        %1189 = vmatprep.subr.mxu0 0.0
        %1190 = vmatpush1.msra.mxu0 0.0
        %1191 = vmatprep.subr.mxu0 0.0
        %1192 = vmatpush1.msra.mxu0 0.0
        %1193 = vmatprep.subr.mxu0 0.0
        %1194 = vmatpush1.msra.mxu0 0.0
        %1195 = vmatprep.subr.mxu0 0.0
        %1196 = vmatpush1.msra.mxu0 0.0
        %1197 = vmatprep.subr.mxu0 0.0
        %1198 = vmatpush1.msra.mxu0 0.0
        %1199 = vmatprep.subr.mxu0 0.0
        %1200 = vmatpush1.msra.mxu0 0.0
        %1201 = vmatprep.subr.mxu0 0.0
        %1202 = vmatpush1.msra.mxu0 0.0
        %1203 = vmatprep.subr.mxu0 0.0
        %1204 = vmatpush1.msra.mxu0 %v1169
        %1205 = vmatprep.subr.mxu0 0.0
        %1206 = vmatpush2.msra.mxu0 0.0
        %1207 = vmatprep.subr.mxu0 0.0
        %1208 = vmatpush2.msra.mxu0 0.0
        %1209 = vmatprep.subr.mxu0 0.0
        %1210 = vmatpush2.msra.mxu0 0.0
        %1211 = vmatprep.subr.mxu0 0.0
        %1212 = vmatpush2.msra.mxu0 0.0
        %1213 = vmatprep.subr.mxu0 0.0
        %1214 = vmatpush2.msra.mxu0 0.0
        %1215 = vmatprep.subr.mxu0 0.0
        %1216 = vmatpush2.msra.mxu0 0.0
        %1217 = vmatprep.subr.mxu0 0.0
        %1218 = vmatpush2.msra.mxu0 0.0
        %1219 = vmatprep.subr.mxu0 0.0
        %1220 = vmatpush2.msra.mxu0 0.0
        %1221 = vmatprep.subr.mxu0 0.0
        %1222 = vmatpush2.msra.mxu0 0.0
        %1223 = vmatprep.subr.mxu0 0.0
        %1224 = vmatpush2.msra.mxu0 0.0
        %1225 = vmatprep.subr.mxu0 0.0
        %1226 = vmatpush2.msra.mxu0 0.0
        %1227 = vmatprep.subr.mxu0 0.0
        %1228 = vmatpush2.msra.mxu0 0.0
        %1229 = vmatprep.subr.mxu0 0.0
        %1230 = vmatpush2.msra.mxu0 0.0
        %1231 = vmatprep.subr.mxu0 0.0
        %1232 = vmatpush2.msra.mxu0 0.0
        %1233 = vmatprep.subr.mxu0 0.0
        %1234 = vmatpush2.msra.mxu0 0.0
        %1235 = vmatprep.subr.mxu0 0.0
        %1236 = vmatpush2.msra.mxu0 0.0
        %1237 = vmatprep.mubr.f32.mxu0 0.0
        %1238 = vmatmul.mubr.f32.gmra.mxu0 %v1171
        %v1239 = vpop.f32.mrf.mxu0
        %v1240 = vadd.f32 0.0, %v1239
        %v1241 = vpop.f32.mrf.mxu0
        %1242 = vdwg.mxu0
        %v1244 = vsel %vm836, %v998, 0
        %1246 = vmatprep.subr.mxu0 0.0
        %1247 = vmatpush1.msra.mxu0 0.0
        %1248 = vmatprep.subr.mxu0 0.0
        %1249 = vmatpush1.msra.mxu0 0.0
        %1250 = vmatprep.subr.mxu0 0.0
        %1251 = vmatpush1.msra.mxu0 0.0
        %1252 = vmatprep.subr.mxu0 0.0
        %1253 = vmatpush1.msra.mxu0 0.0
        %1254 = vmatprep.subr.mxu0 0.0
        %1255 = vmatpush1.msra.mxu0 0.0
        %1256 = vmatprep.subr.mxu0 0.0
        %1257 = vmatpush1.msra.mxu0 0.0
        %1258 = vmatprep.subr.mxu0 0.0
        %1259 = vmatpush1.msra.mxu0 0.0
        %1260 = vmatprep.subr.mxu0 0.0
        %1261 = vmatpush1.msra.mxu0 0.0
        %1262 = vmatprep.subr.mxu0 0.0
        %1263 = vmatpush1.msra.mxu0 0.0
        %1264 = vmatprep.subr.mxu0 0.0
        %1265 = vmatpush1.msra.mxu0 0.0
        %1266 = vmatprep.subr.mxu0 0.0
        %1267 = vmatpush1.msra.mxu0 0.0
        %1268 = vmatprep.subr.mxu0 0.0
        %1269 = vmatpush1.msra.mxu0 0.0
        %1270 = vmatprep.subr.mxu0 0.0
        %1271 = vmatpush1.msra.mxu0 0.0
        %1272 = vmatprep.subr.mxu0 0.0
        %1273 = vmatpush1.msra.mxu0 0.0
        %1274 = vmatprep.subr.mxu0 0.0
        %1275 = vmatpush1.msra.mxu0 0.0
        %1276 = vmatprep.subr.mxu0 0.0
        %1277 = vmatpush1.msra.mxu0 %v1001
        %1278 = vmatprep.subr.mxu0 0.0
        %1279 = vmatpush2.msra.mxu0 0.0
        %1280 = vmatprep.subr.mxu0 0.0
        %1281 = vmatpush2.msra.mxu0 0.0
        %1282 = vmatprep.subr.mxu0 0.0
        %1283 = vmatpush2.msra.mxu0 0.0
        %1284 = vmatprep.subr.mxu0 0.0
        %1285 = vmatpush2.msra.mxu0 0.0
        %1286 = vmatprep.subr.mxu0 0.0
        %1287 = vmatpush2.msra.mxu0 0.0
        %1288 = vmatprep.subr.mxu0 0.0
        %1289 = vmatpush2.msra.mxu0 0.0
        %1290 = vmatprep.subr.mxu0 0.0
        %1291 = vmatpush2.msra.mxu0 0.0
        %1292 = vmatprep.subr.mxu0 0.0
        %1293 = vmatpush2.msra.mxu0 0.0
        %1294 = vmatprep.subr.mxu0 0.0
        %1295 = vmatpush2.msra.mxu0 0.0
        %1296 = vmatprep.subr.mxu0 0.0
        %1297 = vmatpush2.msra.mxu0 0.0
        %1298 = vmatprep.subr.mxu0 0.0
        %1299 = vmatpush2.msra.mxu0 0.0
        %1300 = vmatprep.subr.mxu0 0.0
        %1301 = vmatpush2.msra.mxu0 0.0
        %1302 = vmatprep.subr.mxu0 0.0
        %1303 = vmatpush2.msra.mxu0 0.0
        %1304 = vmatprep.subr.mxu0 0.0
        %1305 = vmatpush2.msra.mxu0 0.0
        %1306 = vmatprep.subr.mxu0 0.0
        %1307 = vmatpush2.msra.mxu0 0.0
        %1308 = vmatprep.subr.mxu0 0.0
        %1309 = vmatpush2.msra.mxu0 0.0
        %1310 = vmatprep.mubr.f32.mxu0 0.0
        %1311 = vmatmul.mubr.f32.gmra.mxu0 %v1244
        %v1312 = vpop.f32.mrf.mxu0
        %v1313 = vadd.f32 %v1240, %v1312
        %v1314 = vpop.f32.mrf.mxu0
        %1315 = vdwg.mxu0
        %1316 = vrot.lane.b32.xlu0 %v665, 112
        %v1317 = vpop.permute.xlu0 %1316
        %1318 = vrot.lane.b32.xlu0 %v747, 112
        %v1319 = vpop.permute.xlu0 %1318
        %v1320 = vsel %vm836, %v1317, 0
        %v1322 = vsel %vm836, %v1319, 0
        %1324 = vmatprep.subr.mxu0 0.0
        %1325 = vmatpush1.xpose.msra.mxu0 0.0
        %1326 = vmatprep.subr.mxu0 0.0
        %1327 = vmatpush1.xpose.msra.mxu0 0.0
        %1328 = vmatprep.subr.mxu0 0.0
        %1329 = vmatpush1.xpose.msra.mxu0 0.0
        %1330 = vmatprep.subr.mxu0 0.0
        %1331 = vmatpush1.xpose.msra.mxu0 0.0
        %1332 = vmatprep.subr.mxu0 0.0
        %1333 = vmatpush1.xpose.msra.mxu0 0.0
        %1334 = vmatprep.subr.mxu0 0.0
        %1335 = vmatpush1.xpose.msra.mxu0 0.0
        %1336 = vmatprep.subr.mxu0 0.0
        %1337 = vmatpush1.xpose.msra.mxu0 0.0
        %1338 = vmatprep.subr.mxu0 0.0
        %1339 = vmatpush1.xpose.msra.mxu0 0.0
        %1340 = vmatprep.subr.mxu0 0.0
        %1341 = vmatpush1.xpose.msra.mxu0 0.0
        %1342 = vmatprep.subr.mxu0 0.0
        %1343 = vmatpush1.xpose.msra.mxu0 0.0
        %1344 = vmatprep.subr.mxu0 0.0
        %1345 = vmatpush1.xpose.msra.mxu0 0.0
        %1346 = vmatprep.subr.mxu0 0.0
        %1347 = vmatpush1.xpose.msra.mxu0 0.0
        %1348 = vmatprep.subr.mxu0 0.0
        %1349 = vmatpush1.xpose.msra.mxu0 0.0
        %1350 = vmatprep.subr.mxu0 0.0
        %1351 = vmatpush1.xpose.msra.mxu0 0.0
        %1352 = vmatprep.subr.mxu0 0.0
        %1353 = vmatpush1.xpose.msra.mxu0 0.0
        %1354 = vmatprep.subr.mxu0 0.0
        %1355 = vmatpush1.xpose.msra.mxu0 %v1322
        %1356 = vmatprep.subr.mxu0 0.0
        %1357 = vmatpush2.xpose.msra.mxu0 0.0
        %1358 = vmatprep.subr.mxu0 0.0
        %1359 = vmatpush2.xpose.msra.mxu0 0.0
        %1360 = vmatprep.subr.mxu0 0.0
        %1361 = vmatpush2.xpose.msra.mxu0 0.0
        %1362 = vmatprep.subr.mxu0 0.0
        %1363 = vmatpush2.xpose.msra.mxu0 0.0
        %1364 = vmatprep.subr.mxu0 0.0
        %1365 = vmatpush2.xpose.msra.mxu0 0.0
        %1366 = vmatprep.subr.mxu0 0.0
        %1367 = vmatpush2.xpose.msra.mxu0 0.0
        %1368 = vmatprep.subr.mxu0 0.0
        %1369 = vmatpush2.xpose.msra.mxu0 0.0
        %1370 = vmatprep.subr.mxu0 0.0
        %1371 = vmatpush2.xpose.msra.mxu0 0.0
        %1372 = vmatprep.subr.mxu0 0.0
        %1373 = vmatpush2.xpose.msra.mxu0 0.0
        %1374 = vmatprep.subr.mxu0 0.0
        %1375 = vmatpush2.xpose.msra.mxu0 0.0
        %1376 = vmatprep.subr.mxu0 0.0
        %1377 = vmatpush2.xpose.msra.mxu0 0.0
        %1378 = vmatprep.subr.mxu0 0.0
        %1379 = vmatpush2.xpose.msra.mxu0 0.0
        %1380 = vmatprep.subr.mxu0 0.0
        %1381 = vmatpush2.xpose.msra.mxu0 0.0
        %1382 = vmatprep.subr.mxu0 0.0
        %1383 = vmatpush2.xpose.msra.mxu0 0.0
        %1384 = vmatprep.subr.mxu0 0.0
        %1385 = vmatpush2.xpose.msra.mxu0 0.0
        %1386 = vmatprep.subr.mxu0 0.0
        %1387 = vmatpush2.xpose.msra.mxu0 0.0
        %1388 = vmatprep.mubr.f32.mxu0 0.0
        %1389 = vmatmul.mubr.f32.gmra.mxu0 %v1320
        %v1390 = vpop.f32.mrf.mxu0
        %v1391 = vadd.f32 0.0, %v1390
        %v1392 = vpop.f32.mrf.mxu0
        %1393 = vdwg.mxu0
        %v1394 = vsel %vm915, 32752.0, %v1391
        %v1395 = vsel %vm836, %v1394, -inf
        %1396 = vmax.xlane.f32.xlu0 %v1395
        %v1397 = vpop.xlane.xlu0 %1396
        %v1398 = vsub.f32 %v1394, %v1397
        %v1399 = vmul.f32 %v1398, 1.442695
        %v1400 = vpow.pop %v1399
        %v1401 = vsel %vm836, %v1400, 0.0
        %1402 = vadd.xlane.f32.xlu0 %v1401
        %v1403 = vpop.xlane.xlu0 %1402
        %v1404 = vrcp.pop %v1403
        %v1405 = vmul.f32 %v1400, %v1404
        %1406 = vrot.lane.b32.xlu0 %v831, 112
        %v1407 = vpop.permute.xlu0 %1406
        %v1410 = vsel %vm836, %v1405, 0
        %1412 = vmatprep.subr.mxu0 0.0
        %1413 = vmatpush1.msra.mxu0 0.0
        %1414 = vmatprep.subr.mxu0 0.0
        %1415 = vmatpush1.msra.mxu0 0.0
        %1416 = vmatprep.subr.mxu0 0.0
        %1417 = vmatpush1.msra.mxu0 0.0
        %1418 = vmatprep.subr.mxu0 0.0
        %1419 = vmatpush1.msra.mxu0 0.0
        %1420 = vmatprep.subr.mxu0 0.0
        %1421 = vmatpush1.msra.mxu0 0.0
        %1422 = vmatprep.subr.mxu0 0.0
        %1423 = vmatpush1.msra.mxu0 0.0
        %1424 = vmatprep.subr.mxu0 0.0
        %1425 = vmatpush1.msra.mxu0 0.0
        %1426 = vmatprep.subr.mxu0 0.0
        %1427 = vmatpush1.msra.mxu0 0.0
        %1428 = vmatprep.subr.mxu0 0.0
        %1429 = vmatpush1.msra.mxu0 0.0
        %1430 = vmatprep.subr.mxu0 0.0
        %1431 = vmatpush1.msra.mxu0 0.0
        %1432 = vmatprep.subr.mxu0 0.0
        %1433 = vmatpush1.msra.mxu0 0.0
        %1434 = vmatprep.subr.mxu0 0.0
        %1435 = vmatpush1.msra.mxu0 0.0
        %1436 = vmatprep.subr.mxu0 0.0
        %1437 = vmatpush1.msra.mxu0 0.0
        %1438 = vmatprep.subr.mxu0 0.0
        %1439 = vmatpush1.msra.mxu0 0.0
        %1440 = vmatprep.subr.mxu0 0.0
        %1441 = vmatpush1.msra.mxu0 0.0
        %1442 = vmatprep.subr.mxu0 0.0
        %1443 = vmatpush1.msra.mxu0 %v1407
        %1444 = vmatprep.subr.mxu0 0.0
        %1445 = vmatpush2.msra.mxu0 0.0
        %1446 = vmatprep.subr.mxu0 0.0
        %1447 = vmatpush2.msra.mxu0 0.0
        %1448 = vmatprep.subr.mxu0 0.0
        %1449 = vmatpush2.msra.mxu0 0.0
        %1450 = vmatprep.subr.mxu0 0.0
        %1451 = vmatpush2.msra.mxu0 0.0
        %1452 = vmatprep.subr.mxu0 0.0
        %1453 = vmatpush2.msra.mxu0 0.0
        %1454 = vmatprep.subr.mxu0 0.0
        %1455 = vmatpush2.msra.mxu0 0.0
        %1456 = vmatprep.subr.mxu0 0.0
        %1457 = vmatpush2.msra.mxu0 0.0
        %1458 = vmatprep.subr.mxu0 0.0
        %1459 = vmatpush2.msra.mxu0 0.0
        %1460 = vmatprep.subr.mxu0 0.0
        %1461 = vmatpush2.msra.mxu0 0.0
        %1462 = vmatprep.subr.mxu0 0.0
        %1463 = vmatpush2.msra.mxu0 0.0
        %1464 = vmatprep.subr.mxu0 0.0
        %1465 = vmatpush2.msra.mxu0 0.0
        %1466 = vmatprep.subr.mxu0 0.0
        %1467 = vmatpush2.msra.mxu0 0.0
        %1468 = vmatprep.subr.mxu0 0.0
        %1469 = vmatpush2.msra.mxu0 0.0
        %1470 = vmatprep.subr.mxu0 0.0
        %1471 = vmatpush2.msra.mxu0 0.0
        %1472 = vmatprep.subr.mxu0 0.0
        %1473 = vmatpush2.msra.mxu0 0.0
        %1474 = vmatprep.subr.mxu0 0.0
        %1475 = vmatpush2.msra.mxu0 0.0
        %1476 = vmatprep.mubr.f32.mxu0 0.0
        %1477 = vmatmul.mubr.f32.gmra.mxu0 %v1410
        %v1478 = vpop.f32.mrf.mxu0
        %v1479 = vadd.f32 0.0, %v1478
        %v1480 = vpop.f32.mrf.mxu0
        %1481 = vdwg.mxu0
        %v1482 = vld [vmem:[#allocation13 + $0x10] sm:$0xff]
        %v1484 = vsel %vm836, %v1479, 0
        %1486 = vmatprep.subr.mxu0 0.0
        %1487 = vmatpush1.msra.mxu0 0.0
        %1488 = vmatprep.subr.mxu0 0.0
        %1489 = vmatpush1.msra.mxu0 0.0
        %1490 = vmatprep.subr.mxu0 0.0
        %1491 = vmatpush1.msra.mxu0 0.0
        %1492 = vmatprep.subr.mxu0 0.0
        %1493 = vmatpush1.msra.mxu0 0.0
        %1494 = vmatprep.subr.mxu0 0.0
        %1495 = vmatpush1.msra.mxu0 0.0
        %1496 = vmatprep.subr.mxu0 0.0
        %1497 = vmatpush1.msra.mxu0 0.0
        %1498 = vmatprep.subr.mxu0 0.0
        %1499 = vmatpush1.msra.mxu0 0.0
        %1500 = vmatprep.subr.mxu0 0.0
        %1501 = vmatpush1.msra.mxu0 0.0
        %1502 = vmatprep.subr.mxu0 0.0
        %1503 = vmatpush1.msra.mxu0 0.0
        %1504 = vmatprep.subr.mxu0 0.0
        %1505 = vmatpush1.msra.mxu0 0.0
        %1506 = vmatprep.subr.mxu0 0.0
        %1507 = vmatpush1.msra.mxu0 0.0
        %1508 = vmatprep.subr.mxu0 0.0
        %1509 = vmatpush1.msra.mxu0 0.0
        %1510 = vmatprep.subr.mxu0 0.0
        %1511 = vmatpush1.msra.mxu0 0.0
        %1512 = vmatprep.subr.mxu0 0.0
        %1513 = vmatpush1.msra.mxu0 0.0
        %1514 = vmatprep.subr.mxu0 0.0
        %1515 = vmatpush1.msra.mxu0 0.0
        %1516 = vmatprep.subr.mxu0 0.0
        %1517 = vmatpush1.msra.mxu0 %v1482
        %1518 = vmatprep.subr.mxu0 0.0
        %1519 = vmatpush2.msra.mxu0 0.0
        %1520 = vmatprep.subr.mxu0 0.0
        %1521 = vmatpush2.msra.mxu0 0.0
        %1522 = vmatprep.subr.mxu0 0.0
        %1523 = vmatpush2.msra.mxu0 0.0
        %1524 = vmatprep.subr.mxu0 0.0
        %1525 = vmatpush2.msra.mxu0 0.0
        %1526 = vmatprep.subr.mxu0 0.0
        %1527 = vmatpush2.msra.mxu0 0.0
        %1528 = vmatprep.subr.mxu0 0.0
        %1529 = vmatpush2.msra.mxu0 0.0
        %1530 = vmatprep.subr.mxu0 0.0
        %1531 = vmatpush2.msra.mxu0 0.0
        %1532 = vmatprep.subr.mxu0 0.0
        %1533 = vmatpush2.msra.mxu0 0.0
        %1534 = vmatprep.subr.mxu0 0.0
        %1535 = vmatpush2.msra.mxu0 0.0
        %1536 = vmatprep.subr.mxu0 0.0
        %1537 = vmatpush2.msra.mxu0 0.0
        %1538 = vmatprep.subr.mxu0 0.0
        %1539 = vmatpush2.msra.mxu0 0.0
        %1540 = vmatprep.subr.mxu0 0.0
        %1541 = vmatpush2.msra.mxu0 0.0
        %1542 = vmatprep.subr.mxu0 0.0
        %1543 = vmatpush2.msra.mxu0 0.0
        %1544 = vmatprep.subr.mxu0 0.0
        %1545 = vmatpush2.msra.mxu0 0.0
        %1546 = vmatprep.subr.mxu0 0.0
        %1547 = vmatpush2.msra.mxu0 0.0
        %1548 = vmatprep.subr.mxu0 0.0
        %1549 = vmatpush2.msra.mxu0 0.0
        %1550 = vmatprep.mubr.f32.mxu0 0.0
        %1551 = vmatmul.mubr.f32.gmra.mxu0 %v1484
        %v1552 = vpop.f32.mrf.mxu0
        %v1553 = vadd.f32 0.0, %v1552
        %v1554 = vpop.f32.mrf.mxu0
        %1555 = vdwg.mxu0
        %v1556 = vadd.f32 %v1313, %v1553
        %1557 = vrot.lane.b32.xlu0 %v665, 104
        %v1558 = vpop.permute.xlu0 %1557
        %1559 = vrot.lane.b32.xlu0 %v747, 104
        %v1560 = vpop.permute.xlu0 %1559
        %v1561 = vsel %vm836, %v1558, 0
        %v1563 = vsel %vm836, %v1560, 0
        %1565 = vmatprep.subr.mxu0 0.0
        %1566 = vmatpush1.xpose.msra.mxu0 0.0
        %1567 = vmatprep.subr.mxu0 0.0
        %1568 = vmatpush1.xpose.msra.mxu0 0.0
        %1569 = vmatprep.subr.mxu0 0.0
        %1570 = vmatpush1.xpose.msra.mxu0 0.0
        %1571 = vmatprep.subr.mxu0 0.0
        %1572 = vmatpush1.xpose.msra.mxu0 0.0
        %1573 = vmatprep.subr.mxu0 0.0
        %1574 = vmatpush1.xpose.msra.mxu0 0.0
        %1575 = vmatprep.subr.mxu0 0.0
        %1576 = vmatpush1.xpose.msra.mxu0 0.0
        %1577 = vmatprep.subr.mxu0 0.0
        %1578 = vmatpush1.xpose.msra.mxu0 0.0
        %1579 = vmatprep.subr.mxu0 0.0
        %1580 = vmatpush1.xpose.msra.mxu0 0.0
        %1581 = vmatprep.subr.mxu0 0.0
        %1582 = vmatpush1.xpose.msra.mxu0 0.0
        %1583 = vmatprep.subr.mxu0 0.0
        %1584 = vmatpush1.xpose.msra.mxu0 0.0
        %1585 = vmatprep.subr.mxu0 0.0
        %1586 = vmatpush1.xpose.msra.mxu0 0.0
        %1587 = vmatprep.subr.mxu0 0.0
        %1588 = vmatpush1.xpose.msra.mxu0 0.0
        %1589 = vmatprep.subr.mxu0 0.0
        %1590 = vmatpush1.xpose.msra.mxu0 0.0
        %1591 = vmatprep.subr.mxu0 0.0
        %1592 = vmatpush1.xpose.msra.mxu0 0.0
        %1593 = vmatprep.subr.mxu0 0.0
        %1594 = vmatpush1.xpose.msra.mxu0 0.0
        %1595 = vmatprep.subr.mxu0 0.0
        %1596 = vmatpush1.xpose.msra.mxu0 %v1563
        %1597 = vmatprep.subr.mxu0 0.0
        %1598 = vmatpush2.xpose.msra.mxu0 0.0
        %1599 = vmatprep.subr.mxu0 0.0
        %1600 = vmatpush2.xpose.msra.mxu0 0.0
        %1601 = vmatprep.subr.mxu0 0.0
        %1602 = vmatpush2.xpose.msra.mxu0 0.0
        %1603 = vmatprep.subr.mxu0 0.0
        %1604 = vmatpush2.xpose.msra.mxu0 0.0
        %1605 = vmatprep.subr.mxu0 0.0
        %1606 = vmatpush2.xpose.msra.mxu0 0.0
        %1607 = vmatprep.subr.mxu0 0.0
        %1608 = vmatpush2.xpose.msra.mxu0 0.0
        %1609 = vmatprep.subr.mxu0 0.0
        %1610 = vmatpush2.xpose.msra.mxu0 0.0
        %1611 = vmatprep.subr.mxu0 0.0
        %1612 = vmatpush2.xpose.msra.mxu0 0.0
        %1613 = vmatprep.subr.mxu0 0.0
        %1614 = vmatpush2.xpose.msra.mxu0 0.0
        %1615 = vmatprep.subr.mxu0 0.0
        %1616 = vmatpush2.xpose.msra.mxu0 0.0
        %1617 = vmatprep.subr.mxu0 0.0
        %1618 = vmatpush2.xpose.msra.mxu0 0.0
        %1619 = vmatprep.subr.mxu0 0.0
        %1620 = vmatpush2.xpose.msra.mxu0 0.0
        %1621 = vmatprep.subr.mxu0 0.0
        %1622 = vmatpush2.xpose.msra.mxu0 0.0
        %1623 = vmatprep.subr.mxu0 0.0
        %1624 = vmatpush2.xpose.msra.mxu0 0.0
        %1625 = vmatprep.subr.mxu0 0.0
        %1626 = vmatpush2.xpose.msra.mxu0 0.0
        %1627 = vmatprep.subr.mxu0 0.0
        %1628 = vmatpush2.xpose.msra.mxu0 0.0
        %1629 = vmatprep.mubr.f32.mxu0 0.0
        %1630 = vmatmul.mubr.f32.gmra.mxu0 %v1561
        %v1631 = vpop.f32.mrf.mxu0
        %v1632 = vadd.f32 0.0, %v1631
        %v1633 = vpop.f32.mrf.mxu0
        %1634 = vdwg.mxu0
        %v1635 = vsel %vm915, 32752.0, %v1632
        %v1636 = vsel %vm836, %v1635, -inf
        %1637 = vmax.xlane.f32.xlu0 %v1636
        %v1638 = vpop.xlane.xlu0 %1637
        %v1639 = vsub.f32 %v1635, %v1638
        %v1640 = vmul.f32 %v1639, 1.442695
        %v1641 = vpow.pop %v1640
        %v1642 = vsel %vm836, %v1641, 0.0
        %1643 = vadd.xlane.f32.xlu0 %v1642
        %v1644 = vpop.xlane.xlu0 %1643
        %v1645 = vrcp.pop %v1644
        %v1646 = vmul.f32 %v1641, %v1645
        %1647 = vrot.lane.b32.xlu0 %v831, 104
        %v1648 = vpop.permute.xlu0 %1647
        %v1651 = vsel %vm836, %v1646, 0
        %1653 = vmatprep.subr.mxu0 0.0
        %1654 = vmatpush1.msra.mxu0 0.0
        %1655 = vmatprep.subr.mxu0 0.0
        %1656 = vmatpush1.msra.mxu0 0.0
        %1657 = vmatprep.subr.mxu0 0.0
        %1658 = vmatpush1.msra.mxu0 0.0
        %1659 = vmatprep.subr.mxu0 0.0
        %1660 = vmatpush1.msra.mxu0 0.0
        %1661 = vmatprep.subr.mxu0 0.0
        %1662 = vmatpush1.msra.mxu0 0.0
        %1663 = vmatprep.subr.mxu0 0.0
        %1664 = vmatpush1.msra.mxu0 0.0
        %1665 = vmatprep.subr.mxu0 0.0
        %1666 = vmatpush1.msra.mxu0 0.0
        %1667 = vmatprep.subr.mxu0 0.0
        %1668 = vmatpush1.msra.mxu0 0.0
        %1669 = vmatprep.subr.mxu0 0.0
        %1670 = vmatpush1.msra.mxu0 0.0
        %1671 = vmatprep.subr.mxu0 0.0
        %1672 = vmatpush1.msra.mxu0 0.0
        %1673 = vmatprep.subr.mxu0 0.0
        %1674 = vmatpush1.msra.mxu0 0.0
        %1675 = vmatprep.subr.mxu0 0.0
        %1676 = vmatpush1.msra.mxu0 0.0
        %1677 = vmatprep.subr.mxu0 0.0
        %1678 = vmatpush1.msra.mxu0 0.0
        %1679 = vmatprep.subr.mxu0 0.0
        %1680 = vmatpush1.msra.mxu0 0.0
        %1681 = vmatprep.subr.mxu0 0.0
        %1682 = vmatpush1.msra.mxu0 0.0
        %1683 = vmatprep.subr.mxu0 0.0
        %1684 = vmatpush1.msra.mxu0 %v1648
        %1685 = vmatprep.subr.mxu0 0.0
        %1686 = vmatpush2.msra.mxu0 0.0
        %1687 = vmatprep.subr.mxu0 0.0
        %1688 = vmatpush2.msra.mxu0 0.0
        %1689 = vmatprep.subr.mxu0 0.0
        %1690 = vmatpush2.msra.mxu0 0.0
        %1691 = vmatprep.subr.mxu0 0.0
        %1692 = vmatpush2.msra.mxu0 0.0
        %1693 = vmatprep.subr.mxu0 0.0
        %1694 = vmatpush2.msra.mxu0 0.0
        %1695 = vmatprep.subr.mxu0 0.0
        %1696 = vmatpush2.msra.mxu0 0.0
        %1697 = vmatprep.subr.mxu0 0.0
        %1698 = vmatpush2.msra.mxu0 0.0
        %1699 = vmatprep.subr.mxu0 0.0
        %1700 = vmatpush2.msra.mxu0 0.0
        %1701 = vmatprep.subr.mxu0 0.0
        %1702 = vmatpush2.msra.mxu0 0.0
        %1703 = vmatprep.subr.mxu0 0.0
        %1704 = vmatpush2.msra.mxu0 0.0
        %1705 = vmatprep.subr.mxu0 0.0
        %1706 = vmatpush2.msra.mxu0 0.0
        %1707 = vmatprep.subr.mxu0 0.0
        %1708 = vmatpush2.msra.mxu0 0.0
        %1709 = vmatprep.subr.mxu0 0.0
        %1710 = vmatpush2.msra.mxu0 0.0
        %1711 = vmatprep.subr.mxu0 0.0
        %1712 = vmatpush2.msra.mxu0 0.0
        %1713 = vmatprep.subr.mxu0 0.0
        %1714 = vmatpush2.msra.mxu0 0.0
        %1715 = vmatprep.subr.mxu0 0.0
        %1716 = vmatpush2.msra.mxu0 0.0
        %1717 = vmatprep.mubr.f32.mxu0 0.0
        %1718 = vmatmul.mubr.f32.gmra.mxu0 %v1651
        %v1719 = vpop.f32.mrf.mxu0
        %v1720 = vadd.f32 0.0, %v1719
        %v1721 = vpop.f32.mrf.mxu0
        %1722 = vdwg.mxu0
        %v1723 = vld [vmem:[#allocation13 + $0x18] sm:$0xff]
        %v1725 = vsel %vm836, %v1720, 0
        %1727 = vmatprep.subr.mxu0 0.0
        %1728 = vmatpush1.msra.mxu0 0.0
        %1729 = vmatprep.subr.mxu0 0.0
        %1730 = vmatpush1.msra.mxu0 0.0
        %1731 = vmatprep.subr.mxu0 0.0
        %1732 = vmatpush1.msra.mxu0 0.0
        %1733 = vmatprep.subr.mxu0 0.0
        %1734 = vmatpush1.msra.mxu0 0.0
        %1735 = vmatprep.subr.mxu0 0.0
        %1736 = vmatpush1.msra.mxu0 0.0
        %1737 = vmatprep.subr.mxu0 0.0
        %1738 = vmatpush1.msra.mxu0 0.0
        %1739 = vmatprep.subr.mxu0 0.0
        %1740 = vmatpush1.msra.mxu0 0.0
        %1741 = vmatprep.subr.mxu0 0.0
        %1742 = vmatpush1.msra.mxu0 0.0
        %1743 = vmatprep.subr.mxu0 0.0
        %1744 = vmatpush1.msra.mxu0 0.0
        %1745 = vmatprep.subr.mxu0 0.0
        %1746 = vmatpush1.msra.mxu0 0.0
        %1747 = vmatprep.subr.mxu0 0.0
        %1748 = vmatpush1.msra.mxu0 0.0
        %1749 = vmatprep.subr.mxu0 0.0
        %1750 = vmatpush1.msra.mxu0 0.0
        %1751 = vmatprep.subr.mxu0 0.0
        %1752 = vmatpush1.msra.mxu0 0.0
        %1753 = vmatprep.subr.mxu0 0.0
        %1754 = vmatpush1.msra.mxu0 0.0
        %1755 = vmatprep.subr.mxu0 0.0
        %1756 = vmatpush1.msra.mxu0 0.0
        %1757 = vmatprep.subr.mxu0 0.0
        %1758 = vmatpush1.msra.mxu0 %v1723
        %1759 = vmatprep.subr.mxu0 0.0
        %1760 = vmatpush2.msra.mxu0 0.0
        %1761 = vmatprep.subr.mxu0 0.0
        %1762 = vmatpush2.msra.mxu0 0.0
        %1763 = vmatprep.subr.mxu0 0.0
        %1764 = vmatpush2.msra.mxu0 0.0
        %1765 = vmatprep.subr.mxu0 0.0
        %1766 = vmatpush2.msra.mxu0 0.0
        %1767 = vmatprep.subr.mxu0 0.0
        %1768 = vmatpush2.msra.mxu0 0.0
        %1769 = vmatprep.subr.mxu0 0.0
        %1770 = vmatpush2.msra.mxu0 0.0
        %1771 = vmatprep.subr.mxu0 0.0
        %1772 = vmatpush2.msra.mxu0 0.0
        %1773 = vmatprep.subr.mxu0 0.0
        %1774 = vmatpush2.msra.mxu0 0.0
        %1775 = vmatprep.subr.mxu0 0.0
        %1776 = vmatpush2.msra.mxu0 0.0
        %1777 = vmatprep.subr.mxu0 0.0
        %1778 = vmatpush2.msra.mxu0 0.0
        %1779 = vmatprep.subr.mxu0 0.0
        %1780 = vmatpush2.msra.mxu0 0.0
        %1781 = vmatprep.subr.mxu0 0.0
        %1782 = vmatpush2.msra.mxu0 0.0
        %1783 = vmatprep.subr.mxu0 0.0
        %1784 = vmatpush2.msra.mxu0 0.0
        %1785 = vmatprep.subr.mxu0 0.0
        %1786 = vmatpush2.msra.mxu0 0.0
        %1787 = vmatprep.subr.mxu0 0.0
        %1788 = vmatpush2.msra.mxu0 0.0
        %1789 = vmatprep.subr.mxu0 0.0
        %1790 = vmatpush2.msra.mxu0 0.0
        %1791 = vmatprep.mubr.f32.mxu0 0.0
        %1792 = vmatmul.mubr.f32.gmra.mxu0 %v1725
        %v1793 = vpop.f32.mrf.mxu0
        %v1794 = vadd.f32 0.0, %v1793
        %v1795 = vpop.f32.mrf.mxu0
        %1796 = vdwg.mxu0
        %v1797 = vadd.f32 %v1556, %v1794
        %v1798 = vld [vmem:[%s11] sm:$0x1]
        %v1800 = vlaneseq
        %v1801 = vshrl.u32 %v1800, 7
        %v1802 = vsub.s32 0, %v1801
        %v1803 = vrot.slane %v1798, %v1802
        %v1805 = vadd.f32 %v1797, %v1803
        %1806 = vst.msk [vmem:[%s570] sm:$0xff] %vm591, %v1805
        %s1807 = sand.u32 %s314, 1
        %s1808 = scalar_lea.sflag [#allocation4], %s1807
        %s1809 = sand.u32 %s314, 1
        %s1810 = smul.addr %s1809, 8
        %s1811 = scalar_lea.vmem [#allocation14], %s1810
        // Predicated region
        $region97: #{tpu_custom_call.1} parent=67 // pred_check
          %p1812 = pneg %p324
        $region98: #{tpu_custom_call.1} parent=67 // pred_check_branch
          %1814 = sbr.rel (%p1812) target = $region100
        $region99: #{tpu_custom_call.1} parent=67 // pred_region
          %s1816 = ssub.s32 128, 128
          %1817 = vsyncadd %s1808, %s1816
          %s1818 = smul.addr %s34, 128
          %s1819 = scalar_lea.hbm %s12, %s1818
          %s1821 = sshll.u32 %s1811, 4
          %s1822 = int_to_ptr.vmem [resolvable:$true] %s1821
          %1824 = dma.vmem_to_hbm [thread:$0]  %s1822, 128, %s1819, %s1808
        $region100: #{tpu_custom_call.1} parent=67 // pred_fallthru
          _
      $region68: #{tpu_custom_call.1} parent=5 // pred_fallthru
        _
      %p1825 = scmp.le.s32.totalorder 2, %s29
      // Predicated region
      $region101: #{tpu_custom_call.1} parent=5 // pred_check
        %p1826 = pneg %p1825
      $region102: #{tpu_custom_call.1} parent=5 // pred_check_branch
        %1828 = sbr.rel (%p1826) target = $region104
      $region103: #{tpu_custom_call.1} parent=5 // pred_region
        %s1829 = ssub.s32 %s29, 2
        // Predicated region
        $region105: #{tpu_custom_call.1} parent=103 // pred_check
          %p1830 = pneg %p330
        $region106: #{tpu_custom_call.1} parent=103 // pred_check_branch
          %1832 = sbr.rel (%p1830) target = $region108
        $region107: #{tpu_custom_call.1} parent=103 // pred_region
          %s1833 = sand.u32 %s315, 1
          %s1834 = scalar_lea.sflag [#allocation4], %s1833
          %s1835 = sand.u32 %s315, 1
          %s1836 = smul.addr %s1835, 8
          %s1837 = scalar_lea.vmem [#allocation14], %s1836
          %1838 = dma.done %s1834, 128
        $region108: #{tpu_custom_call.1} parent=103 // pred_fallthru
          _
      $region104: #{tpu_custom_call.1} parent=5 // pred_fallthru
        _
    $region6: #{tpu_custom_call.1} parent=1 // loop_footer
      %s33 = sadd.s32 1, %s29
    $region7: #{tpu_custom_call.1} parent=1 // loop_footer_branch
      %28 = sbr.rel target = $region3
    $region8: #{tpu_custom_call.1} parent=1 // loop_exit
      _
    %1839 = vsyncpa [#allocation3], 1
    %s1840 = scalar_lea.sflag [#allocation3], 1
    %1841 = vsyncpa %s1840, 1
    %1842 = vsyncpa [#allocation6], 1
    %s1843 = scalar_lea.sflag [#allocation6], 1
    %1844 = vsyncpa %s1843, 1
    %1845 = vsyncpa [#allocation9], 1
    %1846 = vsyncpa [#allocation12], 1
    %1847 = vsyncpa [#allocation4], 1
    %s1848 = scalar_lea.sflag [#allocation4], 1
    %1849 = vsyncpa %s1848, 1

</llo_original>
